<compile_context>
chip_gen: v5e
topology: v5e:2x2
jax: 0.10.0
libtpu: 0.0.40
codegen_flags: <defaults>
</compile_context>

<pallas_src>
import functools

import jax
import jax.numpy as jnp
import numpy as np
from jax.experimental import pallas as pl
from jax.experimental.pallas import tpu as pltpu


def _round_up(x, m):
    return ((x + m - 1) // m) * m


_BLOCK_K = 8  # fused time steps per grid iteration (sweepable; 16 fits v5e/v6e)


# -----------------------------------------------------------------------------
# Pallas kernel: K fused masked LSTM steps + one deferred fc GEMM per iteration
# -----------------------------------------------------------------------------
def _decoder_kernel(
    bs_ref,      # SMEM (Tp,) int32     : batch_size_t per step (scalar prefetch)
    h1_ref,      # VMEM (Bb, Hp) f32    : h after the plain-JAX warm-up step
    c1_ref,      # VMEM (Bb, Hp) f32
    emb_ref,     # VMEM (K, Bb, Ep) bf16: embeddings for this time block
    wih_ref,     # VMEM (Ep, 4Hp) bf16  : LSTM input weights (gate order i,f,g,o)
    whh_ref,     # VMEM (Hp, 4Hp) bf16  : LSTM hidden weights
    b_ref,       # VMEM (1, 4Hp) f32    : combined bias b_ih + b_hh
    wfc_ref,     # VMEM (Hp, Vp) bf16
    bfc_ref,     # VMEM (1, Vp) f32
    pred_ref,    # VMEM (K, Bb, Vp) bf16: output block (time-major, dense store)
    h_sc,        # VMEM (Bb, Hp) f32    : persists across time blocks
    c_sc,        # VMEM (Bb, Hp) f32
    gx_sc,       # VMEM (K, Bb, 4Hp) f32: hoisted x@W_ih + bias for the block
    hq_sc,       # VMEM (K, Bb, Hp) bf16: per-step hidden states (deferred fc)
    mask_sc,     # VMEM (K, Bb, 1) f32  : per-step active-row mask
    *, block_k,
):
    b_idx = pl.program_id(0)     # batch-block index ("parallel")
    tb = pl.program_id(1)        # time-block index  ("arbitrary", recurrent)
    Bb, Hp = h_sc.shape
    Vp = pred_ref.shape[2]
    K = block_k

    # Start of the sequence for this batch block: load the warm-up state.
    @pl.when(tb == 0)
    def _():
        h_sc[...] = h1_ref[...]
        c_sc[...] = c1_ref[...]

    # Global row index of each sublane row in this batch block.
    row = jax.lax.broadcasted_iota(jnp.int32, (Bb, 1), 0) + b_idx * Bb

    # ---- Hoisted input projection: one (K*Bb, Ep) x (Ep, 4Hp) MXU matmul ----
    x_all = emb_ref[...].reshape(K * Bb, -1)                     # bf16
    gx = (jnp.dot(x_all, wih_ref[...], preferred_element_type=jnp.float32)
          + b_ref[...])                                          # (K*Bb, 4Hp) f32
    gx_sc[...] = gx.reshape(K, Bb, 4 * Hp)

    whh = whh_ref[...]
    h = h_sc[...]
    c = c_sc[...]
    h_bf = h.astype(jnp.bfloat16)

    for k in range(K):                       # static unroll over fused steps
        bs_t = bs_ref[tb * K + k]            # rows active at this time step
        mask = row < bs_t                    # (Bb, 1)

        # Only the recurrent h @ W_hh matmul remains inside the loop.
        gates = gx_sc[k] + jnp.dot(h_bf, whh, preferred_element_type=jnp.float32)
        i_g = jax.nn.sigmoid(gates[:, 0 * Hp:1 * Hp])
        f_g = jax.nn.sigmoid(gates[:, 1 * Hp:2 * Hp])
        g_g = jnp.tanh(gates[:, 2 * Hp:3 * Hp])
        o_g = jax.nn.sigmoid(gates[:, 3 * Hp:4 * Hp])
        c_new = f_g * c + i_g * g_g
        h_new = o_g * jnp.tanh(c_new)

        # Inactive rows keep their old state (batch_size_t is non-increasing).
        h = jnp.where(mask, h_new, h)
        c = jnp.where(mask, c_new, c)
        h_bf = h.astype(jnp.bfloat16)        # single bf16 cast per step

        hq_sc[k] = h_bf                       # stash for the deferred fc GEMM
        mask_sc[k] = mask.astype(jnp.float32)

    h_sc[...] = h
    c_sc[...] = c

    # ---- Deferred fc: single (K*Bb, Hp) x (Hp, Vp) MXU matmul, dense store ----
    hq = hq_sc[...].reshape(K * Bb, Hp)
    logits = (jnp.dot(hq, wfc_ref[...], preferred_element_type=jnp.float32)
              + bfc_ref[...]).reshape(K, Bb, Vp)
    pred_ref[...] = (logits * mask_sc[...]).astype(pred_ref.dtype)  # inactive -> 0


def decode_pallas(h1, c1, emb_tbe, w_ih, w_hh, b, w_fc, b_fc, bs_t,
                  *, block_k=_BLOCK_K, batch_block=None):
    """emb_tbe: (Tp, Bp, Ep) bf16 time-major.  Returns (Tp, Bp, Vp) bf16."""
    Tp, Bp, Ep = emb_tbe.shape
    Hp = h1.shape[1]
    Vp = w_fc.shape[1]
    H4 = w_ih.shape[1]
    K = block_k

    if batch_block is None:
        # >=2 batch blocks lets v7x shard the "parallel" axis across its two
        # TensorCores; harmless (sequential) on single-TC v5e/v6e.
        Bb = Bp // 2 if (Bp >= 32 and Bp % 32 == 0) else Bp
    else:
        Bb = batch_block
    assert Bp % Bb == 0 and Bb % 16 == 0 and Tp % K == 0
    nb = Bp // Bb
    ntb = Tp // K

    # --- VMEM budget ----------------------------------------------------------
    inv_bytes = ((w_ih.size + w_hh.size + w_fc.size) * 2        # bf16, Buffered(1)
                 + (b.size + b_fc.size) * 4)
    stream_bytes = 2 * (K * Bb * Ep * 2        # emb block (bf16), double-buffered
                        + K * Bb * Vp * 2      # pred block (bf16), double-buffered
                        + 2 * Bb * Hp * 4)     # h1 / c1 blocks (f32)
    scratch_bytes = (2 * Bb * Hp * 4           # h_sc / c_sc
                     + K * Bb * H4 * 4         # gx_sc
                     + K * Bb * Hp * 2         # hq_sc
                     + K * Bb * 128 * 4)       # mask_sc (lane-padded)
    footprint = inv_bytes + stream_bytes + scratch_bytes
    try:   # generation-aware cap: ~128 MiB physical on v5e/v6e, 64 MiB/TC on v7x
        phys = int(pltpu.get_tpu_info().vmem_capacity_bytes)
    except Exception:
        phys = 64 * 1024 * 1024
    cap = min(int(phys * 0.8), 100 * 1024 * 1024)
    vmem_limit = int(min(max(int(footprint * 1.25), 16 * 1024 * 1024), cap))

    def _invariant_spec(shape):
        # Grid-invariant block: single-buffer it (second buffer is pure waste).
        idx = lambda bi, ti, bs: (0,) * len(shape)
        try:
            return pl.BlockSpec(shape, idx, pipeline_mode=pl.Buffered(1))
        except (TypeError, AttributeError):
            return pl.BlockSpec(shape, idx)

    grid_spec = pltpu.PrefetchScalarGridSpec(
        num_scalar_prefetch=1,
        grid=(nb, ntb),
        in_specs=[
            pl.BlockSpec((Bb, Hp), lambda bi, ti, bs: (bi, 0)),        # h1
            pl.BlockSpec((Bb, Hp), lambda bi, ti, bs: (bi, 0)),        # c1
            pl.BlockSpec((K, Bb, Ep), lambda bi, ti, bs: (ti, bi, 0)), # emb
            _invariant_spec((Ep, H4)),                                 # w_ih
            _invariant_spec((Hp, H4)),                                 # w_hh
            _invariant_spec((1, H4)),                                  # bias
            _invariant_spec((Hp, Vp)),                                 # w_fc
            _invariant_spec((1, Vp)),                                  # b_fc
        ],
        out_specs=pl.BlockSpec((K, Bb, Vp), lambda bi, ti, bs: (ti, bi, 0)),
        scratch_shapes=[
            pltpu.VMEM((Bb, Hp), jnp.float32),        # h_sc
            pltpu.VMEM((Bb, Hp), jnp.float32),        # c_sc
            pltpu.VMEM((K, Bb, H4), jnp.float32),     # gx_sc
            pltpu.VMEM((K, Bb, Hp), jnp.bfloat16),    # hq_sc
            pltpu.VMEM((K, Bb, 1), jnp.float32),      # mask_sc
        ],
    )

    return pl.pallas_call(
        functools.partial(_decoder_kernel, block_k=K),
        out_shape=jax.ShapeDtypeStruct((Tp, Bp, Vp), jnp.bfloat16),
        grid_spec=grid_spec,
        compiler_params=pltpu.CompilerParams(
            dimension_semantics=("parallel", "arbitrary"),
            vmem_limit_bytes=vmem_limit,
        ),
    )(bs_t, h1, c1, emb_tbe, w_ih, w_hh, b, w_fc, b_fc)


# -----------------------------------------------------------------------------
# Shared numerics helpers
# -----------------------------------------------------------------------------
def _lstm_cell_jax(x, h, c, w_ih, w_hh, bias):
    """Plain-JAX LSTMCell, bf16 weights + f32 accumulation (gate order i,f,g,o).

    Addition order (x@W_ih + bias) + h@W_hh matches the Pallas kernel."""
    H = h.shape[1]
    gx = (jnp.dot(x.astype(jnp.bfloat16), w_ih, preferred_element_type=jnp.float32)
          + bias)
    g = gx + jnp.dot(h.astype(jnp.bfloat16), w_hh, preferred_element_type=jnp.float32)
    i = jax.nn.sigmoid(g[:, :H])
    f = jax.nn.sigmoid(g[:, H:2 * H])
    gg = jnp.tanh(g[:, 2 * H:3 * H])
    o = jax.nn.sigmoid(g[:, 3 * H:])
    c2 = f * c + i * gg
    return o * jnp.tanh(c2), c2


def _pad_gate_weights(w, in_dim_p, h, hp):
    """(in, 4h) gate-blocked weights -> (in_p, 4hp); each gate zero-padded."""
    in_dim = w.shape[0]
    w4 = w.reshape(in_dim, 4, h)
    w4 = jnp.pad(w4, ((0, in_dim_p - in_dim), (0, 0), (0, hp - h)))
    return w4.reshape(in_dim_p, 4 * hp)


# -----------------------------------------------------------------------------
# Decoder module (params + forward glue)
# -----------------------------------------------------------------------------
def make_params(key, attrs_dim, embed_dim, decoder_dim, attrs_size, vocab_size):
    ks = jax.random.split(key, 12)
    u = lambda k, shape, s=0.1: jax.random.uniform(k, shape, jnp.float32, -s, s)
    bf = jnp.bfloat16
    params = dict(
        w_x0=u(ks[0], (attrs_size, embed_dim)),
        b_x0=u(ks[1], (embed_dim,)),
        emb_table=u(ks[2], (vocab_size, embed_dim)).astype(bf),
        w_ih=u(ks[3], (embed_dim, 4 * decoder_dim)).astype(bf),
        w_hh=u(ks[4], (decoder_dim, 4 * decoder_dim)).astype(bf),
        b_ih=u(ks[5], (4 * decoder_dim,)),
        b_hh=u(ks[6], (4 * decoder_dim,)),
        w_h=u(ks[7], (attrs_dim, decoder_dim)),
        b_h=u(ks[8], (decoder_dim,)),
        w_c=u(ks[9], (attrs_dim, decoder_dim)),
        b_c=u(ks[10], (decoder_dim,)),
        w_fc=u(ks[11], (decoder_dim, vocab_size)).astype(bf),
        b_fc=jnp.zeros((vocab_size,), jnp.float32),
    )
    return params


@jax.jit
def _decoder_core(params, attrs, encoded_captions, caption_lengths):
    """Jittable hot path: compiles once for given input shapes (static padded T)."""
    B, L = encoded_captions.shape
    E = params["w_ih"].shape[0]
    H = params["w_hh"].shape[0]
    V = params["w_fc"].shape[1]

    # x0 is computed from UNSORTED attrs (matches the reference implementation).
    x0 = attrs @ params["w_x0"] + params["b_x0"]

    lengths = caption_lengths[:, 0]
    sort_ind = jnp.argsort(-lengths)                       # descending
    lengths_sorted = lengths[sort_ind]
    attrs_s = attrs[sort_ind]
    captions_s = encoded_captions[sort_ind]

    h0 = attrs_s @ params["w_h"] + params["b_h"]
    c0 = attrs_s @ params["w_c"] + params["b_c"]
    bias = (params["b_ih"] + params["b_hh"]).astype(jnp.float32)

    # Warm-up step (PyTorch: h, c = decode_step(x0, (h, c)) before the loop).
    h1, c1 = _lstm_cell_jax(x0, h0, c0, params["w_ih"], params["w_hh"], bias)

    # On-device schedule with static, padded T (no host sync, no recompiles).
    K = _BLOCK_K
    T_max = L - 1
    Tp = _round_up(max(T_max, 1), K)
    dec_len = lengths_sorted - 1                                    # (B,)
    bs_t = jnp.sum(dec_len[:, None] > jnp.arange(Tp)[None, :],
                   axis=0).astype(jnp.int32)                        # (Tp,)

    # Padded, lane/sublane-aligned operands (Bp multiple of 16 for bf16 tiles).
    Bp = _round_up(B, 16)
    Ep = _round_up(E, 128)
    Hp = _round_up(H, 128)
    Vp = _round_up(V, 128)

    pad_t = max(0, Tp - L)
    ids = jnp.pad(captions_s, ((0, 0), (0, pad_t)))[:, :Tp]         # (B, Tp)
    emb_tbe = params["emb_table"][ids.T]                            # (Tp, B, E) bf16
    emb_tbe = jnp.pad(emb_tbe, ((0, 0), (0, Bp - B), (0, Ep - E)))

    h1p = jnp.pad(h1, ((0, Bp - B), (0, Hp - H)))
    c1p = jnp.pad(c1, ((0, Bp - B), (0, Hp - H)))

    wih_p = _pad_gate_weights(params["w_ih"], Ep, H, Hp)            # bf16
    whh_p = _pad_gate_weights(params["w_hh"], Hp, H, Hp)            # bf16
    bias_p = jnp.pad(bias.reshape(4, H), ((0, 0), (0, Hp - H))).reshape(1, 4 * Hp)
    wfc_p = jnp.pad(params["w_fc"], ((0, Hp - H), (0, Vp - V)))     # bf16
    bfc_p = jnp.pad(params["b_fc"], (0, Vp - V)).reshape(1, Vp)

    preds_tbv = decode_pallas(h1p, c1p, emb_tbe, wih_p, whh_p, bias_p,
                              wfc_p, bfc_p, bs_t, block_k=K)  # (Tp, Bp, Vp) bf16
    return preds_tbv, captions_s, lengths_sorted, sort_ind


def decoder_forward(params, attrs, encoded_captions, caption_lengths, vocab_size):
    """Mirrors Decoder.forward (eval-mode dropout)."""
    B = attrs.shape[0]
    preds_tbv, captions_s, lengths_sorted, sort_ind = _decoder_core(
        params, attrs, encoded_captions, caption_lengths)

    # Host-side only for the returned Python list / final slice (module API);
    # the pallas_call itself has a static shape and never recompiles per T.
    decode_lengths = [int(l) - 1 for l in jax.device_get(lengths_sorted)]
    t_out = max(decode_lengths)
    predictions = jnp.transpose(
        preds_tbv[:t_out, :B, :vocab_size], (1, 0, 2)).astype(jnp.float32)
    return predictions, captions_s, decode_lengths, sort_ind


# -----------------------------------------------------------------------------
# Pure-JAX reference (same bf16-weight / f32-accumulate numerics)
# -----------------------------------------------------------------------------
def decoder_forward_ref(params, attrs, encoded_captions, caption_lengths, vocab_size):
    x0 = attrs @ params["w_x0"] + params["b_x0"]
    lengths = caption_lengths[:, 0]
    sort_ind = jnp.argsort(-lengths)
    lengths_sorted = lengths[sort_ind]
    attrs_s = attrs[sort_ind]
    captions_s = encoded_captions[sort_ind]
    embeddings = params["emb_table"][captions_s]            # (B, L, E) bf16
    h = attrs_s @ params["w_h"] + params["b_h"]
    c = attrs_s @ params["w_c"] + params["b_c"]
    bias = (params["b_ih"] + params["b_hh"]).astype(jnp.float32)

    decode_lengths = [int(l) - 1 for l in jax.device_get(lengths_sorted)]
    T = max(decode_lengths)
    B = attrs.shape[0]

    cell = functools.partial(_lstm_cell_jax, w_ih=params["w_ih"],
                             w_hh=params["w_hh"], bias=bias)

    preds = jnp.zeros((B, T, vocab_size), jnp.float32)
    h, c = cell(x0, h, c)
    for t in range(T):
        bt = sum(l > t for l in decode_lengths)
        hn, cn = cell(embeddings[:bt, t, :], h[:bt], c[:bt])
        p = (jnp.dot(hn.astype(jnp.bfloat16), params["w_fc"],
                     preferred_element_type=jnp.float32) + params["b_fc"])
        preds = preds.at[:bt, t, :].set(p)
        h, c = hn, cn
    return preds, captions_s, decode_lengths, sort_ind


# -----------------------------------------------------------------------------
if __name__ == "__main__":
    B = 4
    attrs_dim = attrs_size = 32   # module's forward requires attrs_dim == attrs_size
    embed_dim = 32
    decoder_dim = 32
    vocab_size = 64
    max_cap_len = 20

    key = jax.random.PRNGKey(0)
    k_par, k_attr, k_cap = jax.random.split(key, 3)

    params = make_params(k_par, attrs_dim, embed_dim, decoder_dim,
                         attrs_size, vocab_size)

    attrs = jax.random.normal(k_attr, (B, attrs_dim), jnp.float32)
    encoded_captions = jax.random.randint(
        k_cap, (B, max_cap_len), 0, vocab_size, jnp.int32)
    caption_lengths = jnp.array([[12], [17], [5], [9]], jnp.int32)

    preds, caps_s, dec_lens, sort_ind = decoder_forward(
        params, attrs, encoded_captions, caption_lengths, vocab_size)
    preds = jax.block_until_ready(preds)

    preds_ref, caps_ref, dec_ref, sort_ref = decoder_forward_ref(
        params, attrs, encoded_captions, caption_lengths, vocab_size)

    assert dec_lens == dec_ref
    np.testing.assert_array_equal(np.asarray(sort_ind), np.asarray(sort_ref))
    # Kernel emits bf16 logits (f32 accumulation inside the dots) -> 2e-2 tol.
    np.testing.assert_allclose(np.asarray(preds), np.asarray(preds_ref),
                               rtol=2e-2, atol=2e-2)

    print("KERNEL_OK")
</pallas_src>

<mosaic_0001>
module attributes {stable_mosaic.version = 11 : i64} {
  func.func @_decoder_kernel(%arg0: i32, %arg1: i32, %arg2: memref<24xi32, #tpu.memory_space<smem>>, %arg3: memref<16x128xf32, #tpu.memory_space<vmem>>, %arg4: memref<16x128xf32, #tpu.memory_space<vmem>>, %arg5: memref<8x16x128xbf16, #tpu.memory_space<vmem>>, %arg6: memref<128x512xbf16, #tpu.memory_space<vmem>>, %arg7: memref<128x512xbf16, #tpu.memory_space<vmem>>, %arg8: memref<1x512xf32, #tpu.memory_space<vmem>>, %arg9: memref<128x128xbf16, #tpu.memory_space<vmem>>, %arg10: memref<1x128xf32, #tpu.memory_space<vmem>>, %arg11: memref<8x16x128xbf16, #tpu.memory_space<vmem>>, %arg12: memref<16x128xf32, #tpu.memory_space<vmem>>, %arg13: memref<16x128xf32, #tpu.memory_space<vmem>>, %arg14: memref<8x16x512xf32, #tpu.memory_space<vmem>>, %arg15: memref<8x16x128xbf16, #tpu.memory_space<vmem>>, %arg16: memref<8x16x1xf32, #tpu.memory_space<vmem>>) attributes {dimension_semantics = [#tpu.dimension_semantics<parallel>, #tpu.dimension_semantics<arbitrary>], iteration_bounds = array<i64: 1, 3>, scalar_prefetch = 1 : i64, scratch_operands = 5 : i64, tpu.core_type = #tpu.core_type<tc>, window_params = [{transform_indices = @transform_0, window_bounds = array<i64: 16, 128>}, {transform_indices = @transform_1, window_bounds = array<i64: 16, 128>}, {transform_indices = @transform_2, window_bounds = array<i64: 8, 16, 128>}, {pipeline_mode = #tpu.pipeline_mode<synchronous>, transform_indices = @transform_3, window_bounds = array<i64: 128, 512>}, {pipeline_mode = #tpu.pipeline_mode<synchronous>, transform_indices = @transform_4, window_bounds = array<i64: 128, 512>}, {pipeline_mode = #tpu.pipeline_mode<synchronous>, transform_indices = @transform_5, window_bounds = array<i64: 1, 512>}, {pipeline_mode = #tpu.pipeline_mode<synchronous>, transform_indices = @transform_6, window_bounds = array<i64: 128, 128>}, {pipeline_mode = #tpu.pipeline_mode<synchronous>, transform_indices = @transform_7, window_bounds = array<i64: 1, 128>}, {transform_indices = @transform_8, window_bounds = array<i64: 8, 16, 128>}]} {
    %c0_i32 = arith.constant 0 : i32
    %0 = arith.cmpi eq, %arg1, %c0_i32 : i32
    %1 = arith.extui %0 : i1 to i32
    %c0_i32_0 = arith.constant 0 : i32
    %2 = arith.cmpi ne, %1, %c0_i32_0 : i32
    scf.if %2 {
      %c0_139 = arith.constant 0 : index
      %c0_140 = arith.constant 0 : index
      %435 = vector.load %arg3[%c0_139, %c0_140] : memref<16x128xf32, #tpu.memory_space<vmem>>, vector<16x128xf32>
      %c0_141 = arith.constant 0 : index
      %c0_142 = arith.constant 0 : index
      %436 = vector.load %arg12[%c0_141, %c0_142] : memref<16x128xf32, #tpu.memory_space<vmem>>, vector<16x128xf32>
      tpu.vector_store %arg12[%c0_141, %c0_142], %435 {strides = array<i32>} : memref<16x128xf32, #tpu.memory_space<vmem>>, vector<16x128xf32>,
      %c0_143 = arith.constant 0 : index
      %c0_144 = arith.constant 0 : index
      %437 = vector.load %arg4[%c0_143, %c0_144] : memref<16x128xf32, #tpu.memory_space<vmem>>, vector<16x128xf32>
      %c0_145 = arith.constant 0 : index
      %c0_146 = arith.constant 0 : index
      %438 = vector.load %arg13[%c0_145, %c0_146] : memref<16x128xf32, #tpu.memory_space<vmem>>, vector<16x128xf32>
      tpu.vector_store %arg13[%c0_145, %c0_146], %437 {strides = array<i32>} : memref<16x128xf32, #tpu.memory_space<vmem>>, vector<16x128xf32>,
    } else {
    }
    %3 = tpu.iota {dimensions = array<i32: 0>} : vector<16x1xi32>
    %c16_i32 = arith.constant 16 : i32
    %4 = arith.muli %arg0, %c16_i32 : i32
    %5 = vector.broadcast %4 : i32 to vector<16x1xi32>
    %6 = arith.addi %3, %5 : vector<16x1xi32>
    %c0 = arith.constant 0 : index
    %c0_1 = arith.constant 0 : index
    %c0_2 = arith.constant 0 : index
    %7 = vector.load %arg5[%c0, %c0_1, %c0_2] : memref<8x16x128xbf16, #tpu.memory_space<vmem>>, vector<8x16x128xbf16>
    %8 = vector.shape_cast %7 : vector<8x16x128xbf16> to vector<128x128xbf16>
    %c0_3 = arith.constant 0 : index
    %c0_4 = arith.constant 0 : index
    %9 = vector.load %arg6[%c0_3, %c0_4] : memref<128x512xbf16, #tpu.memory_space<vmem>>, vector<128x512xbf16>
    %cst = arith.constant dense<0.000000e+00> : vector<128x512xf32>
    %10 = tpu.matmul %8, %9, %cst {dimension_numbers = #tpu.dot_dimension_numbers<[1], [0], [0], [1], [0, 0, 1, 1], [], []>} : vector<128x128xbf16>, vector<128x512xbf16>, vector<128x512xf32> -> vector<128x512xf32>
    %c0_5 = arith.constant 0 : index
    %c0_6 = arith.constant 0 : index
    %11 = vector.load %arg8[%c0_5, %c0_6] : memref<1x512xf32, #tpu.memory_space<vmem>>, vector<1x512xf32>
    %12 = vector.broadcast %11 : vector<1x512xf32> to vector<128x512xf32>
    %13 = arith.addf %10, %12 : vector<128x512xf32>
    %14 = vector.shape_cast %13 : vector<128x512xf32> to vector<8x16x512xf32>
    %c0_7 = arith.constant 0 : index
    %c0_8 = arith.constant 0 : index
    %c0_9 = arith.constant 0 : index
    %15 = vector.load %arg14[%c0_7, %c0_8, %c0_9] : memref<8x16x512xf32, #tpu.memory_space<vmem>>, vector<8x16x512xf32>
    tpu.vector_store %arg14[%c0_7, %c0_8, %c0_9], %14 {strides = array<i32>} : memref<8x16x512xf32, #tpu.memory_space<vmem>>, vector<8x16x512xf32>,
    %c0_10 = arith.constant 0 : index
    %c0_11 = arith.constant 0 : index
    %16 = vector.load %arg7[%c0_10, %c0_11] : memref<128x512xbf16, #tpu.memory_space<vmem>>, vector<128x512xbf16>
    %c0_12 = arith.constant 0 : index
    %c0_13 = arith.constant 0 : index
    %17 = vector.load %arg12[%c0_12, %c0_13] : memref<16x128xf32, #tpu.memory_space<vmem>>, vector<16x128xf32>
    %c0_14 = arith.constant 0 : index
    %c0_15 = arith.constant 0 : index
    %18 = vector.load %arg13[%c0_14, %c0_15] : memref<16x128xf32, #tpu.memory_space<vmem>>, vector<16x128xf32>
    %19 = arith.truncf %17 : vector<16x128xf32> to vector<16x128xbf16>
    %c8_i32 = arith.constant 8 : i32
    %20 = arith.muli %arg1, %c8_i32 : i32
    %c0_i32_16 = arith.constant 0 : i32
    %21 = arith.addi %20, %c0_i32_16 : i32
    %22 = arith.index_cast %21 : i32 to index
    %23 = memref.load %arg2[%22] : memref<24xi32, #tpu.memory_space<smem>>
    %24 = vector.broadcast %23 : i32 to vector<16x1xi32>
    %25 = arith.cmpi slt, %6, %24 : vector<16x1xi32>
    %c0_17 = arith.constant 0 : index
    %c0_18 = arith.constant 0 : index
    %c0_19 = arith.constant 0 : index
    %26 = vector.load %arg14[%c0_17, %c0_18, %c0_19] : memref<8x16x512xf32, #tpu.memory_space<vmem>>, vector<1x16x512xf32>
    %27 = vector.shape_cast %26 : vector<1x16x512xf32> to vector<16x512xf32>
    %cst_20 = arith.constant dense<0.000000e+00> : vector<16x512xf32>
    %28 = tpu.matmul %19, %16, %cst_20 {dimension_numbers = #tpu.dot_dimension_numbers<[1], [0], [0], [1], [0, 0, 1, 1], [], []>} : vector<16x128xbf16>, vector<128x512xbf16>, vector<16x512xf32> -> vector<16x512xf32>
    %29 = arith.addf %27, %28 : vector<16x512xf32>
    %30 = vector.extract_strided_slice %29 {offsets = [0, 0], sizes = [16, 128], strides = [1, 1]} : vector<16x512xf32> to vector<16x128xf32>
    %31 = arith.negf %30 : vector<16x128xf32>
    %32 = math.exp %31 : vector<16x128xf32>
    %cst_21 = arith.constant 1.000000e+00 : f32
    %33 = vector.broadcast %cst_21 : f32 to vector<16x128xf32>
    %34 = arith.addf %33, %32 : vector<16x128xf32>
    %35 = arith.divf %33, %34 : vector<16x128xf32>
    %36 = vector.extract_strided_slice %29 {offsets = [0, 128], sizes = [16, 128], strides = [1, 1]} : vector<16x512xf32> to vector<16x128xf32>
    %37 = arith.negf %36 : vector<16x128xf32>
    %38 = math.exp %37 : vector<16x128xf32>
    %cst_22 = arith.constant 1.000000e+00 : f32
    %39 = vector.broadcast %cst_22 : f32 to vector<16x128xf32>
    %40 = arith.addf %39, %38 : vector<16x128xf32>
    %41 = arith.divf %39, %40 : vector<16x128xf32>
    %42 = vector.extract_strided_slice %29 {offsets = [0, 256], sizes = [16, 128], strides = [1, 1]} : vector<16x512xf32> to vector<16x128xf32>
    %43 = math.tanh %42 : vector<16x128xf32>
    %44 = vector.extract_strided_slice %29 {offsets = [0, 384], sizes = [16, 128], strides = [1, 1]} : vector<16x512xf32> to vector<16x128xf32>
    %45 = arith.negf %44 : vector<16x128xf32>
    %46 = math.exp %45 : vector<16x128xf32>
    %cst_23 = arith.constant 1.000000e+00 : f32
    %47 = vector.broadcast %cst_23 : f32 to vector<16x128xf32>
    %48 = arith.addf %47, %46 : vector<16x128xf32>
    %49 = arith.divf %47, %48 : vector<16x128xf32>
    %50 = arith.mulf %41, %18 : vector<16x128xf32>
    %51 = arith.mulf %35, %43 : vector<16x128xf32>
    %52 = arith.addf %50, %51 : vector<16x128xf32>
    %53 = math.tanh %52 : vector<16x128xf32>
    %54 = arith.mulf %49, %53 : vector<16x128xf32>
    %55 = vector.shape_cast %25 : vector<16x1xi1> to vector<16x1xi1>
    %56 = vector.broadcast %55 : vector<16x1xi1> to vector<16x128xi1>
    %57 = arith.select %56, %54, %17 : vector<16x128xi1>, vector<16x128xf32>
    %58 = vector.shape_cast %25 : vector<16x1xi1> to vector<16x1xi1>
    %59 = vector.broadcast %58 : vector<16x1xi1> to vector<16x128xi1>
    %60 = arith.select %59, %52, %18 : vector<16x128xi1>, vector<16x128xf32>
    %61 = arith.truncf %57 : vector<16x128xf32> to vector<16x128xbf16>
    %c0_24 = arith.constant 0 : index
    %c0_25 = arith.constant 0 : index
    %c0_26 = arith.constant 0 : index
    %62 = vector.load %arg15[%c0_24, %c0_25, %c0_26] : memref<8x16x128xbf16, #tpu.memory_space<vmem>>, vector<1x16x128xbf16>
    %63 = vector.shape_cast %62 : vector<1x16x128xbf16> to vector<16x128xbf16>
    %64 = vector.shape_cast %61 : vector<16x128xbf16> to vector<1x16x128xbf16>
    tpu.vector_store %arg15[%c0_24, %c0_25, %c0_26], %64 {strides = array<i32>} : memref<8x16x128xbf16, #tpu.memory_space<vmem>>, vector<1x16x128xbf16>,
    %65 = arith.extui %25 : vector<16x1xi1> to vector<16x1xi32>
    %66 = arith.sitofp %65 : vector<16x1xi32> to vector<16x1xf32>
    %c0_27 = arith.constant 0 : index
    %c0_28 = arith.constant 0 : index
    %c0_29 = arith.constant 0 : index
    %67 = vector.load %arg16[%c0_27, %c0_28, %c0_29] : memref<8x16x1xf32, #tpu.memory_space<vmem>>, vector<1x16x1xf32>
    %68 = vector.shape_cast %67 : vector<1x16x1xf32> to vector<16x1xf32>
    %69 = vector.shape_cast %66 : vector<16x1xf32> to vector<1x16x1xf32>
    tpu.vector_store %arg16[%c0_27, %c0_28, %c0_29], %69 {strides = array<i32>} : memref<8x16x1xf32, #tpu.memory_space<vmem>>, vector<1x16x1xf32>,
    %c8_i32_30 = arith.constant 8 : i32
    %70 = arith.muli %arg1, %c8_i32_30 : i32
    %c1_i32 = arith.constant 1 : i32
    %71 = arith.addi %70, %c1_i32 : i32
    %72 = arith.index_cast %71 : i32 to index
    %73 = memref.load %arg2[%72] : memref<24xi32, #tpu.memory_space<smem>>
    %74 = vector.broadcast %73 : i32 to vector<16x1xi32>
    %75 = arith.cmpi slt, %6, %74 : vector<16x1xi32>
    %c1 = arith.constant 1 : index
    %c0_31 = arith.constant 0 : index
    %c0_32 = arith.constant 0 : index
    %76 = vector.load %arg14[%c1, %c0_31, %c0_32] : memref<8x16x512xf32, #tpu.memory_space<vmem>>, vector<1x16x512xf32>
    %77 = vector.shape_cast %76 : vector<1x16x512xf32> to vector<16x512xf32>
    %cst_33 = arith.constant dense<0.000000e+00> : vector<16x512xf32>
    %78 = tpu.matmul %61, %16, %cst_33 {dimension_numbers = #tpu.dot_dimension_numbers<[1], [0], [0], [1], [0, 0, 1, 1], [], []>} : vector<16x128xbf16>, vector<128x512xbf16>, vector<16x512xf32> -> vector<16x512xf32>
    %79 = arith.addf %77, %78 : vector<16x512xf32>
    %80 = vector.extract_strided_slice %79 {offsets = [0, 0], sizes = [16, 128], strides = [1, 1]} : vector<16x512xf32> to vector<16x128xf32>
    %81 = arith.negf %80 : vector<16x128xf32>
    %82 = math.exp %81 : vector<16x128xf32>
    %cst_34 = arith.constant 1.000000e+00 : f32
    %83 = vector.broadcast %cst_34 : f32 to vector<16x128xf32>
    %84 = arith.addf %83, %82 : vector<16x128xf32>
    %85 = arith.divf %83, %84 : vector<16x128xf32>
    %86 = vector.extract_strided_slice %79 {offsets = [0, 128], sizes = [16, 128], strides = [1, 1]} : vector<16x512xf32> to vector<16x128xf32>
    %87 = arith.negf %86 : vector<16x128xf32>
    %88 = math.exp %87 : vector<16x128xf32>
    %cst_35 = arith.constant 1.000000e+00 : f32
    %89 = vector.broadcast %cst_35 : f32 to vector<16x128xf32>
    %90 = arith.addf %89, %88 : vector<16x128xf32>
    %91 = arith.divf %89, %90 : vector<16x128xf32>
    %92 = vector.extract_strided_slice %79 {offsets = [0, 256], sizes = [16, 128], strides = [1, 1]} : vector<16x512xf32> to vector<16x128xf32>
    %93 = math.tanh %92 : vector<16x128xf32>
    %94 = vector.extract_strided_slice %79 {offsets = [0, 384], sizes = [16, 128], strides = [1, 1]} : vector<16x512xf32> to vector<16x128xf32>
    %95 = arith.negf %94 : vector<16x128xf32>
    %96 = math.exp %95 : vector<16x128xf32>
    %cst_36 = arith.constant 1.000000e+00 : f32
    %97 = vector.broadcast %cst_36 : f32 to vector<16x128xf32>
    %98 = arith.addf %97, %96 : vector<16x128xf32>
    %99 = arith.divf %97, %98 : vector<16x128xf32>
    %100 = arith.mulf %91, %60 : vector<16x128xf32>
    %101 = arith.mulf %85, %93 : vector<16x128xf32>
    %102 = arith.addf %100, %101 : vector<16x128xf32>
    %103 = math.tanh %102 : vector<16x128xf32>
    %104 = arith.mulf %99, %103 : vector<16x128xf32>
    %105 = vector.shape_cast %75 : vector<16x1xi1> to vector<16x1xi1>
    %106 = vector.broadcast %105 : vector<16x1xi1> to vector<16x128xi1>
    %107 = arith.select %106, %104, %57 : vector<16x128xi1>, vector<16x128xf32>
    %108 = vector.shape_cast %75 : vector<16x1xi1> to vector<16x1xi1>
    %109 = vector.broadcast %108 : vector<16x1xi1> to vector<16x128xi1>
    %110 = arith.select %109, %102, %60 : vector<16x128xi1>, vector<16x128xf32>
    %111 = arith.truncf %107 : vector<16x128xf32> to vector<16x128xbf16>
    %c1_37 = arith.constant 1 : index
    %c0_38 = arith.constant 0 : index
    %c0_39 = arith.constant 0 : index
    %112 = vector.load %arg15[%c1_37, %c0_38, %c0_39] : memref<8x16x128xbf16, #tpu.memory_space<vmem>>, vector<1x16x128xbf16>
    %113 = vector.shape_cast %112 : vector<1x16x128xbf16> to vector<16x128xbf16>
    %114 = vector.shape_cast %111 : vector<16x128xbf16> to vector<1x16x128xbf16>
    tpu.vector_store %arg15[%c1_37, %c0_38, %c0_39], %114 {strides = array<i32>} : memref<8x16x128xbf16, #tpu.memory_space<vmem>>, vector<1x16x128xbf16>,
    %115 = arith.extui %75 : vector<16x1xi1> to vector<16x1xi32>
    %116 = arith.sitofp %115 : vector<16x1xi32> to vector<16x1xf32>
    %c1_40 = arith.constant 1 : index
    %c0_41 = arith.constant 0 : index
    %c0_42 = arith.constant 0 : index
    %117 = vector.load %arg16[%c1_40, %c0_41, %c0_42] : memref<8x16x1xf32, #tpu.memory_space<vmem>>, vector<1x16x1xf32>
    %118 = vector.shape_cast %117 : vector<1x16x1xf32> to vector<16x1xf32>
    %119 = vector.shape_cast %116 : vector<16x1xf32> to vector<1x16x1xf32>
    tpu.vector_store %arg16[%c1_40, %c0_41, %c0_42], %119 {strides = array<i32>} : memref<8x16x1xf32, #tpu.memory_space<vmem>>, vector<1x16x1xf32>,
    %c8_i32_43 = arith.constant 8 : i32
    %120 = arith.muli %arg1, %c8_i32_43 : i32
    %c2_i32 = arith.constant 2 : i32
    %121 = arith.addi %120, %c2_i32 : i32
    %122 = arith.index_cast %121 : i32 to index
    %123 = memref.load %arg2[%122] : memref<24xi32, #tpu.memory_space<smem>>
    %124 = vector.broadcast %123 : i32 to vector<16x1xi32>
    %125 = arith.cmpi slt, %6, %124 : vector<16x1xi32>
    %c2 = arith.constant 2 : index
    %c0_44 = arith.constant 0 : index
    %c0_45 = arith.constant 0 : index
    %126 = vector.load %arg14[%c2, %c0_44, %c0_45] : memref<8x16x512xf32, #tpu.memory_space<vmem>>, vector<1x16x512xf32>
    %127 = vector.shape_cast %126 : vector<1x16x512xf32> to vector<16x512xf32>
    %cst_46 = arith.constant dense<0.000000e+00> : vector<16x512xf32>
    %128 = tpu.matmul %111, %16, %cst_46 {dimension_numbers = #tpu.dot_dimension_numbers<[1], [0], [0], [1], [0, 0, 1, 1], [], []>} : vector<16x128xbf16>, vector<128x512xbf16>, vector<16x512xf32> -> vector<16x512xf32>
    %129 = arith.addf %127, %128 : vector<16x512xf32>
    %130 = vector.extract_strided_slice %129 {offsets = [0, 0], sizes = [16, 128], strides = [1, 1]} : vector<16x512xf32> to vector<16x128xf32>
    %131 = arith.negf %130 : vector<16x128xf32>
    %132 = math.exp %131 : vector<16x128xf32>
    %cst_47 = arith.constant 1.000000e+00 : f32
    %133 = vector.broadcast %cst_47 : f32 to vector<16x128xf32>
    %134 = arith.addf %133, %132 : vector<16x128xf32>
    %135 = arith.divf %133, %134 : vector<16x128xf32>
    %136 = vector.extract_strided_slice %129 {offsets = [0, 128], sizes = [16, 128], strides = [1, 1]} : vector<16x512xf32> to vector<16x128xf32>
    %137 = arith.negf %136 : vector<16x128xf32>
    %138 = math.exp %137 : vector<16x128xf32>
    %cst_48 = arith.constant 1.000000e+00 : f32
    %139 = vector.broadcast %cst_48 : f32 to vector<16x128xf32>
    %140 = arith.addf %139, %138 : vector<16x128xf32>
    %141 = arith.divf %139, %140 : vector<16x128xf32>
    %142 = vector.extract_strided_slice %129 {offsets = [0, 256], sizes = [16, 128], strides = [1, 1]} : vector<16x512xf32> to vector<16x128xf32>
    %143 = math.tanh %142 : vector<16x128xf32>
    %144 = vector.extract_strided_slice %129 {offsets = [0, 384], sizes = [16, 128], strides = [1, 1]} : vector<16x512xf32> to vector<16x128xf32>
    %145 = arith.negf %144 : vector<16x128xf32>
    %146 = math.exp %145 : vector<16x128xf32>
    %cst_49 = arith.constant 1.000000e+00 : f32
    %147 = vector.broadcast %cst_49 : f32 to vector<16x128xf32>
    %148 = arith.addf %147, %146 : vector<16x128xf32>
    %149 = arith.divf %147, %148 : vector<16x128xf32>
    %150 = arith.mulf %141, %110 : vector<16x128xf32>
    %151 = arith.mulf %135, %143 : vector<16x128xf32>
    %152 = arith.addf %150, %151 : vector<16x128xf32>
    %153 = math.tanh %152 : vector<16x128xf32>
    %154 = arith.mulf %149, %153 : vector<16x128xf32>
    %155 = vector.shape_cast %125 : vector<16x1xi1> to vector<16x1xi1>
    %156 = vector.broadcast %155 : vector<16x1xi1> to vector<16x128xi1>
    %157 = arith.select %156, %154, %107 : vector<16x128xi1>, vector<16x128xf32>
    %158 = vector.shape_cast %125 : vector<16x1xi1> to vector<16x1xi1>
    %159 = vector.broadcast %158 : vector<16x1xi1> to vector<16x128xi1>
    %160 = arith.select %159, %152, %110 : vector<16x128xi1>, vector<16x128xf32>
    %161 = arith.truncf %157 : vector<16x128xf32> to vector<16x128xbf16>
    %c2_50 = arith.constant 2 : index
    %c0_51 = arith.constant 0 : index
    %c0_52 = arith.constant 0 : index
    %162 = vector.load %arg15[%c2_50, %c0_51, %c0_52] : memref<8x16x128xbf16, #tpu.memory_space<vmem>>, vector<1x16x128xbf16>
    %163 = vector.shape_cast %162 : vector<1x16x128xbf16> to vector<16x128xbf16>
    %164 = vector.shape_cast %161 : vector<16x128xbf16> to vector<1x16x128xbf16>
    tpu.vector_store %arg15[%c2_50, %c0_51, %c0_52], %164 {strides = array<i32>} : memref<8x16x128xbf16, #tpu.memory_space<vmem>>, vector<1x16x128xbf16>,
    %165 = arith.extui %125 : vector<16x1xi1> to vector<16x1xi32>
    %166 = arith.sitofp %165 : vector<16x1xi32> to vector<16x1xf32>
    %c2_53 = arith.constant 2 : index
    %c0_54 = arith.constant 0 : index
    %c0_55 = arith.constant 0 : index
    %167 = vector.load %arg16[%c2_53, %c0_54, %c0_55] : memref<8x16x1xf32, #tpu.memory_space<vmem>>, vector<1x16x1xf32>
    %168 = vector.shape_cast %167 : vector<1x16x1xf32> to vector<16x1xf32>
    %169 = vector.shape_cast %166 : vector<16x1xf32> to vector<1x16x1xf32>
    tpu.vector_store %arg16[%c2_53, %c0_54, %c0_55], %169 {strides = array<i32>} : memref<8x16x1xf32, #tpu.memory_space<vmem>>, vector<1x16x1xf32>,
    %c8_i32_56 = arith.constant 8 : i32
    %170 = arith.muli %arg1, %c8_i32_56 : i32
    %c3_i32 = arith.constant 3 : i32
    %171 = arith.addi %170, %c3_i32 : i32
    %172 = arith.index_cast %171 : i32 to index
    %173 = memref.load %arg2[%172] : memref<24xi32, #tpu.memory_space<smem>>
    %174 = vector.broadcast %173 : i32 to vector<16x1xi32>
    %175 = arith.cmpi slt, %6, %174 : vector<16x1xi32>
    %c3 = arith.constant 3 : index
    %c0_57 = arith.constant 0 : index
    %c0_58 = arith.constant 0 : index
    %176 = vector.load %arg14[%c3, %c0_57, %c0_58] : memref<8x16x512xf32, #tpu.memory_space<vmem>>, vector<1x16x512xf32>
    %177 = vector.shape_cast %176 : vector<1x16x512xf32> to vector<16x512xf32>
    %cst_59 = arith.constant dense<0.000000e+00> : vector<16x512xf32>
    %178 = tpu.matmul %161, %16, %cst_59 {dimension_numbers = #tpu.dot_dimension_numbers<[1], [0], [0], [1], [0, 0, 1, 1], [], []>} : vector<16x128xbf16>, vector<128x512xbf16>, vector<16x512xf32> -> vector<16x512xf32>
    %179 = arith.addf %177, %178 : vector<16x512xf32>
    %180 = vector.extract_strided_slice %179 {offsets = [0, 0], sizes = [16, 128], strides = [1, 1]} : vector<16x512xf32> to vector<16x128xf32>
    %181 = arith.negf %180 : vector<16x128xf32>
    %182 = math.exp %181 : vector<16x128xf32>
    %cst_60 = arith.constant 1.000000e+00 : f32
    %183 = vector.broadcast %cst_60 : f32 to vector<16x128xf32>
    %184 = arith.addf %183, %182 : vector<16x128xf32>
    %185 = arith.divf %183, %184 : vector<16x128xf32>
    %186 = vector.extract_strided_slice %179 {offsets = [0, 128], sizes = [16, 128], strides = [1, 1]} : vector<16x512xf32> to vector<16x128xf32>
    %187 = arith.negf %186 : vector<16x128xf32>
    %188 = math.exp %187 : vector<16x128xf32>
    %cst_61 = arith.constant 1.000000e+00 : f32
    %189 = vector.broadcast %cst_61 : f32 to vector<16x128xf32>
    %190 = arith.addf %189, %188 : vector<16x128xf32>
    %191 = arith.divf %189, %190 : vector<16x128xf32>
    %192 = vector.extract_strided_slice %179 {offsets = [0, 256], sizes = [16, 128], strides = [1, 1]} : vector<16x512xf32> to vector<16x128xf32>
    %193 = math.tanh %192 : vector<16x128xf32>
    %194 = vector.extract_strided_slice %179 {offsets = [0, 384], sizes = [16, 128], strides = [1, 1]} : vector<16x512xf32> to vector<16x128xf32>
    %195 = arith.negf %194 : vector<16x128xf32>
    %196 = math.exp %195 : vector<16x128xf32>
    %cst_62 = arith.constant 1.000000e+00 : f32
    %197 = vector.broadcast %cst_62 : f32 to vector<16x128xf32>
    %198 = arith.addf %197, %196 : vector<16x128xf32>
    %199 = arith.divf %197, %198 : vector<16x128xf32>
    %200 = arith.mulf %191, %160 : vector<16x128xf32>
    %201 = arith.mulf %185, %193 : vector<16x128xf32>
    %202 = arith.addf %200, %201 : vector<16x128xf32>
    %203 = math.tanh %202 : vector<16x128xf32>
    %204 = arith.mulf %199, %203 : vector<16x128xf32>
    %205 = vector.shape_cast %175 : vector<16x1xi1> to vector<16x1xi1>
    %206 = vector.broadcast %205 : vector<16x1xi1> to vector<16x128xi1>
    %207 = arith.select %206, %204, %157 : vector<16x128xi1>, vector<16x128xf32>
    %208 = vector.shape_cast %175 : vector<16x1xi1> to vector<16x1xi1>
    %209 = vector.broadcast %208 : vector<16x1xi1> to vector<16x128xi1>
    %210 = arith.select %209, %202, %160 : vector<16x128xi1>, vector<16x128xf32>
    %211 = arith.truncf %207 : vector<16x128xf32> to vector<16x128xbf16>
    %c3_63 = arith.constant 3 : index
    %c0_64 = arith.constant 0 : index
    %c0_65 = arith.constant 0 : index
    %212 = vector.load %arg15[%c3_63, %c0_64, %c0_65] : memref<8x16x128xbf16, #tpu.memory_space<vmem>>, vector<1x16x128xbf16>
    %213 = vector.shape_cast %212 : vector<1x16x128xbf16> to vector<16x128xbf16>
    %214 = vector.shape_cast %211 : vector<16x128xbf16> to vector<1x16x128xbf16>
    tpu.vector_store %arg15[%c3_63, %c0_64, %c0_65], %214 {strides = array<i32>} : memref<8x16x128xbf16, #tpu.memory_space<vmem>>, vector<1x16x128xbf16>,
    %215 = arith.extui %175 : vector<16x1xi1> to vector<16x1xi32>
    %216 = arith.sitofp %215 : vector<16x1xi32> to vector<16x1xf32>
    %c3_66 = arith.constant 3 : index
    %c0_67 = arith.constant 0 : index
    %c0_68 = arith.constant 0 : index
    %217 = vector.load %arg16[%c3_66, %c0_67, %c0_68] : memref<8x16x1xf32, #tpu.memory_space<vmem>>, vector<1x16x1xf32>
    %218 = vector.shape_cast %217 : vector<1x16x1xf32> to vector<16x1xf32>
    %219 = vector.shape_cast %216 : vector<16x1xf32> to vector<1x16x1xf32>
    tpu.vector_store %arg16[%c3_66, %c0_67, %c0_68], %219 {strides = array<i32>} : memref<8x16x1xf32, #tpu.memory_space<vmem>>, vector<1x16x1xf32>,
    %c8_i32_69 = arith.constant 8 : i32
    %220 = arith.muli %arg1, %c8_i32_69 : i32
    %c4_i32 = arith.constant 4 : i32
    %221 = arith.addi %220, %c4_i32 : i32
    %222 = arith.index_cast %221 : i32 to index
    %223 = memref.load %arg2[%222] : memref<24xi32, #tpu.memory_space<smem>>
    %224 = vector.broadcast %223 : i32 to vector<16x1xi32>
    %225 = arith.cmpi slt, %6, %224 : vector<16x1xi32>
    %c4 = arith.constant 4 : index
    %c0_70 = arith.constant 0 : index
    %c0_71 = arith.constant 0 : index
    %226 = vector.load %arg14[%c4, %c0_70, %c0_71] : memref<8x16x512xf32, #tpu.memory_space<vmem>>, vector<1x16x512xf32>
    %227 = vector.shape_cast %226 : vector<1x16x512xf32> to vector<16x512xf32>
    %cst_72 = arith.constant dense<0.000000e+00> : vector<16x512xf32>
    %228 = tpu.matmul %211, %16, %cst_72 {dimension_numbers = #tpu.dot_dimension_numbers<[1], [0], [0], [1], [0, 0, 1, 1], [], []>} : vector<16x128xbf16>, vector<128x512xbf16>, vector<16x512xf32> -> vector<16x512xf32>
    %229 = arith.addf %227, %228 : vector<16x512xf32>
    %230 = vector.extract_strided_slice %229 {offsets = [0, 0], sizes = [16, 128], strides = [1, 1]} : vector<16x512xf32> to vector<16x128xf32>
    %231 = arith.negf %230 : vector<16x128xf32>
    %232 = math.exp %231 : vector<16x128xf32>
    %cst_73 = arith.constant 1.000000e+00 : f32
    %233 = vector.broadcast %cst_73 : f32 to vector<16x128xf32>
    %234 = arith.addf %233, %232 : vector<16x128xf32>
    %235 = arith.divf %233, %234 : vector<16x128xf32>
    %236 = vector.extract_strided_slice %229 {offsets = [0, 128], sizes = [16, 128], strides = [1, 1]} : vector<16x512xf32> to vector<16x128xf32>
    %237 = arith.negf %236 : vector<16x128xf32>
    %238 = math.exp %237 : vector<16x128xf32>
    %cst_74 = arith.constant 1.000000e+00 : f32
    %239 = vector.broadcast %cst_74 : f32 to vector<16x128xf32>
    %240 = arith.addf %239, %238 : vector<16x128xf32>
    %241 = arith.divf %239, %240 : vector<16x128xf32>
    %242 = vector.extract_strided_slice %229 {offsets = [0, 256], sizes = [16, 128], strides = [1, 1]} : vector<16x512xf32> to vector<16x128xf32>
    %243 = math.tanh %242 : vector<16x128xf32>
    %244 = vector.extract_strided_slice %229 {offsets = [0, 384], sizes = [16, 128], strides = [1, 1]} : vector<16x512xf32> to vector<16x128xf32>
    %245 = arith.negf %244 : vector<16x128xf32>
    %246 = math.exp %245 : vector<16x128xf32>
    %cst_75 = arith.constant 1.000000e+00 : f32
    %247 = vector.broadcast %cst_75 : f32 to vector<16x128xf32>
    %248 = arith.addf %247, %246 : vector<16x128xf32>
    %249 = arith.divf %247, %248 : vector<16x128xf32>
    %250 = arith.mulf %241, %210 : vector<16x128xf32>
    %251 = arith.mulf %235, %243 : vector<16x128xf32>
    %252 = arith.addf %250, %251 : vector<16x128xf32>
    %253 = math.tanh %252 : vector<16x128xf32>
    %254 = arith.mulf %249, %253 : vector<16x128xf32>
    %255 = vector.shape_cast %225 : vector<16x1xi1> to vector<16x1xi1>
    %256 = vector.broadcast %255 : vector<16x1xi1> to vector<16x128xi1>
    %257 = arith.select %256, %254, %207 : vector<16x128xi1>, vector<16x128xf32>
    %258 = vector.shape_cast %225 : vector<16x1xi1> to vector<16x1xi1>
    %259 = vector.broadcast %258 : vector<16x1xi1> to vector<16x128xi1>
    %260 = arith.select %259, %252, %210 : vector<16x128xi1>, vector<16x128xf32>
    %261 = arith.truncf %257 : vector<16x128xf32> to vector<16x128xbf16>
    %c4_76 = arith.constant 4 : index
    %c0_77 = arith.constant 0 : index
    %c0_78 = arith.constant 0 : index
    %262 = vector.load %arg15[%c4_76, %c0_77, %c0_78] : memref<8x16x128xbf16, #tpu.memory_space<vmem>>, vector<1x16x128xbf16>
    %263 = vector.shape_cast %262 : vector<1x16x128xbf16> to vector<16x128xbf16>
    %264 = vector.shape_cast %261 : vector<16x128xbf16> to vector<1x16x128xbf16>
    tpu.vector_store %arg15[%c4_76, %c0_77, %c0_78], %264 {strides = array<i32>} : memref<8x16x128xbf16, #tpu.memory_space<vmem>>, vector<1x16x128xbf16>,
    %265 = arith.extui %225 : vector<16x1xi1> to vector<16x1xi32>
    %266 = arith.sitofp %265 : vector<16x1xi32> to vector<16x1xf32>
    %c4_79 = arith.constant 4 : index
    %c0_80 = arith.constant 0 : index
    %c0_81 = arith.constant 0 : index
    %267 = vector.load %arg16[%c4_79, %c0_80, %c0_81] : memref<8x16x1xf32, #tpu.memory_space<vmem>>, vector<1x16x1xf32>
    %268 = vector.shape_cast %267 : vector<1x16x1xf32> to vector<16x1xf32>
    %269 = vector.shape_cast %266 : vector<16x1xf32> to vector<1x16x1xf32>
    tpu.vector_store %arg16[%c4_79, %c0_80, %c0_81], %269 {strides = array<i32>} : memref<8x16x1xf32, #tpu.memory_space<vmem>>, vector<1x16x1xf32>,
    %c8_i32_82 = arith.constant 8 : i32
    %270 = arith.muli %arg1, %c8_i32_82 : i32
    %c5_i32 = arith.constant 5 : i32
    %271 = arith.addi %270, %c5_i32 : i32
    %272 = arith.index_cast %271 : i32 to index
    %273 = memref.load %arg2[%272] : memref<24xi32, #tpu.memory_space<smem>>
    %274 = vector.broadcast %273 : i32 to vector<16x1xi32>
    %275 = arith.cmpi slt, %6, %274 : vector<16x1xi32>
    %c5 = arith.constant 5 : index
    %c0_83 = arith.constant 0 : index
    %c0_84 = arith.constant 0 : index
    %276 = vector.load %arg14[%c5, %c0_83, %c0_84] : memref<8x16x512xf32, #tpu.memory_space<vmem>>, vector<1x16x512xf32>
    %277 = vector.shape_cast %276 : vector<1x16x512xf32> to vector<16x512xf32>
    %cst_85 = arith.constant dense<0.000000e+00> : vector<16x512xf32>
    %278 = tpu.matmul %261, %16, %cst_85 {dimension_numbers = #tpu.dot_dimension_numbers<[1], [0], [0], [1], [0, 0, 1, 1], [], []>} : vector<16x128xbf16>, vector<128x512xbf16>, vector<16x512xf32> -> vector<16x512xf32>
    %279 = arith.addf %277, %278 : vector<16x512xf32>
    %280 = vector.extract_strided_slice %279 {offsets = [0, 0], sizes = [16, 128], strides = [1, 1]} : vector<16x512xf32> to vector<16x128xf32>
    %281 = arith.negf %280 : vector<16x128xf32>
    %282 = math.exp %281 : vector<16x128xf32>
    %cst_86 = arith.constant 1.000000e+00 : f32
    %283 = vector.broadcast %cst_86 : f32 to vector<16x128xf32>
    %284 = arith.addf %283, %282 : vector<16x128xf32>
    %285 = arith.divf %283, %284 : vector<16x128xf32>
    %286 = vector.extract_strided_slice %279 {offsets = [0, 128], sizes = [16, 128], strides = [1, 1]} : vector<16x512xf32> to vector<16x128xf32>
    %287 = arith.negf %286 : vector<16x128xf32>
    %288 = math.exp %287 : vector<16x128xf32>
    %cst_87 = arith.constant 1.000000e+00 : f32
    %289 = vector.broadcast %cst_87 : f32 to vector<16x128xf32>
    %290 = arith.addf %289, %288 : vector<16x128xf32>
    %291 = arith.divf %289, %290 : vector<16x128xf32>
    %292 = vector.extract_strided_slice %279 {offsets = [0, 256], sizes = [16, 128], strides = [1, 1]} : vector<16x512xf32> to vector<16x128xf32>
    %293 = math.tanh %292 : vector<16x128xf32>
    %294 = vector.extract_strided_slice %279 {offsets = [0, 384], sizes = [16, 128], strides = [1, 1]} : vector<16x512xf32> to vector<16x128xf32>
    %295 = arith.negf %294 : vector<16x128xf32>
    %296 = math.exp %295 : vector<16x128xf32>
    %cst_88 = arith.constant 1.000000e+00 : f32
    %297 = vector.broadcast %cst_88 : f32 to vector<16x128xf32>
    %298 = arith.addf %297, %296 : vector<16x128xf32>
    %299 = arith.divf %297, %298 : vector<16x128xf32>
    %300 = arith.mulf %291, %260 : vector<16x128xf32>
    %301 = arith.mulf %285, %293 : vector<16x128xf32>
    %302 = arith.addf %300, %301 : vector<16x128xf32>
    %303 = math.tanh %302 : vector<16x128xf32>
    %304 = arith.mulf %299, %303 : vector<16x128xf32>
    %305 = vector.shape_cast %275 : vector<16x1xi1> to vector<16x1xi1>
    %306 = vector.broadcast %305 : vector<16x1xi1> to vector<16x128xi1>
    %307 = arith.select %306, %304, %257 : vector<16x128xi1>, vector<16x128xf32>
    %308 = vector.shape_cast %275 : vector<16x1xi1> to vector<16x1xi1>
    %309 = vector.broadcast %308 : vector<16x1xi1> to vector<16x128xi1>
    %310 = arith.select %309, %302, %260 : vector<16x128xi1>, vector<16x128xf32>
    %311 = arith.truncf %307 : vector<16x128xf32> to vector<16x128xbf16>
    %c5_89 = arith.constant 5 : index
    %c0_90 = arith.constant 0 : index
    %c0_91 = arith.constant 0 : index
    %312 = vector.load %arg15[%c5_89, %c0_90, %c0_91] : memref<8x16x128xbf16, #tpu.memory_space<vmem>>, vector<1x16x128xbf16>
    %313 = vector.shape_cast %312 : vector<1x16x128xbf16> to vector<16x128xbf16>
    %314 = vector.shape_cast %311 : vector<16x128xbf16> to vector<1x16x128xbf16>
    tpu.vector_store %arg15[%c5_89, %c0_90, %c0_91], %314 {strides = array<i32>} : memref<8x16x128xbf16, #tpu.memory_space<vmem>>, vector<1x16x128xbf16>,
    %315 = arith.extui %275 : vector<16x1xi1> to vector<16x1xi32>
    %316 = arith.sitofp %315 : vector<16x1xi32> to vector<16x1xf32>
    %c5_92 = arith.constant 5 : index
    %c0_93 = arith.constant 0 : index
    %c0_94 = arith.constant 0 : index
    %317 = vector.load %arg16[%c5_92, %c0_93, %c0_94] : memref<8x16x1xf32, #tpu.memory_space<vmem>>, vector<1x16x1xf32>
    %318 = vector.shape_cast %317 : vector<1x16x1xf32> to vector<16x1xf32>
    %319 = vector.shape_cast %316 : vector<16x1xf32> to vector<1x16x1xf32>
    tpu.vector_store %arg16[%c5_92, %c0_93, %c0_94], %319 {strides = array<i32>} : memref<8x16x1xf32, #tpu.memory_space<vmem>>, vector<1x16x1xf32>,
    %c8_i32_95 = arith.constant 8 : i32
    %320 = arith.muli %arg1, %c8_i32_95 : i32
    %c6_i32 = arith.constant 6 : i32
    %321 = arith.addi %320, %c6_i32 : i32
    %322 = arith.index_cast %321 : i32 to index
    %323 = memref.load %arg2[%322] : memref<24xi32, #tpu.memory_space<smem>>
    %324 = vector.broadcast %323 : i32 to vector<16x1xi32>
    %325 = arith.cmpi slt, %6, %324 : vector<16x1xi32>
    %c6 = arith.constant 6 : index
    %c0_96 = arith.constant 0 : index
    %c0_97 = arith.constant 0 : index
    %326 = vector.load %arg14[%c6, %c0_96, %c0_97] : memref<8x16x512xf32, #tpu.memory_space<vmem>>, vector<1x16x512xf32>
    %327 = vector.shape_cast %326 : vector<1x16x512xf32> to vector<16x512xf32>
    %cst_98 = arith.constant dense<0.000000e+00> : vector<16x512xf32>
    %328 = tpu.matmul %311, %16, %cst_98 {dimension_numbers = #tpu.dot_dimension_numbers<[1], [0], [0], [1], [0, 0, 1, 1], [], []>} : vector<16x128xbf16>, vector<128x512xbf16>, vector<16x512xf32> -> vector<16x512xf32>
    %329 = arith.addf %327, %328 : vector<16x512xf32>
    %330 = vector.extract_strided_slice %329 {offsets = [0, 0], sizes = [16, 128], strides = [1, 1]} : vector<16x512xf32> to vector<16x128xf32>
    %331 = arith.negf %330 : vector<16x128xf32>
    %332 = math.exp %331 : vector<16x128xf32>
    %cst_99 = arith.constant 1.000000e+00 : f32
    %333 = vector.broadcast %cst_99 : f32 to vector<16x128xf32>
    %334 = arith.addf %333, %332 : vector<16x128xf32>
    %335 = arith.divf %333, %334 : vector<16x128xf32>
    %336 = vector.extract_strided_slice %329 {offsets = [0, 128], sizes = [16, 128], strides = [1, 1]} : vector<16x512xf32> to vector<16x128xf32>
    %337 = arith.negf %336 : vector<16x128xf32>
    %338 = math.exp %337 : vector<16x128xf32>
    %cst_100 = arith.constant 1.000000e+00 : f32
    %339 = vector.broadcast %cst_100 : f32 to vector<16x128xf32>
    %340 = arith.addf %339, %338 : vector<16x128xf32>
    %341 = arith.divf %339, %340 : vector<16x128xf32>
    %342 = vector.extract_strided_slice %329 {offsets = [0, 256], sizes = [16, 128], strides = [1, 1]} : vector<16x512xf32> to vector<16x128xf32>
    %343 = math.tanh %342 : vector<16x128xf32>
    %344 = vector.extract_strided_slice %329 {offsets = [0, 384], sizes = [16, 128], strides = [1, 1]} : vector<16x512xf32> to vector<16x128xf32>
    %345 = arith.negf %344 : vector<16x128xf32>
    %346 = math.exp %345 : vector<16x128xf32>
    %cst_101 = arith.constant 1.000000e+00 : f32
    %347 = vector.broadcast %cst_101 : f32 to vector<16x128xf32>
    %348 = arith.addf %347, %346 : vector<16x128xf32>
    %349 = arith.divf %347, %348 : vector<16x128xf32>
    %350 = arith.mulf %341, %310 : vector<16x128xf32>
    %351 = arith.mulf %335, %343 : vector<16x128xf32>
    %352 = arith.addf %350, %351 : vector<16x128xf32>
    %353 = math.tanh %352 : vector<16x128xf32>
    %354 = arith.mulf %349, %353 : vector<16x128xf32>
    %355 = vector.shape_cast %325 : vector<16x1xi1> to vector<16x1xi1>
    %356 = vector.broadcast %355 : vector<16x1xi1> to vector<16x128xi1>
    %357 = arith.select %356, %354, %307 : vector<16x128xi1>, vector<16x128xf32>
    %358 = vector.shape_cast %325 : vector<16x1xi1> to vector<16x1xi1>
    %359 = vector.broadcast %358 : vector<16x1xi1> to vector<16x128xi1>
    %360 = arith.select %359, %352, %310 : vector<16x128xi1>, vector<16x128xf32>
    %361 = arith.truncf %357 : vector<16x128xf32> to vector<16x128xbf16>
    %c6_102 = arith.constant 6 : index
    %c0_103 = arith.constant 0 : index
    %c0_104 = arith.constant 0 : index
    %362 = vector.load %arg15[%c6_102, %c0_103, %c0_104] : memref<8x16x128xbf16, #tpu.memory_space<vmem>>, vector<1x16x128xbf16>
    %363 = vector.shape_cast %362 : vector<1x16x128xbf16> to vector<16x128xbf16>
    %364 = vector.shape_cast %361 : vector<16x128xbf16> to vector<1x16x128xbf16>
    tpu.vector_store %arg15[%c6_102, %c0_103, %c0_104], %364 {strides = array<i32>} : memref<8x16x128xbf16, #tpu.memory_space<vmem>>, vector<1x16x128xbf16>,
    %365 = arith.extui %325 : vector<16x1xi1> to vector<16x1xi32>
    %366 = arith.sitofp %365 : vector<16x1xi32> to vector<16x1xf32>
    %c6_105 = arith.constant 6 : index
    %c0_106 = arith.constant 0 : index
    %c0_107 = arith.constant 0 : index
    %367 = vector.load %arg16[%c6_105, %c0_106, %c0_107] : memref<8x16x1xf32, #tpu.memory_space<vmem>>, vector<1x16x1xf32>
    %368 = vector.shape_cast %367 : vector<1x16x1xf32> to vector<16x1xf32>
    %369 = vector.shape_cast %366 : vector<16x1xf32> to vector<1x16x1xf32>
    tpu.vector_store %arg16[%c6_105, %c0_106, %c0_107], %369 {strides = array<i32>} : memref<8x16x1xf32, #tpu.memory_space<vmem>>, vector<1x16x1xf32>,
    %c8_i32_108 = arith.constant 8 : i32
    %370 = arith.muli %arg1, %c8_i32_108 : i32
    %c7_i32 = arith.constant 7 : i32
    %371 = arith.addi %370, %c7_i32 : i32
    %372 = arith.index_cast %371 : i32 to index
    %373 = memref.load %arg2[%372] : memref<24xi32, #tpu.memory_space<smem>>
    %374 = vector.broadcast %373 : i32 to vector<16x1xi32>
    %375 = arith.cmpi slt, %6, %374 : vector<16x1xi32>
    %c7 = arith.constant 7 : index
    %c0_109 = arith.constant 0 : index
    %c0_110 = arith.constant 0 : index
    %376 = vector.load %arg14[%c7, %c0_109, %c0_110] : memref<8x16x512xf32, #tpu.memory_space<vmem>>, vector<1x16x512xf32>
    %377 = vector.shape_cast %376 : vector<1x16x512xf32> to vector<16x512xf32>
    %cst_111 = arith.constant dense<0.000000e+00> : vector<16x512xf32>
    %378 = tpu.matmul %361, %16, %cst_111 {dimension_numbers = #tpu.dot_dimension_numbers<[1], [0], [0], [1], [0, 0, 1, 1], [], []>} : vector<16x128xbf16>, vector<128x512xbf16>, vector<16x512xf32> -> vector<16x512xf32>
    %379 = arith.addf %377, %378 : vector<16x512xf32>
    %380 = vector.extract_strided_slice %379 {offsets = [0, 0], sizes = [16, 128], strides = [1, 1]} : vector<16x512xf32> to vector<16x128xf32>
    %381 = arith.negf %380 : vector<16x128xf32>
    %382 = math.exp %381 : vector<16x128xf32>
    %cst_112 = arith.constant 1.000000e+00 : f32
    %383 = vector.broadcast %cst_112 : f32 to vector<16x128xf32>
    %384 = arith.addf %383, %382 : vector<16x128xf32>
    %385 = arith.divf %383, %384 : vector<16x128xf32>
    %386 = vector.extract_strided_slice %379 {offsets = [0, 128], sizes = [16, 128], strides = [1, 1]} : vector<16x512xf32> to vector<16x128xf32>
    %387 = arith.negf %386 : vector<16x128xf32>
    %388 = math.exp %387 : vector<16x128xf32>
    %cst_113 = arith.constant 1.000000e+00 : f32
    %389 = vector.broadcast %cst_113 : f32 to vector<16x128xf32>
    %390 = arith.addf %389, %388 : vector<16x128xf32>
    %391 = arith.divf %389, %390 : vector<16x128xf32>
    %392 = vector.extract_strided_slice %379 {offsets = [0, 256], sizes = [16, 128], strides = [1, 1]} : vector<16x512xf32> to vector<16x128xf32>
    %393 = math.tanh %392 : vector<16x128xf32>
    %394 = vector.extract_strided_slice %379 {offsets = [0, 384], sizes = [16, 128], strides = [1, 1]} : vector<16x512xf32> to vector<16x128xf32>
    %395 = arith.negf %394 : vector<16x128xf32>
    %396 = math.exp %395 : vector<16x128xf32>
    %cst_114 = arith.constant 1.000000e+00 : f32
    %397 = vector.broadcast %cst_114 : f32 to vector<16x128xf32>
    %398 = arith.addf %397, %396 : vector<16x128xf32>
    %399 = arith.divf %397, %398 : vector<16x128xf32>
    %400 = arith.mulf %391, %360 : vector<16x128xf32>
    %401 = arith.mulf %385, %393 : vector<16x128xf32>
    %402 = arith.addf %400, %401 : vector<16x128xf32>
    %403 = math.tanh %402 : vector<16x128xf32>
    %404 = arith.mulf %399, %403 : vector<16x128xf32>
    %405 = vector.shape_cast %375 : vector<16x1xi1> to vector<16x1xi1>
    %406 = vector.broadcast %405 : vector<16x1xi1> to vector<16x128xi1>
    %407 = arith.select %406, %404, %357 : vector<16x128xi1>, vector<16x128xf32>
    %408 = vector.shape_cast %375 : vector<16x1xi1> to vector<16x1xi1>
    %409 = vector.broadcast %408 : vector<16x1xi1> to vector<16x128xi1>
    %410 = arith.select %409, %402, %360 : vector<16x128xi1>, vector<16x128xf32>
    %411 = arith.truncf %407 : vector<16x128xf32> to vector<16x128xbf16>
    %c7_115 = arith.constant 7 : index
    %c0_116 = arith.constant 0 : index
    %c0_117 = arith.constant 0 : index
    %412 = vector.load %arg15[%c7_115, %c0_116, %c0_117] : memref<8x16x128xbf16, #tpu.memory_space<vmem>>, vector<1x16x128xbf16>
    %413 = vector.shape_cast %412 : vector<1x16x128xbf16> to vector<16x128xbf16>
    %414 = vector.shape_cast %411 : vector<16x128xbf16> to vector<1x16x128xbf16>
    tpu.vector_store %arg15[%c7_115, %c0_116, %c0_117], %414 {strides = array<i32>} : memref<8x16x128xbf16, #tpu.memory_space<vmem>>, vector<1x16x128xbf16>,
    %415 = arith.extui %375 : vector<16x1xi1> to vector<16x1xi32>
    %416 = arith.sitofp %415 : vector<16x1xi32> to vector<16x1xf32>
    %c7_118 = arith.constant 7 : index
    %c0_119 = arith.constant 0 : index
    %c0_120 = arith.constant 0 : index
    %417 = vector.load %arg16[%c7_118, %c0_119, %c0_120] : memref<8x16x1xf32, #tpu.memory_space<vmem>>, vector<1x16x1xf32>
    %418 = vector.shape_cast %417 : vector<1x16x1xf32> to vector<16x1xf32>
    %419 = vector.shape_cast %416 : vector<16x1xf32> to vector<1x16x1xf32>
    tpu.vector_store %arg16[%c7_118, %c0_119, %c0_120], %419 {strides = array<i32>} : memref<8x16x1xf32, #tpu.memory_space<vmem>>, vector<1x16x1xf32>,
    %c0_121 = arith.constant 0 : index
    %c0_122 = arith.constant 0 : index
    %420 = vector.load %arg12[%c0_121, %c0_122] : memref<16x128xf32, #tpu.memory_space<vmem>>, vector<16x128xf32>
    tpu.vector_store %arg12[%c0_121, %c0_122], %407 {strides = array<i32>} : memref<16x128xf32, #tpu.memory_space<vmem>>, vector<16x128xf32>,
    %c0_123 = arith.constant 0 : index
    %c0_124 = arith.constant 0 : index
    %421 = vector.load %arg13[%c0_123, %c0_124] : memref<16x128xf32, #tpu.memory_space<vmem>>, vector<16x128xf32>
    tpu.vector_store %arg13[%c0_123, %c0_124], %410 {strides = array<i32>} : memref<16x128xf32, #tpu.memory_space<vmem>>, vector<16x128xf32>,
    %c0_125 = arith.constant 0 : index
    %c0_126 = arith.constant 0 : index
    %c0_127 = arith.constant 0 : index
    %422 = vector.load %arg15[%c0_125, %c0_126, %c0_127] : memref<8x16x128xbf16, #tpu.memory_space<vmem>>, vector<8x16x128xbf16>
    %423 = vector.shape_cast %422 : vector<8x16x128xbf16> to vector<128x128xbf16>
    %c0_128 = arith.constant 0 : index
    %c0_129 = arith.constant 0 : index
    %424 = vector.load %arg9[%c0_128, %c0_129] : memref<128x128xbf16, #tpu.memory_space<vmem>>, vector<128x128xbf16>
    %cst_130 = arith.constant dense<0.000000e+00> : vector<128x128xf32>
    %425 = tpu.matmul %423, %424, %cst_130 {dimension_numbers = #tpu.dot_dimension_numbers<[1], [0], [0], [1], [0, 0, 1, 1], [], []>} : vector<128x128xbf16>, vector<128x128xbf16>, vector<128x128xf32> -> vector<128x128xf32>
    %c0_131 = arith.constant 0 : index
    %c0_132 = arith.constant 0 : index
    %426 = vector.load %arg10[%c0_131, %c0_132] : memref<1x128xf32, #tpu.memory_space<vmem>>, vector<1x128xf32>
    %427 = vector.broadcast %426 : vector<1x128xf32> to vector<128x128xf32>
    %428 = arith.addf %425, %427 : vector<128x128xf32>
    %429 = vector.shape_cast %428 : vector<128x128xf32> to vector<8x16x128xf32>
    %c0_133 = arith.constant 0 : index
    %c0_134 = arith.constant 0 : index
    %c0_135 = arith.constant 0 : index
    %430 = vector.load %arg16[%c0_133, %c0_134, %c0_135] : memref<8x16x1xf32, #tpu.memory_space<vmem>>, vector<8x16x1xf32>
    %431 = vector.broadcast %430 : vector<8x16x1xf32> to vector<8x16x128xf32>
    %432 = arith.mulf %429, %431 : vector<8x16x128xf32>
    %433 = arith.truncf %432 : vector<8x16x128xf32> to vector<8x16x128xbf16>
    %c0_136 = arith.constant 0 : index
    %c0_137 = arith.constant 0 : index
    %c0_138 = arith.constant 0 : index
    %434 = vector.load %arg11[%c0_136, %c0_137, %c0_138] : memref<8x16x128xbf16, #tpu.memory_space<vmem>>, vector<8x16x128xbf16>
    tpu.vector_store %arg11[%c0_136, %c0_137, %c0_138], %433 {strides = array<i32>} : memref<8x16x128xbf16, #tpu.memory_space<vmem>>, vector<8x16x128xbf16>,
    return
  }
  func.func @transform_0(%arg0: i32, %arg1: i32, %arg2: memref<24xi32, #tpu.memory_space<smem>>) -> (i32, i32) {
    %c0_i32 = arith.constant 0 : i32
    %c0_i32_0 = arith.constant 0 : i32
    return %arg0, %c0_i32 : i32, i32
  }
  func.func @transform_1(%arg0: i32, %arg1: i32, %arg2: memref<24xi32, #tpu.memory_space<smem>>) -> (i32, i32) {
    %c0_i32 = arith.constant 0 : i32
    %c0_i32_0 = arith.constant 0 : i32
    return %arg0, %c0_i32 : i32, i32
  }
  func.func @transform_2(%arg0: i32, %arg1: i32, %arg2: memref<24xi32, #tpu.memory_space<smem>>) -> (i32, i32, i32) {
    %c0_i32 = arith.constant 0 : i32
    %c0_i32_0 = arith.constant 0 : i32
    return %arg1, %arg0, %c0_i32 : i32, i32, i32
  }
  func.func @transform_3(%arg0: i32, %arg1: i32, %arg2: memref<24xi32, #tpu.memory_space<smem>>) -> (i32, i32) {
    %c0_i32 = arith.constant 0 : i32
    %c0_i32_0 = arith.constant 0 : i32
    %c0_i32_1 = arith.constant 0 : i32
    return %c0_i32, %c0_i32_0 : i32, i32
  }
  func.func @transform_4(%arg0: i32, %arg1: i32, %arg2: memref<24xi32, #tpu.memory_space<smem>>) -> (i32, i32) {
    %c0_i32 = arith.constant 0 : i32
    %c0_i32_0 = arith.constant 0 : i32
    %c0_i32_1 = arith.constant 0 : i32
    return %c0_i32, %c0_i32_0 : i32, i32
  }
  func.func @transform_5(%arg0: i32, %arg1: i32, %arg2: memref<24xi32, #tpu.memory_space<smem>>) -> (i32, i32) {
    %c0_i32 = arith.constant 0 : i32
    %c0_i32_0 = arith.constant 0 : i32
    %c0_i32_1 = arith.constant 0 : i32
    return %c0_i32, %c0_i32_0 : i32, i32
  }
  func.func @transform_6(%arg0: i32, %arg1: i32, %arg2: memref<24xi32, #tpu.memory_space<smem>>) -> (i32, i32) {
    %c0_i32 = arith.constant 0 : i32
    %c0_i32_0 = arith.constant 0 : i32
    %c0_i32_1 = arith.constant 0 : i32
    return %c0_i32, %c0_i32_0 : i32, i32
  }
  func.func @transform_7(%arg0: i32, %arg1: i32, %arg2: memref<24xi32, #tpu.memory_space<smem>>) -> (i32, i32) {
    %c0_i32 = arith.constant 0 : i32
    %c0_i32_0 = arith.constant 0 : i32
    %c0_i32_1 = arith.constant 0 : i32
    return %c0_i32, %c0_i32_0 : i32, i32
  }
  func.func @transform_8(%arg0: i32, %arg1: i32, %arg2: memref<24xi32, #tpu.memory_space<smem>>) -> (i32, i32, i32) {
    %c0_i32 = arith.constant 0 : i32
    %c0_i32_0 = arith.constant 0 : i32
    return %arg1, %arg0, %c0_i32 : i32, i32, i32
  }
}

</mosaic_0001>

<llo_original>
// kernel: _decoder_core.1
$region0: #{_decoder_core.1}
  #allocation0 [shape = 'u32[]', space=smem, size = 0x4, offset = 0x4, fixed_abs, tag = 'smem constant byte address 0x4 - core index']
  #allocation1 [shape = 'u32[72,128]{1,0:T(1,128)}', space=vmem, size = 0x9000, scoped, tag = 'internal scratch']
  #allocation2 [shape = 'f32[16,128]{1,0:T(8,128)}', space=vmem, size = 0x2000, scoped, tag = 'scratch operand']
  #allocation3 [shape = 'f32[16,128]{1,0:T(8,128)}', space=vmem, size = 0x2000, scoped, tag = 'scratch operand']
  #allocation4 [shape = 'f32[8,16,512]{2,1,0:T(8,128)}', space=vmem, size = 0x40000, scoped, tag = 'scratch operand']
  #allocation5 [shape = 'bf16[8,16,128]{2,1,0:T(8,128)(2,1)}', space=vmem, size = 0x8000, scoped, tag = 'scratch operand']
  #allocation6 [shape = 'f32[8,16,1]{2,1,0:T(8,128)}', space=vmem, size = 0x10000, scoped, tag = 'scratch operand']
  #allocation7 [shape = 's32[1]{0}', space=sflag, size = 0x4, scoped, tag = 'scoped memory for _decoder_core.1']
  #allocation8 [shape = 'u8[512]{0}', space=smem, size = 0x200, scoped, tag = 'prefetched SMEM operand 0']
  %s0 = inlined_call_operand.vmem [shape: s32[24], index: 0, kind: input, shape index: {}]
  %s1 = inlined_call_operand.vmem [shape: f32[16,128], index: 1, kind: input, shape index: {}]
  %s2 = inlined_call_operand.vmem [shape: f32[16,128], index: 2, kind: input, shape index: {}]
  %s3 = inlined_call_operand.vmem [shape: bf16[24,16,128], index: 3, kind: input, shape index: {}]
  %s4 = inlined_call_operand.vmem [shape: bf16[128,512], index: 4, kind: input, shape index: {}]
  %s5 = inlined_call_operand.vmem [shape: bf16[128,512], index: 5, kind: input, shape index: {}]
  %s6 = inlined_call_operand.vmem [shape: f32[1,512], index: 6, kind: input, shape index: {}]
  %s7 = inlined_call_operand.vmem [shape: bf16[128,128], index: 7, kind: input, shape index: {}]
  %s8 = inlined_call_operand.vmem [shape: f32[1,128], index: 8, kind: input, shape index: {}]
  %s9 = inlined_call_operand.hbm [shape: bf16[24,16,128], index: 9, kind: output, shape index: {}]
  %s10 = sld [smem:[#allocation0]]
  $region69: #{_decoder_core.1} parent=0
    _
  %s12 = ssub.s32 1, %s10
  %s13 = scalar_select 0, %s12, %s10
  %s15 = sshll.u32 %s0, 4
  %s16 = int_to_ptr.vmem [resolvable:$true] %s15
  %18 = dma.vmem_to_smem %s16, 16, [#allocation8], [#allocation7]
  %20 = dma.done [#allocation7], 16
  %21 = sfence
  $region1: #{_decoder_core.1} parent=0
    #allocation9 [shape = 'u8[65536]{0}', space=vmem, size = 0x10000, scoped, tag = 'output window, operand 0']
    #allocation10 [shape = 's32[2]{0}', space=sflag, size = 0x8, scoped, tag = 'scoped memory for _decoder_core.1']
    %22 = vsyncpa [#allocation10], 0
    %s23 = scalar_lea.sflag [#allocation10], 1
    %24 = vsyncpa %s23, 0
    loop: start=0, step=1, limit=5
    $region2: #{_decoder_core.1} parent=1 // loop_pre_header
      _
    $region3: #{_decoder_core.1} parent=1 // loop_header
      %s26 = sphi 0, %s30
      %p27 = scmp.ge.s32.totalorder %s26, 5
      %s33 = sphi 0, %s45
      %s34 = sphi 0, %s41
      %s35 = sphi 0, %s33
      %s36 = sphi 0, %s34
      %s37 = sphi 0, %s35
      %s38 = sphi 0, %s36
      %s48 = sphi 0, %s50
      %s51 = sphi 0, %s48
      %s52 = sphi 0, %s51
      %s68 = sphi 0, %s52
      %s74 = sphi 0, %s76
      %s77 = sphi 0, %s74
      %s78 = sphi 0, %s77
      %s94 = sphi 0, %s78
      %s102 = sphi 0, %s104
      %s105 = sphi 0, %s102
      %s106 = sphi 0, %s105
      %s122 = sphi 0, %s106
      %s126 = sphi 0, %s126
      %s128 = sphi 0, %s126
      %s129 = sphi 0, %s128
      %s143 = sphi 0, %s129
      %s147 = sphi 0, %s147
      %s149 = sphi 0, %s147
      %s150 = sphi 0, %s149
      %s164 = sphi 0, %s150
      %s168 = sphi 0, %s168
      %s170 = sphi 0, %s168
      %s171 = sphi 0, %s170
      %s185 = sphi 0, %s171
      %s189 = sphi 0, %s189
      %s191 = sphi 0, %s189
      %s192 = sphi 0, %s191
      %s206 = sphi 0, %s192
      %s210 = sphi 0, %s210
      %s212 = sphi 0, %s210
      %s213 = sphi 0, %s212
      %s227 = sphi 0, %s213
      %s235 = sphi 0, %s237
      %s238 = sphi 0, %s235
      %s239 = sphi 0, %s238
      %s255 = sphi 0, %s239
    $region4: #{_decoder_core.1} parent=1 // loop_header_branch
      %29 = sbr.rel (%p27) target = $region8
    $region5: #{_decoder_core.1} parent=1 // loop_body
      %s31 = ssub.s32 %s26, 1
      %s32 = ssub.s32 %s26, 2
      %s39 = sadd.s32 1, %s34
      %p40 = scmp.ge.s32.totalorder %s39, 3
      %s41 = scalar_select %p40, 0, %s39
      %s42 = sadd.s32 1, %s33
      %s43 = scalar_select %p40, %s42, %s33
      %p44 = scmp.ge.s32.totalorder %s43, 1
      %s45 = scalar_select %p44, 0, %s43
      %s46 = ssub.s32 %s33, %s45
      %p47 = scmp.eq.s32.totalorder %s46, 0
      %s49 = sadd.s32 %s48, 1
      %s50 = scalar_select %p47, %s48, %s49
      %p53 = pneg %p47
      %p54 = scmp.eq.s32.totalorder %s26, 2
      %p55 = por %p53, %p54
      %p56 = scmp.ne.s32.totalorder %s48, %s51
      %p57 = scmp.eq.s32.totalorder %s26, 0
      %p58 = por %p56, %p57
      %p59 = scmp.ne.s32.totalorder %s48, %s51
      %p60 = scmp.eq.s32.totalorder %s31, 2
      %p61 = por %p59, %p60
      %p62 = scmp.ne.s32.totalorder %s51, %s52
      %p63 = scmp.eq.s32.totalorder %s31, 0
      %p64 = por %p62, %p63
      %p65 = scmp.ne.s32.totalorder %s51, %s52
      %p66 = scmp.eq.s32.totalorder %s32, 2
      %p67 = por %p65, %p66
      %p69 = scmp.ne.s32.totalorder %s52, %s68
      %p70 = scmp.eq.s32.totalorder %s32, 0
      %p71 = por %p69, %p70
      %s72 = ssub.s32 %s33, %s45
      %p73 = scmp.eq.s32.totalorder %s72, 0
      %s75 = sadd.s32 %s74, 1
      %s76 = scalar_select %p73, %s74, %s75
      %p79 = pneg %p73
      %p80 = scmp.eq.s32.totalorder %s26, 2
      %p81 = por %p79, %p80
      %p82 = scmp.ne.s32.totalorder %s74, %s77
      %p83 = scmp.eq.s32.totalorder %s26, 0
      %p84 = por %p82, %p83
      %p85 = scmp.ne.s32.totalorder %s74, %s77
      %p86 = scmp.eq.s32.totalorder %s31, 2
      %p87 = por %p85, %p86
      %p88 = scmp.ne.s32.totalorder %s77, %s78
      %p89 = scmp.eq.s32.totalorder %s31, 0
      %p90 = por %p88, %p89
      %p91 = scmp.ne.s32.totalorder %s77, %s78
      %p92 = scmp.eq.s32.totalorder %s32, 2
      %p93 = por %p91, %p92
      %p95 = scmp.ne.s32.totalorder %s78, %s94
      %p96 = scmp.eq.s32.totalorder %s32, 0
      %p97 = por %p95, %p96
      %s98 = ssub.s32 %s34, %s41
      %s99 = ssub.s32 %s33, %s45
      %s100 = sor.u32 %s98, %s99
      %p101 = scmp.eq.s32.totalorder %s100, 0
      %s103 = sadd.s32 %s102, 1
      %s104 = scalar_select %p101, %s102, %s103
      %p107 = pneg %p101
      %p108 = scmp.eq.s32.totalorder %s26, 2
      %p109 = por %p107, %p108
      %p110 = scmp.ne.s32.totalorder %s102, %s105
      %p111 = scmp.eq.s32.totalorder %s26, 0
      %p112 = por %p110, %p111
      %p113 = scmp.ne.s32.totalorder %s102, %s105
      %p114 = scmp.eq.s32.totalorder %s31, 2
      %p115 = por %p113, %p114
      %p116 = scmp.ne.s32.totalorder %s105, %s106
      %p117 = scmp.eq.s32.totalorder %s31, 0
      %p118 = por %p116, %p117
      %p119 = scmp.ne.s32.totalorder %s105, %s106
      %p120 = scmp.eq.s32.totalorder %s32, 2
      %p121 = por %p119, %p120
      %p123 = scmp.ne.s32.totalorder %s106, %s122
      %p124 = scmp.eq.s32.totalorder %s32, 0
      %p125 = por %p123, %p124
      %s127 = sadd.s32 %s126, 1
      %p130 = scmp.eq.s32.totalorder %s26, 2
      %p131 = scmp.ne.s32.totalorder %s126, %s128
      %p132 = scmp.eq.s32.totalorder %s26, 0
      %p133 = por %p131, %p132
      %p134 = scmp.ne.s32.totalorder %s126, %s128
      %p135 = scmp.eq.s32.totalorder %s31, 2
      %p136 = por %p134, %p135
      %p137 = scmp.ne.s32.totalorder %s128, %s129
      %p138 = scmp.eq.s32.totalorder %s31, 0
      %p139 = por %p137, %p138
      %p140 = scmp.ne.s32.totalorder %s128, %s129
      %p141 = scmp.eq.s32.totalorder %s32, 2
      %p142 = por %p140, %p141
      %p144 = scmp.ne.s32.totalorder %s129, %s143
      %p145 = scmp.eq.s32.totalorder %s32, 0
      %p146 = por %p144, %p145
      %s148 = sadd.s32 %s147, 1
      %p151 = scmp.eq.s32.totalorder %s26, 2
      %p152 = scmp.ne.s32.totalorder %s147, %s149
      %p153 = scmp.eq.s32.totalorder %s26, 0
      %p154 = por %p152, %p153
      %p155 = scmp.ne.s32.totalorder %s147, %s149
      %p156 = scmp.eq.s32.totalorder %s31, 2
      %p157 = por %p155, %p156
      %p158 = scmp.ne.s32.totalorder %s149, %s150
      %p159 = scmp.eq.s32.totalorder %s31, 0
      %p160 = por %p158, %p159
      %p161 = scmp.ne.s32.totalorder %s149, %s150
      %p162 = scmp.eq.s32.totalorder %s32, 2
      %p163 = por %p161, %p162
      %p165 = scmp.ne.s32.totalorder %s150, %s164
      %p166 = scmp.eq.s32.totalorder %s32, 0
      %p167 = por %p165, %p166
      %s169 = sadd.s32 %s168, 1
      %p172 = scmp.eq.s32.totalorder %s26, 2
      %p173 = scmp.ne.s32.totalorder %s168, %s170
      %p174 = scmp.eq.s32.totalorder %s26, 0
      %p175 = por %p173, %p174
      %p176 = scmp.ne.s32.totalorder %s168, %s170
      %p177 = scmp.eq.s32.totalorder %s31, 2
      %p178 = por %p176, %p177
      %p179 = scmp.ne.s32.totalorder %s170, %s171
      %p180 = scmp.eq.s32.totalorder %s31, 0
      %p181 = por %p179, %p180
      %p182 = scmp.ne.s32.totalorder %s170, %s171
      %p183 = scmp.eq.s32.totalorder %s32, 2
      %p184 = por %p182, %p183
      %p186 = scmp.ne.s32.totalorder %s171, %s185
      %p187 = scmp.eq.s32.totalorder %s32, 0
      %p188 = por %p186, %p187
      %s190 = sadd.s32 %s189, 1
      %p193 = scmp.eq.s32.totalorder %s26, 2
      %p194 = scmp.ne.s32.totalorder %s189, %s191
      %p195 = scmp.eq.s32.totalorder %s26, 0
      %p196 = por %p194, %p195
      %p197 = scmp.ne.s32.totalorder %s189, %s191
      %p198 = scmp.eq.s32.totalorder %s31, 2
      %p199 = por %p197, %p198
      %p200 = scmp.ne.s32.totalorder %s191, %s192
      %p201 = scmp.eq.s32.totalorder %s31, 0
      %p202 = por %p200, %p201
      %p203 = scmp.ne.s32.totalorder %s191, %s192
      %p204 = scmp.eq.s32.totalorder %s32, 2
      %p205 = por %p203, %p204
      %p207 = scmp.ne.s32.totalorder %s192, %s206
      %p208 = scmp.eq.s32.totalorder %s32, 0
      %p209 = por %p207, %p208
      %s211 = sadd.s32 %s210, 1
      %p214 = scmp.eq.s32.totalorder %s26, 2
      %p215 = scmp.ne.s32.totalorder %s210, %s212
      %p216 = scmp.eq.s32.totalorder %s26, 0
      %p217 = por %p215, %p216
      %p218 = scmp.ne.s32.totalorder %s210, %s212
      %p219 = scmp.eq.s32.totalorder %s31, 2
      %p220 = por %p218, %p219
      %p221 = scmp.ne.s32.totalorder %s212, %s213
      %p222 = scmp.eq.s32.totalorder %s31, 0
      %p223 = por %p221, %p222
      %p224 = scmp.ne.s32.totalorder %s212, %s213
      %p225 = scmp.eq.s32.totalorder %s32, 2
      %p226 = por %p224, %p225
      %p228 = scmp.ne.s32.totalorder %s213, %s227
      %p229 = scmp.eq.s32.totalorder %s32, 0
      %p230 = por %p228, %p229
      %s231 = ssub.s32 %s34, %s41
      %s232 = ssub.s32 %s33, %s45
      %s233 = sor.u32 %s231, %s232
      %p234 = scmp.eq.s32.totalorder %s233, 0
      %s236 = sadd.s32 %s235, 1
      %s237 = scalar_select %p234, %s235, %s236
      %p240 = pneg %p234
      %p241 = scmp.eq.s32.totalorder %s26, 2
      %p242 = por %p240, %p241
      %p243 = scmp.ne.s32.totalorder %s235, %s238
      %p244 = scmp.eq.s32.totalorder %s26, 0
      %p245 = por %p243, %p244
      %p246 = scmp.ne.s32.totalorder %s235, %s238
      %p247 = scmp.eq.s32.totalorder %s31, 2
      %p248 = por %p246, %p247
      %p249 = scmp.ne.s32.totalorder %s238, %s239
      %p250 = scmp.eq.s32.totalorder %s31, 0
      %p251 = por %p249, %p250
      %p252 = scmp.ne.s32.totalorder %s238, %s239
      %p253 = scmp.eq.s32.totalorder %s32, 2
      %p254 = por %p252, %p253
      %p256 = scmp.ne.s32.totalorder %s239, %s255
      %p257 = scmp.eq.s32.totalorder %s32, 0
      %p258 = por %p256, %p257
      %p259 = scmp.le.s32.totalorder 1, %s26
      %p260 = scmp.lt.s32.totalorder %s26, 4
      %p261 = pnand %p259, %p260
      %p262 = pneg %p261
      // Predicated region
      $region9: #{_decoder_core.1} parent=5 // pred_check
        _
      $region10: #{_decoder_core.1} parent=5 // pred_check_branch
        %264 = sbr.rel (%p261) target = $region12
      $region11: #{_decoder_core.1} parent=5 // pred_region
        %s265 = ssub.s32 %s26, 1
        // Predicated region
        $region13: #{_decoder_core.1} parent=11 // pred_check
          %p266 = pneg %p64
        $region14: #{_decoder_core.1} parent=11 // pred_check_branch
          %268 = sbr.rel (%p266) target = $region16
        $region15: #{_decoder_core.1} parent=11 // pred_region
          %s269 = smul.u32 2, %s35
          %p270 = scmp.lt.s32.totalorder %s269, 1
          %s271 = scalar_select %p270, %s269, 1
          %s272 = smul.addr %s271, 8
          %s273 = scalar_lea.vmem %s1, %s272
          %s274 = smul.u32 2, %s35
        $region16: #{_decoder_core.1} parent=11 // pred_fallthru
          _
        // Predicated region
        $region17: #{_decoder_core.1} parent=11 // pred_check
          %p275 = pneg %p90
        $region18: #{_decoder_core.1} parent=11 // pred_check_branch
          %277 = sbr.rel (%p275) target = $region20
        $region19: #{_decoder_core.1} parent=11 // pred_region
          %s278 = smul.u32 2, %s35
          %p279 = scmp.lt.s32.totalorder %s278, 1
          %s280 = scalar_select %p279, %s278, 1
          %s281 = smul.addr %s280, 8
          %s282 = scalar_lea.vmem %s2, %s281
          %s283 = smul.u32 2, %s35
        $region20: #{_decoder_core.1} parent=11 // pred_fallthru
          _
        // Predicated region
        $region21: #{_decoder_core.1} parent=11 // pred_check
          %p284 = pneg %p139
        $region22: #{_decoder_core.1} parent=11 // pred_check_branch
          %286 = sbr.rel (%p284) target = $region24
        $region23: #{_decoder_core.1} parent=11 // pred_region
          _
        $region24: #{_decoder_core.1} parent=11 // pred_fallthru
          _
        // Predicated region
        $region25: #{_decoder_core.1} parent=11 // pred_check
          %p287 = pneg %p160
        $region26: #{_decoder_core.1} parent=11 // pred_check_branch
          %289 = sbr.rel (%p287) target = $region28
        $region27: #{_decoder_core.1} parent=11 // pred_region
          _
        $region28: #{_decoder_core.1} parent=11 // pred_fallthru
          _
        // Predicated region
        $region29: #{_decoder_core.1} parent=11 // pred_check
          %p290 = pneg %p181
        $region30: #{_decoder_core.1} parent=11 // pred_check_branch
          %292 = sbr.rel (%p290) target = $region32
        $region31: #{_decoder_core.1} parent=11 // pred_region
          _
        $region32: #{_decoder_core.1} parent=11 // pred_fallthru
          _
        // Predicated region
        $region33: #{_decoder_core.1} parent=11 // pred_check
          %p293 = pneg %p202
        $region34: #{_decoder_core.1} parent=11 // pred_check_branch
          %295 = sbr.rel (%p293) target = $region36
        $region35: #{_decoder_core.1} parent=11 // pred_region
          _
        $region36: #{_decoder_core.1} parent=11 // pred_fallthru
          _
        // Predicated region
        $region37: #{_decoder_core.1} parent=11 // pred_check
          %p296 = pneg %p223
        $region38: #{_decoder_core.1} parent=11 // pred_check_branch
          %298 = sbr.rel (%p296) target = $region40
        $region39: #{_decoder_core.1} parent=11 // pred_region
          _
        $region40: #{_decoder_core.1} parent=11 // pred_fallthru
          _
      $region12: #{_decoder_core.1} parent=5 // pred_fallthru
        _
      %p299 = scmp.lt.s32.totalorder %s26, 3
      // Predicated region
      $region41: #{_decoder_core.1} parent=5 // pred_check
        %p300 = pneg %p299
      $region42: #{_decoder_core.1} parent=5 // pred_check_branch
        %302 = sbr.rel (%p300) target = $region44
      $region43: #{_decoder_core.1} parent=5 // pred_region
        // Predicated region
        $region45: #{_decoder_core.1} parent=43 // pred_check
          %p303 = pneg %p112
        $region46: #{_decoder_core.1} parent=43 // pred_check_branch
          %305 = sbr.rel (%p303) target = $region48
        $region47: #{_decoder_core.1} parent=43 // pred_region
          %s306 = smul.u32 8, %s34
          %s307 = smul.u32 2, %s33
          %p308 = scmp.lt.s32.totalorder %s306, 23
          %s309 = scalar_select %p308, %s306, 23
          %p310 = scmp.lt.s32.totalorder %s307, 1
          %s311 = scalar_select %p310, %s307, 1
          %s312 = smul.addr %s309, 2
          %s313 = sadd.s32 %s311, %s312
          %s314 = smul.addr %s313, 4
          %s315 = scalar_lea.vmem %s3, %s314
          %s316 = smul.u32 8, %s34
          %s317 = smul.u32 2, %s33
        $region48: #{_decoder_core.1} parent=43 // pred_fallthru
          _
      $region44: #{_decoder_core.1} parent=5 // pred_fallthru
        _
      %p318 = scmp.le.s32.totalorder 1, %s26
      %p319 = scmp.lt.s32.totalorder %s26, 4
      %p320 = pnand %p318, %p319
      %p321 = pneg %p320
      // Predicated region
      $region49: #{_decoder_core.1} parent=5 // pred_check
        _
      $region50: #{_decoder_core.1} parent=5 // pred_check_branch
        %323 = sbr.rel (%p320) target = $region52
      $region51: #{_decoder_core.1} parent=5 // pred_region
        %s324 = ssub.s32 %s26, 1
        %s325 = smul.u32 2, %s35
        %p326 = scmp.lt.s32.totalorder %s325, 1
        %s327 = scalar_select %p326, %s325, 1
        %s328 = smul.addr %s327, 8
        %s329 = scalar_lea.vmem %s1, %s328
        %p330 = pneg %p64
        %p331 = pneg %p61
        %s332 = smul.u32 2, %s35
        %p333 = scmp.lt.s32.totalorder %s332, 1
        %s334 = scalar_select %p333, %s332, 1
        %s335 = smul.addr %s334, 8
        %s336 = scalar_lea.vmem %s2, %s335
        %p337 = pneg %p90
        %p338 = pneg %p87
        %s339 = smul.u32 8, %s36
        %s340 = smul.u32 2, %s35
        %p341 = scmp.lt.s32.totalorder %s339, 23
        %s342 = scalar_select %p341, %s339, 23
        %p343 = scmp.lt.s32.totalorder %s340, 1
        %s344 = scalar_select %p343, %s340, 1
        %s345 = smul.addr %s342, 2
        %s346 = sadd.s32 %s344, %s345
        %s347 = smul.addr %s346, 4
        %s348 = scalar_lea.vmem %s3, %s347
        %p349 = pneg %p118
        %p350 = pneg %p115
        %p351 = pneg %p139
        %p352 = pneg %p136
        %p353 = pneg %p160
        %p354 = pneg %p157
        %p355 = pneg %p181
        %p356 = pneg %p178
        %p357 = pneg %p202
        %p358 = pneg %p199
        %p359 = pneg %p223
        %p360 = pneg %p220
        %p361 = pneg %p251
        %p362 = pneg %p248
        %s363 = sand.u32 %s238, 1
        %s364 = scalar_lea.sflag [#allocation10], %s363
        %s365 = sand.u32 %s238, 1
        %s366 = smul.addr %s365, 64
        %s367 = scalar_lea.vmem [#allocation9], %s366
        %s368 = smul.u32 2, %s35
        %p369 = scmp.lt.s32.totalorder %s368, 1
        %s370 = scalar_select %p369, %s368, 1
        %s371 = smul.addr %s370, 8
        %s372 = scalar_lea.vmem %s1, %s371
        %s373 = smul.u32 2, %s35
        %s374 = smul.u32 2, %s35
        %p375 = scmp.lt.s32.totalorder %s374, 1
        %s376 = scalar_select %p375, %s374, 1
        %s377 = smul.addr %s376, 8
        %s378 = scalar_lea.vmem %s2, %s377
        %s379 = smul.u32 2, %s35
        %s380 = smul.u32 8, %s36
        %s381 = smul.u32 2, %s35
        %p382 = scmp.lt.s32.totalorder %s380, 23
        %s383 = scalar_select %p382, %s380, 23
        %p384 = scmp.lt.s32.totalorder %s381, 1
        %s385 = scalar_select %p384, %s381, 1
        %s386 = smul.addr %s383, 2
        %s387 = sadd.s32 %s385, %s386
        %s388 = smul.addr %s387, 4
        %s389 = scalar_lea.vmem %s3, %s388
        %s390 = smul.u32 8, %s36
        %s391 = smul.u32 2, %s35
        %s392 = smul.u32 8, %s36
        %s393 = smul.u32 2, %s35
        %p394 = scmp.eq.s32.totalorder %s36, 0
        // Predicated region
        $region53: #{_decoder_core.1} parent=51 // pred_check
          %p395 = pneg %p394
        $region54: #{_decoder_core.1} parent=51 // pred_check_branch
          %397 = sbr.rel (%p395) target = $region56
        $region55: #{_decoder_core.1} parent=51 // pred_region
          %v398 = vld [vmem:[%s372] sm:$0xff]
          %v399 = vld [vmem:[%s372 + $0x8] sm:$0xff]
          %400 = vst [vmem:[#allocation2] sm:$0xff] %v398
          %401 = vst [vmem:[#allocation2 + $0x8] sm:$0xff] %v399
          %v402 = vld [vmem:[%s378] sm:$0xff]
          %v403 = vld [vmem:[%s378 + $0x8] sm:$0xff]
          %404 = vst [vmem:[#allocation3] sm:$0xff] %v402
          %405 = vst [vmem:[#allocation3 + $0x8] sm:$0xff] %v403
        $region56: #{_decoder_core.1} parent=51 // pred_fallthru
          _
        %v406 = vlaneseq
        %v407 = vshrl.u32 %v406, 7
        %v408 = vadd.s32 %v407, 8
        %s409 = smul.u32 %s35, 16
        %v410 = vstv %s409
        %v411 = vadd.s32 %v407, %v410
        %v412 = vadd.s32 %v408, %v410
        %v413 = vld [vmem:[%s389] sm:$0xf]
        %v414 = vld [vmem:[%s389 + $0x4] sm:$0xf]
        %v415 = vld [vmem:[%s389 + $0x8] sm:$0xf]
        %v416 = vld [vmem:[%s389 + $0xc] sm:$0xf]
        %v417 = vld [vmem:[%s389 + $0x10] sm:$0xf]
        %v418 = vld [vmem:[%s389 + $0x14] sm:$0xf]
        %v419 = vld [vmem:[%s389 + $0x18] sm:$0xf]
        %v420 = vld [vmem:[%s389 + $0x1c] sm:$0xf]
        %v421 = vld [vmem:[%s389 + $0x20] sm:$0xf]
        %v422 = vld [vmem:[%s389 + $0x24] sm:$0xf]
        %v423 = vld [vmem:[%s389 + $0x28] sm:$0xf]
        %v424 = vld [vmem:[%s389 + $0x2c] sm:$0xf]
        %v425 = vld [vmem:[%s389 + $0x30] sm:$0xf]
        %v426 = vld [vmem:[%s389 + $0x34] sm:$0xf]
        %v427 = vld [vmem:[%s389 + $0x38] sm:$0xf]
        %v428 = vld [vmem:[%s389 + $0x3c] sm:$0xf]
        %v429 = vld [vmem:[%s4] sm:$0xff]
        %v430 = vld [vmem:[%s4 + $0x8] sm:$0xff]
        %v431 = vld [vmem:[%s4 + $0x10] sm:$0xff]
        %v432 = vld [vmem:[%s4 + $0x18] sm:$0xff]
        %v433 = vld [vmem:[%s4 + $0x20] sm:$0xff]
        %v434 = vld [vmem:[%s4 + $0x28] sm:$0xff]
        %v435 = vld [vmem:[%s4 + $0x30] sm:$0xff]
        %v436 = vld [vmem:[%s4 + $0x38] sm:$0xff]
        %v437 = vld [vmem:[%s4 + $0x40] sm:$0xff]
        %v438 = vld [vmem:[%s4 + $0x48] sm:$0xff]
        %v439 = vld [vmem:[%s4 + $0x50] sm:$0xff]
        %v440 = vld [vmem:[%s4 + $0x58] sm:$0xff]
        %v441 = vld [vmem:[%s4 + $0x60] sm:$0xff]
        %v442 = vld [vmem:[%s4 + $0x68] sm:$0xff]
        %v443 = vld [vmem:[%s4 + $0x70] sm:$0xff]
        %v444 = vld [vmem:[%s4 + $0x78] sm:$0xff]
        %v445 = vld [vmem:[%s4 + $0x80] sm:$0xff]
        %v446 = vld [vmem:[%s4 + $0x88] sm:$0xff]
        %v447 = vld [vmem:[%s4 + $0x90] sm:$0xff]
        %v448 = vld [vmem:[%s4 + $0x98] sm:$0xff]
        %v449 = vld [vmem:[%s4 + $0xa0] sm:$0xff]
        %v450 = vld [vmem:[%s4 + $0xa8] sm:$0xff]
        %v451 = vld [vmem:[%s4 + $0xb0] sm:$0xff]
        %v452 = vld [vmem:[%s4 + $0xb8] sm:$0xff]
        %v453 = vld [vmem:[%s4 + $0xc0] sm:$0xff]
        %v454 = vld [vmem:[%s4 + $0xc8] sm:$0xff]
        %v455 = vld [vmem:[%s4 + $0xd0] sm:$0xff]
        %v456 = vld [vmem:[%s4 + $0xd8] sm:$0xff]
        %v457 = vld [vmem:[%s4 + $0xe0] sm:$0xff]
        %v458 = vld [vmem:[%s4 + $0xe8] sm:$0xff]
        %v459 = vld [vmem:[%s4 + $0xf0] sm:$0xff]
        %v460 = vld [vmem:[%s4 + $0xf8] sm:$0xff]
        %v461 = vld [vmem:[%s6] sm:$0xf]
        %v463 = vperm.slane %v461, 0
        %v464 = vperm.slane %v461, 1
        %v465 = vperm.slane %v461, 2
        %v466 = vperm.slane %v461, 3
        %v487 = vunpack.c.l.b16 %v413
        %v488 = vunpack.c.l.b16 %v414
        %v489 = vunpack.c.l.b16 %v415
        %v490 = vunpack.c.l.b16 %v416
        %v491 = vunpack.c.l.b16 %v417
        %v492 = vunpack.c.l.b16 %v418
        %v493 = vunpack.c.l.b16 %v419
        %v494 = vunpack.c.l.b16 %v420
        %v495 = vunpack.c.l.b16 %v421
        %v496 = vunpack.c.l.b16 %v422
        %v497 = vunpack.c.l.b16 %v423
        %v498 = vunpack.c.l.b16 %v424
        %v499 = vunpack.c.l.b16 %v425
        %v500 = vunpack.c.l.b16 %v426
        %v501 = vunpack.c.l.b16 %v427
        %v502 = vunpack.c.l.b16 %v428
        %v503 = vpack.c.b16 %v488, %v487
        %v504 = vpack.c.b16 %v490, %v489
        %v505 = vpack.c.b16 %v492, %v491
        %v506 = vpack.c.b16 %v494, %v493
        %v507 = vpack.c.b16 %v496, %v495
        %v508 = vpack.c.b16 %v498, %v497
        %v509 = vpack.c.b16 %v500, %v499
        %v510 = vpack.c.b16 %v502, %v501
        %v551 = vunpack.c.l.b16 %v429
        %v552 = vunpack.c.h.b16 %v429
        %v553 = vunpack.c.l.b16 %v430
        %v554 = vunpack.c.h.b16 %v430
        %v555 = vunpack.c.l.b16 %v431
        %v556 = vunpack.c.h.b16 %v431
        %v557 = vunpack.c.l.b16 %v432
        %v558 = vunpack.c.h.b16 %v432
        %v559 = vunpack.c.l.b16 %v433
        %v560 = vunpack.c.h.b16 %v433
        %v561 = vunpack.c.l.b16 %v434
        %v562 = vunpack.c.h.b16 %v434
        %v563 = vunpack.c.l.b16 %v435
        %v564 = vunpack.c.h.b16 %v435
        %v565 = vunpack.c.l.b16 %v436
        %v566 = vunpack.c.h.b16 %v436
        %v567 = vunpack.c.l.b16 %v437
        %v568 = vunpack.c.h.b16 %v437
        %v569 = vunpack.c.l.b16 %v438
        %v570 = vunpack.c.h.b16 %v438
        %v571 = vunpack.c.l.b16 %v439
        %v572 = vunpack.c.h.b16 %v439
        %v573 = vunpack.c.l.b16 %v440
        %v574 = vunpack.c.h.b16 %v440
        %v575 = vunpack.c.l.b16 %v441
        %v576 = vunpack.c.h.b16 %v441
        %v577 = vunpack.c.l.b16 %v442
        %v578 = vunpack.c.h.b16 %v442
        %v579 = vunpack.c.l.b16 %v443
        %v580 = vunpack.c.h.b16 %v443
        %v581 = vunpack.c.l.b16 %v444
        %v582 = vunpack.c.h.b16 %v444
        %v583 = vunpack.c.l.b16 %v445
        %v584 = vunpack.c.h.b16 %v445
        %v585 = vunpack.c.l.b16 %v446
        %v586 = vunpack.c.h.b16 %v446
        %v587 = vunpack.c.l.b16 %v447
        %v588 = vunpack.c.h.b16 %v447
        %v589 = vunpack.c.l.b16 %v448
        %v590 = vunpack.c.h.b16 %v448
        %v591 = vunpack.c.l.b16 %v449
        %v592 = vunpack.c.h.b16 %v449
        %v593 = vunpack.c.l.b16 %v450
        %v594 = vunpack.c.h.b16 %v450
        %v595 = vunpack.c.l.b16 %v451
        %v596 = vunpack.c.h.b16 %v451
        %v597 = vunpack.c.l.b16 %v452
        %v598 = vunpack.c.h.b16 %v452
        %v599 = vunpack.c.l.b16 %v453
        %v600 = vunpack.c.h.b16 %v453
        %v601 = vunpack.c.l.b16 %v454
        %v602 = vunpack.c.h.b16 %v454
        %v603 = vunpack.c.l.b16 %v455
        %v604 = vunpack.c.h.b16 %v455
        %v605 = vunpack.c.l.b16 %v456
        %v606 = vunpack.c.h.b16 %v456
        %v607 = vunpack.c.l.b16 %v457
        %v608 = vunpack.c.h.b16 %v457
        %v609 = vunpack.c.l.b16 %v458
        %v610 = vunpack.c.h.b16 %v458
        %v611 = vunpack.c.l.b16 %v459
        %v612 = vunpack.c.h.b16 %v459
        %v613 = vunpack.c.l.b16 %v460
        %v614 = vunpack.c.h.b16 %v460
        %v615 = vpack.c.b16 %v555, %v551
        %v616 = vpack.c.b16 %v556, %v552
        %v617 = vpack.c.b16 %v557, %v553
        %v618 = vpack.c.b16 %v558, %v554
        %v619 = vpack.c.b16 %v563, %v559
        %v620 = vpack.c.b16 %v564, %v560
        %v621 = vpack.c.b16 %v565, %v561
        %v622 = vpack.c.b16 %v566, %v562
        %v623 = vpack.c.b16 %v571, %v567
        %v624 = vpack.c.b16 %v572, %v568
        %v625 = vpack.c.b16 %v573, %v569
        %v626 = vpack.c.b16 %v574, %v570
        %v627 = vpack.c.b16 %v579, %v575
        %v628 = vpack.c.b16 %v580, %v576
        %v629 = vpack.c.b16 %v581, %v577
        %v630 = vpack.c.b16 %v582, %v578
        %v631 = vpack.c.b16 %v587, %v583
        %v632 = vpack.c.b16 %v588, %v584
        %v633 = vpack.c.b16 %v589, %v585
        %v634 = vpack.c.b16 %v590, %v586
        %v635 = vpack.c.b16 %v595, %v591
        %v636 = vpack.c.b16 %v596, %v592
        %v637 = vpack.c.b16 %v597, %v593
        %v638 = vpack.c.b16 %v598, %v594
        %v639 = vpack.c.b16 %v603, %v599
        %v640 = vpack.c.b16 %v604, %v600
        %v641 = vpack.c.b16 %v605, %v601
        %v642 = vpack.c.b16 %v606, %v602
        %v643 = vpack.c.b16 %v611, %v607
        %v644 = vpack.c.b16 %v612, %v608
        %v645 = vpack.c.b16 %v613, %v609
        %v646 = vpack.c.b16 %v614, %v610
        %679 = vmatpush.bf16.msra.mxu0 %v643
        %680 = vmatpush.bf16.msra.mxu0 %v639
        %681 = vmatpush.bf16.msra.mxu0 %v635
        %682 = vmatpush.bf16.msra.mxu0 %v631
        %683 = vmatpush.bf16.msra.mxu0 %v627
        %684 = vmatpush.bf16.msra.mxu0 %v623
        %685 = vmatpush.bf16.msra.mxu0 %v619
        %686 = vmatpush.bf16.msra.mxu0 %v615
        %687 = vmatmul.bf16.gmra.mxu0 %v503
        %v688 = vpop.f32.mrf.mxu0
        %v689 = vadd.f32 %v463, %v688
        %v690 = vpop.f32.mrf.mxu0
        %v691 = vadd.f32 %v463, %v690
        %692 = vmatmul.bf16.gmra.mxu0 %v504
        %v693 = vpop.f32.mrf.mxu0
        %v694 = vadd.f32 %v463, %v693
        %v695 = vpop.f32.mrf.mxu0
        %v696 = vadd.f32 %v463, %v695
        %697 = vmatmul.bf16.gmra.mxu0 %v505
        %v698 = vpop.f32.mrf.mxu0
        %v699 = vadd.f32 %v463, %v698
        %v700 = vpop.f32.mrf.mxu0
        %v701 = vadd.f32 %v463, %v700
        %702 = vmatmul.bf16.gmra.mxu0 %v506
        %v703 = vpop.f32.mrf.mxu0
        %v704 = vadd.f32 %v463, %v703
        %v705 = vpop.f32.mrf.mxu0
        %v706 = vadd.f32 %v463, %v705
        %707 = vmatmul.bf16.gmra.mxu0 %v507
        %v708 = vpop.f32.mrf.mxu0
        %v709 = vadd.f32 %v463, %v708
        %v710 = vpop.f32.mrf.mxu0
        %v711 = vadd.f32 %v463, %v710
        %712 = vmatmul.bf16.gmra.mxu0 %v508
        %v713 = vpop.f32.mrf.mxu0
        %v714 = vadd.f32 %v463, %v713
        %v715 = vpop.f32.mrf.mxu0
        %v716 = vadd.f32 %v463, %v715
        %717 = vmatmul.bf16.gmra.mxu0 %v509
        %v718 = vpop.f32.mrf.mxu0
        %v719 = vadd.f32 %v463, %v718
        %v720 = vpop.f32.mrf.mxu0
        %v721 = vadd.f32 %v463, %v720
        %722 = vmatmul.bf16.gmra.mxu0 %v510
        %v723 = vpop.f32.mrf.mxu0
        %v724 = vadd.f32 %v463, %v723
        %v725 = vpop.f32.mrf.mxu0
        %v726 = vadd.f32 %v463, %v725
        %727 = vdwg.mxu0
        %728 = vmatpush.bf16.msra.mxu0 %v644
        %729 = vmatpush.bf16.msra.mxu0 %v640
        %730 = vmatpush.bf16.msra.mxu0 %v636
        %731 = vmatpush.bf16.msra.mxu0 %v632
        %732 = vmatpush.bf16.msra.mxu0 %v628
        %733 = vmatpush.bf16.msra.mxu0 %v624
        %734 = vmatpush.bf16.msra.mxu0 %v620
        %735 = vmatpush.bf16.msra.mxu0 %v616
        %736 = vmatmul.bf16.gmra.mxu0 %v503
        %v737 = vpop.f32.mrf.mxu0
        %v738 = vadd.f32 %v464, %v737
        %v739 = vpop.f32.mrf.mxu0
        %v740 = vadd.f32 %v464, %v739
        %741 = vmatmul.bf16.gmra.mxu0 %v504
        %v742 = vpop.f32.mrf.mxu0
        %v743 = vadd.f32 %v464, %v742
        %v744 = vpop.f32.mrf.mxu0
        %v745 = vadd.f32 %v464, %v744
        %746 = vmatmul.bf16.gmra.mxu0 %v505
        %v747 = vpop.f32.mrf.mxu0
        %v748 = vadd.f32 %v464, %v747
        %v749 = vpop.f32.mrf.mxu0
        %v750 = vadd.f32 %v464, %v749
        %751 = vmatmul.bf16.gmra.mxu0 %v506
        %v752 = vpop.f32.mrf.mxu0
        %v753 = vadd.f32 %v464, %v752
        %v754 = vpop.f32.mrf.mxu0
        %v755 = vadd.f32 %v464, %v754
        %756 = vmatmul.bf16.gmra.mxu0 %v507
        %v757 = vpop.f32.mrf.mxu0
        %v758 = vadd.f32 %v464, %v757
        %v759 = vpop.f32.mrf.mxu0
        %v760 = vadd.f32 %v464, %v759
        %761 = vmatmul.bf16.gmra.mxu0 %v508
        %v762 = vpop.f32.mrf.mxu0
        %v763 = vadd.f32 %v464, %v762
        %v764 = vpop.f32.mrf.mxu0
        %v765 = vadd.f32 %v464, %v764
        %766 = vmatmul.bf16.gmra.mxu0 %v509
        %v767 = vpop.f32.mrf.mxu0
        %v768 = vadd.f32 %v464, %v767
        %v769 = vpop.f32.mrf.mxu0
        %v770 = vadd.f32 %v464, %v769
        %771 = vmatmul.bf16.gmra.mxu0 %v510
        %v772 = vpop.f32.mrf.mxu0
        %v773 = vadd.f32 %v464, %v772
        %v774 = vpop.f32.mrf.mxu0
        %v775 = vadd.f32 %v464, %v774
        %776 = vdwg.mxu0
        %777 = vmatpush.bf16.msra.mxu0 %v645
        %778 = vmatpush.bf16.msra.mxu0 %v641
        %779 = vmatpush.bf16.msra.mxu0 %v637
        %780 = vmatpush.bf16.msra.mxu0 %v633
        %781 = vmatpush.bf16.msra.mxu0 %v629
        %782 = vmatpush.bf16.msra.mxu0 %v625
        %783 = vmatpush.bf16.msra.mxu0 %v621
        %784 = vmatpush.bf16.msra.mxu0 %v617
        %785 = vmatmul.bf16.gmra.mxu0 %v503
        %v786 = vpop.f32.mrf.mxu0
        %v787 = vadd.f32 %v465, %v786
        %v788 = vpop.f32.mrf.mxu0
        %v789 = vadd.f32 %v465, %v788
        %790 = vmatmul.bf16.gmra.mxu0 %v504
        %v791 = vpop.f32.mrf.mxu0
        %v792 = vadd.f32 %v465, %v791
        %v793 = vpop.f32.mrf.mxu0
        %v794 = vadd.f32 %v465, %v793
        %795 = vmatmul.bf16.gmra.mxu0 %v505
        %v796 = vpop.f32.mrf.mxu0
        %v797 = vadd.f32 %v465, %v796
        %v798 = vpop.f32.mrf.mxu0
        %v799 = vadd.f32 %v465, %v798
        %800 = vmatmul.bf16.gmra.mxu0 %v506
        %v801 = vpop.f32.mrf.mxu0
        %v802 = vadd.f32 %v465, %v801
        %v803 = vpop.f32.mrf.mxu0
        %v804 = vadd.f32 %v465, %v803
        %805 = vmatmul.bf16.gmra.mxu0 %v507
        %v806 = vpop.f32.mrf.mxu0
        %v807 = vadd.f32 %v465, %v806
        %v808 = vpop.f32.mrf.mxu0
        %v809 = vadd.f32 %v465, %v808
        %810 = vmatmul.bf16.gmra.mxu0 %v508
        %v811 = vpop.f32.mrf.mxu0
        %v812 = vadd.f32 %v465, %v811
        %v813 = vpop.f32.mrf.mxu0
        %v814 = vadd.f32 %v465, %v813
        %815 = vmatmul.bf16.gmra.mxu0 %v509
        %v816 = vpop.f32.mrf.mxu0
        %v817 = vadd.f32 %v465, %v816
        %v818 = vpop.f32.mrf.mxu0
        %v819 = vadd.f32 %v465, %v818
        %820 = vmatmul.bf16.gmra.mxu0 %v510
        %v821 = vpop.f32.mrf.mxu0
        %v822 = vadd.f32 %v465, %v821
        %v823 = vpop.f32.mrf.mxu0
        %v824 = vadd.f32 %v465, %v823
        %825 = vdwg.mxu0
        %826 = vmatpush.bf16.msra.mxu0 %v646
        %827 = vmatpush.bf16.msra.mxu0 %v642
        %828 = vmatpush.bf16.msra.mxu0 %v638
        %829 = vmatpush.bf16.msra.mxu0 %v634
        %830 = vmatpush.bf16.msra.mxu0 %v630
        %831 = vmatpush.bf16.msra.mxu0 %v626
        %832 = vmatpush.bf16.msra.mxu0 %v622
        %833 = vmatpush.bf16.msra.mxu0 %v618
        %834 = vmatmul.bf16.gmra.mxu0 %v503
        %v835 = vpop.f32.mrf.mxu0
        %v836 = vadd.f32 %v466, %v835
        %v837 = vpop.f32.mrf.mxu0
        %v838 = vadd.f32 %v466, %v837
        %839 = vmatmul.bf16.gmra.mxu0 %v504
        %v840 = vpop.f32.mrf.mxu0
        %v841 = vadd.f32 %v466, %v840
        %v842 = vpop.f32.mrf.mxu0
        %v843 = vadd.f32 %v466, %v842
        %844 = vmatmul.bf16.gmra.mxu0 %v505
        %v845 = vpop.f32.mrf.mxu0
        %v846 = vadd.f32 %v466, %v845
        %v847 = vpop.f32.mrf.mxu0
        %v848 = vadd.f32 %v466, %v847
        %849 = vmatmul.bf16.gmra.mxu0 %v506
        %v850 = vpop.f32.mrf.mxu0
        %v851 = vadd.f32 %v466, %v850
        %v852 = vpop.f32.mrf.mxu0
        %v853 = vadd.f32 %v466, %v852
        %854 = vmatmul.bf16.gmra.mxu0 %v507
        %v855 = vpop.f32.mrf.mxu0
        %v856 = vadd.f32 %v466, %v855
        %v857 = vpop.f32.mrf.mxu0
        %v858 = vadd.f32 %v466, %v857
        %859 = vmatmul.bf16.gmra.mxu0 %v508
        %v860 = vpop.f32.mrf.mxu0
        %v861 = vadd.f32 %v466, %v860
        %v862 = vpop.f32.mrf.mxu0
        %v863 = vadd.f32 %v466, %v862
        %864 = vmatmul.bf16.gmra.mxu0 %v509
        %v865 = vpop.f32.mrf.mxu0
        %v866 = vadd.f32 %v466, %v865
        %v867 = vpop.f32.mrf.mxu0
        %v868 = vadd.f32 %v466, %v867
        %869 = vmatmul.bf16.gmra.mxu0 %v510
        %v870 = vpop.f32.mrf.mxu0
        %v871 = vadd.f32 %v466, %v870
        %v872 = vpop.f32.mrf.mxu0
        %v873 = vadd.f32 %v466, %v872
        %874 = vdwg.mxu0
        %875 = vst [vmem:[#allocation4] sm:$0xff] %v689
        %876 = vst [vmem:[#allocation4 + $0x8] sm:$0xff] %v738
        %877 = vst [vmem:[#allocation4 + $0x10] sm:$0xff] %v787
        %878 = vst [vmem:[#allocation4 + $0x18] sm:$0xff] %v836
        %879 = vst [vmem:[#allocation4 + $0x20] sm:$0xff] %v691
        %880 = vst [vmem:[#allocation4 + $0x28] sm:$0xff] %v740
        %881 = vst [vmem:[#allocation4 + $0x30] sm:$0xff] %v789
        %882 = vst [vmem:[#allocation4 + $0x38] sm:$0xff] %v838
        %883 = vst [vmem:[#allocation4 + $0x40] sm:$0xff] %v694
        %884 = vst [vmem:[#allocation4 + $0x48] sm:$0xff] %v743
        %885 = vst [vmem:[#allocation4 + $0x50] sm:$0xff] %v792
        %886 = vst [vmem:[#allocation4 + $0x58] sm:$0xff] %v841
        %887 = vst [vmem:[#allocation4 + $0x60] sm:$0xff] %v696
        %888 = vst [vmem:[#allocation4 + $0x68] sm:$0xff] %v745
        %889 = vst [vmem:[#allocation4 + $0x70] sm:$0xff] %v794
        %890 = vst [vmem:[#allocation4 + $0x78] sm:$0xff] %v843
        %891 = vst [vmem:[#allocation4 + $0x80] sm:$0xff] %v699
        %892 = vst [vmem:[#allocation4 + $0x88] sm:$0xff] %v748
        %893 = vst [vmem:[#allocation4 + $0x90] sm:$0xff] %v797
        %894 = vst [vmem:[#allocation4 + $0x98] sm:$0xff] %v846
        %895 = vst [vmem:[#allocation4 + $0xa0] sm:$0xff] %v701
        %896 = vst [vmem:[#allocation4 + $0xa8] sm:$0xff] %v750
        %897 = vst [vmem:[#allocation4 + $0xb0] sm:$0xff] %v799
        %898 = vst [vmem:[#allocation4 + $0xb8] sm:$0xff] %v848
        %899 = vst [vmem:[#allocation4 + $0xc0] sm:$0xff] %v704
        %900 = vst [vmem:[#allocation4 + $0xc8] sm:$0xff] %v753
        %901 = vst [vmem:[#allocation4 + $0xd0] sm:$0xff] %v802
        %902 = vst [vmem:[#allocation4 + $0xd8] sm:$0xff] %v851
        %903 = vst [vmem:[#allocation4 + $0xe0] sm:$0xff] %v706
        %904 = vst [vmem:[#allocation4 + $0xe8] sm:$0xff] %v755
        %905 = vst [vmem:[#allocation4 + $0xf0] sm:$0xff] %v804
        %906 = vst [vmem:[#allocation4 + $0xf8] sm:$0xff] %v853
        %907 = vst [vmem:[#allocation4 + $0x100] sm:$0xff] %v709
        %908 = vst [vmem:[#allocation4 + $0x108] sm:$0xff] %v758
        %909 = vst [vmem:[#allocation4 + $0x110] sm:$0xff] %v807
        %910 = vst [vmem:[#allocation4 + $0x118] sm:$0xff] %v856
        %911 = vst [vmem:[#allocation4 + $0x120] sm:$0xff] %v711
        %912 = vst [vmem:[#allocation4 + $0x128] sm:$0xff] %v760
        %913 = vst [vmem:[#allocation4 + $0x130] sm:$0xff] %v809
        %914 = vst [vmem:[#allocation4 + $0x138] sm:$0xff] %v858
        %915 = vst [vmem:[#allocation4 + $0x140] sm:$0xff] %v714
        %916 = vst [vmem:[#allocation4 + $0x148] sm:$0xff] %v763
        %917 = vst [vmem:[#allocation4 + $0x150] sm:$0xff] %v812
        %918 = vst [vmem:[#allocation4 + $0x158] sm:$0xff] %v861
        %919 = vst [vmem:[#allocation4 + $0x160] sm:$0xff] %v716
        %920 = vst [vmem:[#allocation4 + $0x168] sm:$0xff] %v765
        %921 = vst [vmem:[#allocation4 + $0x170] sm:$0xff] %v814
        %922 = vst [vmem:[#allocation4 + $0x178] sm:$0xff] %v863
        %923 = vst [vmem:[#allocation4 + $0x180] sm:$0xff] %v719
        %924 = vst [vmem:[#allocation4 + $0x188] sm:$0xff] %v768
        %925 = vst [vmem:[#allocation4 + $0x190] sm:$0xff] %v817
        %926 = vst [vmem:[#allocation4 + $0x198] sm:$0xff] %v866
        %927 = vst [vmem:[#allocation4 + $0x1a0] sm:$0xff] %v721
        %928 = vst [vmem:[#allocation4 + $0x1a8] sm:$0xff] %v770
        %929 = vst [vmem:[#allocation4 + $0x1b0] sm:$0xff] %v819
        %930 = vst [vmem:[#allocation4 + $0x1b8] sm:$0xff] %v868
        %931 = vst [vmem:[#allocation4 + $0x1c0] sm:$0xff] %v724
        %932 = vst [vmem:[#allocation4 + $0x1c8] sm:$0xff] %v773
        %933 = vst [vmem:[#allocation4 + $0x1d0] sm:$0xff] %v822
        %934 = vst [vmem:[#allocation4 + $0x1d8] sm:$0xff] %v871
        %935 = vst [vmem:[#allocation4 + $0x1e0] sm:$0xff] %v726
        %936 = vst [vmem:[#allocation4 + $0x1e8] sm:$0xff] %v775
        %937 = vst [vmem:[#allocation4 + $0x1f0] sm:$0xff] %v824
        %938 = vst [vmem:[#allocation4 + $0x1f8] sm:$0xff] %v873
        %v939 = vld [vmem:[%s5] sm:$0xff]
        %v940 = vld [vmem:[%s5 + $0x8] sm:$0xff]
        %v941 = vld [vmem:[%s5 + $0x10] sm:$0xff]
        %v942 = vld [vmem:[%s5 + $0x18] sm:$0xff]
        %v943 = vld [vmem:[%s5 + $0x20] sm:$0xff]
        %v944 = vld [vmem:[%s5 + $0x28] sm:$0xff]
        %v945 = vld [vmem:[%s5 + $0x30] sm:$0xff]
        %v946 = vld [vmem:[%s5 + $0x38] sm:$0xff]
        %v947 = vld [vmem:[%s5 + $0x40] sm:$0xff]
        %v948 = vld [vmem:[%s5 + $0x48] sm:$0xff]
        %v949 = vld [vmem:[%s5 + $0x50] sm:$0xff]
        %v950 = vld [vmem:[%s5 + $0x58] sm:$0xff]
        %v951 = vld [vmem:[%s5 + $0x60] sm:$0xff]
        %v952 = vld [vmem:[%s5 + $0x68] sm:$0xff]
        %v953 = vld [vmem:[%s5 + $0x70] sm:$0xff]
        %v954 = vld [vmem:[%s5 + $0x78] sm:$0xff]
        %v955 = vld [vmem:[%s5 + $0x80] sm:$0xff]
        %v956 = vld [vmem:[%s5 + $0x88] sm:$0xff]
        %v957 = vld [vmem:[%s5 + $0x90] sm:$0xff]
        %v958 = vld [vmem:[%s5 + $0x98] sm:$0xff]
        %v959 = vld [vmem:[%s5 + $0xa0] sm:$0xff]
        %v960 = vld [vmem:[%s5 + $0xa8] sm:$0xff]
        %v961 = vld [vmem:[%s5 + $0xb0] sm:$0xff]
        %v962 = vld [vmem:[%s5 + $0xb8] sm:$0xff]
        %v963 = vld [vmem:[%s5 + $0xc0] sm:$0xff]
        %v964 = vld [vmem:[%s5 + $0xc8] sm:$0xff]
        %v965 = vld [vmem:[%s5 + $0xd0] sm:$0xff]
        %v966 = vld [vmem:[%s5 + $0xd8] sm:$0xff]
        %v967 = vld [vmem:[%s5 + $0xe0] sm:$0xff]
        %v968 = vld [vmem:[%s5 + $0xe8] sm:$0xff]
        %v969 = vld [vmem:[%s5 + $0xf0] sm:$0xff]
        %v970 = vld [vmem:[%s5 + $0xf8] sm:$0xff]
        %v971 = vld [vmem:[#allocation2] sm:$0xff]
        %v972 = vld [vmem:[#allocation2 + $0x8] sm:$0xff]
        %v973 = vld [vmem:[#allocation3] sm:$0xff]
        %v974 = vld [vmem:[#allocation3 + $0x8] sm:$0xff]
        %v975 = vpack.c.bf16 %v972, %v971
        %s976 = smul.u32 %s36, 8
        %s977 = sld [smem:[#allocation8 + %s976]]
        %v978 = vstv %s977
        %vm979 = vcmp.lt.s32.totalorder %v411, %v978
        %vm980 = vcmp.lt.s32.totalorder %v412, %v978
        %v981 = vld [vmem:[#allocation4] sm:$0xff]
        %v982 = vld [vmem:[#allocation4 + $0x8] sm:$0xff]
        %v983 = vld [vmem:[#allocation4 + $0x10] sm:$0xff]
        %v984 = vld [vmem:[#allocation4 + $0x18] sm:$0xff]
        %v985 = vld [vmem:[#allocation4 + $0x20] sm:$0xff]
        %v986 = vld [vmem:[#allocation4 + $0x28] sm:$0xff]
        %v987 = vld [vmem:[#allocation4 + $0x30] sm:$0xff]
        %v988 = vld [vmem:[#allocation4 + $0x38] sm:$0xff]
        %v1021 = vunpack.c.l.b16 %v939
        %v1022 = vunpack.c.h.b16 %v939
        %v1023 = vunpack.c.l.b16 %v940
        %v1024 = vunpack.c.h.b16 %v940
        %v1025 = vunpack.c.l.b16 %v941
        %v1026 = vunpack.c.h.b16 %v941
        %v1027 = vunpack.c.l.b16 %v942
        %v1028 = vunpack.c.h.b16 %v942
        %v1029 = vunpack.c.l.b16 %v943
        %v1030 = vunpack.c.h.b16 %v943
        %v1031 = vunpack.c.l.b16 %v944
        %v1032 = vunpack.c.h.b16 %v944
        %v1033 = vunpack.c.l.b16 %v945
        %v1034 = vunpack.c.h.b16 %v945
        %v1035 = vunpack.c.l.b16 %v946
        %v1036 = vunpack.c.h.b16 %v946
        %v1037 = vunpack.c.l.b16 %v947
        %v1038 = vunpack.c.h.b16 %v947
        %v1039 = vunpack.c.l.b16 %v948
        %v1040 = vunpack.c.h.b16 %v948
        %v1041 = vunpack.c.l.b16 %v949
        %v1042 = vunpack.c.h.b16 %v949
        %v1043 = vunpack.c.l.b16 %v950
        %v1044 = vunpack.c.h.b16 %v950
        %v1045 = vunpack.c.l.b16 %v951
        %v1046 = vunpack.c.h.b16 %v951
        %v1047 = vunpack.c.l.b16 %v952
        %v1048 = vunpack.c.h.b16 %v952
        %v1049 = vunpack.c.l.b16 %v953
        %v1050 = vunpack.c.h.b16 %v953
        %v1051 = vunpack.c.l.b16 %v954
        %v1052 = vunpack.c.h.b16 %v954
        %v1053 = vunpack.c.l.b16 %v955
        %v1054 = vunpack.c.h.b16 %v955
        %v1055 = vunpack.c.l.b16 %v956
        %v1056 = vunpack.c.h.b16 %v956
        %v1057 = vunpack.c.l.b16 %v957
        %v1058 = vunpack.c.h.b16 %v957
        %v1059 = vunpack.c.l.b16 %v958
        %v1060 = vunpack.c.h.b16 %v958
        %v1061 = vunpack.c.l.b16 %v959
        %v1062 = vunpack.c.h.b16 %v959
        %v1063 = vunpack.c.l.b16 %v960
        %v1064 = vunpack.c.h.b16 %v960
        %v1065 = vunpack.c.l.b16 %v961
        %v1066 = vunpack.c.h.b16 %v961
        %v1067 = vunpack.c.l.b16 %v962
        %v1068 = vunpack.c.h.b16 %v962
        %v1069 = vunpack.c.l.b16 %v963
        %v1070 = vunpack.c.h.b16 %v963
        %v1071 = vunpack.c.l.b16 %v964
        %v1072 = vunpack.c.h.b16 %v964
        %v1073 = vunpack.c.l.b16 %v965
        %v1074 = vunpack.c.h.b16 %v965
        %v1075 = vunpack.c.l.b16 %v966
        %v1076 = vunpack.c.h.b16 %v966
        %v1077 = vunpack.c.l.b16 %v967
        %v1078 = vunpack.c.h.b16 %v967
        %v1079 = vunpack.c.l.b16 %v968
        %v1080 = vunpack.c.h.b16 %v968
        %v1081 = vunpack.c.l.b16 %v969
        %v1082 = vunpack.c.h.b16 %v969
        %v1083 = vunpack.c.l.b16 %v970
        %v1084 = vunpack.c.h.b16 %v970
        %v1085 = vpack.c.b16 %v1025, %v1021
        %v1086 = vpack.c.b16 %v1026, %v1022
        %v1087 = vpack.c.b16 %v1027, %v1023
        %v1088 = vpack.c.b16 %v1028, %v1024
        %v1089 = vpack.c.b16 %v1033, %v1029
        %v1090 = vpack.c.b16 %v1034, %v1030
        %v1091 = vpack.c.b16 %v1035, %v1031
        %v1092 = vpack.c.b16 %v1036, %v1032
        %v1093 = vpack.c.b16 %v1041, %v1037
        %v1094 = vpack.c.b16 %v1042, %v1038
        %v1095 = vpack.c.b16 %v1043, %v1039
        %v1096 = vpack.c.b16 %v1044, %v1040
        %v1097 = vpack.c.b16 %v1049, %v1045
        %v1098 = vpack.c.b16 %v1050, %v1046
        %v1099 = vpack.c.b16 %v1051, %v1047
        %v1100 = vpack.c.b16 %v1052, %v1048
        %v1101 = vpack.c.b16 %v1057, %v1053
        %v1102 = vpack.c.b16 %v1058, %v1054
        %v1103 = vpack.c.b16 %v1059, %v1055
        %v1104 = vpack.c.b16 %v1060, %v1056
        %v1105 = vpack.c.b16 %v1065, %v1061
        %v1106 = vpack.c.b16 %v1066, %v1062
        %v1107 = vpack.c.b16 %v1067, %v1063
        %v1108 = vpack.c.b16 %v1068, %v1064
        %v1109 = vpack.c.b16 %v1073, %v1069
        %v1110 = vpack.c.b16 %v1074, %v1070
        %v1111 = vpack.c.b16 %v1075, %v1071
        %v1112 = vpack.c.b16 %v1076, %v1072
        %v1113 = vpack.c.b16 %v1081, %v1077
        %v1114 = vpack.c.b16 %v1082, %v1078
        %v1115 = vpack.c.b16 %v1083, %v1079
        %v1116 = vpack.c.b16 %v1084, %v1080
        %1149 = vmatpush.bf16.msra.mxu0 %v1113
        %1150 = vmatpush.bf16.msra.mxu0 %v1109
        %1151 = vmatpush.bf16.msra.mxu0 %v1105
        %1152 = vmatpush.bf16.msra.mxu0 %v1101
        %1153 = vmatpush.bf16.msra.mxu0 %v1097
        %1154 = vmatpush.bf16.msra.mxu0 %v1093
        %1155 = vmatpush.bf16.msra.mxu0 %v1089
        %1156 = vmatpush.bf16.msra.mxu0 %v1085
        %1157 = vmatmul.bf16.gmra.mxu0 %v975
        %v1158 = vpop.f32.mrf.mxu0
        %v1159 = vadd.f32 0.0, %v1158
        %v1160 = vpop.f32.mrf.mxu0
        %v1161 = vadd.f32 0.0, %v1160
        %1162 = vdwg.mxu0
        %1163 = vmatpush.bf16.msra.mxu0 %v1114
        %1164 = vmatpush.bf16.msra.mxu0 %v1110
        %1165 = vmatpush.bf16.msra.mxu0 %v1106
        %1166 = vmatpush.bf16.msra.mxu0 %v1102
        %1167 = vmatpush.bf16.msra.mxu0 %v1098
        %1168 = vmatpush.bf16.msra.mxu0 %v1094
        %1169 = vmatpush.bf16.msra.mxu0 %v1090
        %1170 = vmatpush.bf16.msra.mxu0 %v1086
        %1171 = vmatmul.bf16.gmra.mxu0 %v975
        %v1172 = vpop.f32.mrf.mxu0
        %v1173 = vadd.f32 0.0, %v1172
        %v1174 = vpop.f32.mrf.mxu0
        %v1175 = vadd.f32 0.0, %v1174
        %1176 = vdwg.mxu0
        %1177 = vmatpush.bf16.msra.mxu0 %v1115
        %1178 = vmatpush.bf16.msra.mxu0 %v1111
        %1179 = vmatpush.bf16.msra.mxu0 %v1107
        %1180 = vmatpush.bf16.msra.mxu0 %v1103
        %1181 = vmatpush.bf16.msra.mxu0 %v1099
        %1182 = vmatpush.bf16.msra.mxu0 %v1095
        %1183 = vmatpush.bf16.msra.mxu0 %v1091
        %1184 = vmatpush.bf16.msra.mxu0 %v1087
        %1185 = vmatmul.bf16.gmra.mxu0 %v975
        %v1186 = vpop.f32.mrf.mxu0
        %v1187 = vadd.f32 0.0, %v1186
        %v1188 = vpop.f32.mrf.mxu0
        %v1189 = vadd.f32 0.0, %v1188
        %1190 = vdwg.mxu0
        %1191 = vmatpush.bf16.msra.mxu0 %v1116
        %1192 = vmatpush.bf16.msra.mxu0 %v1112
        %1193 = vmatpush.bf16.msra.mxu0 %v1108
        %1194 = vmatpush.bf16.msra.mxu0 %v1104
        %1195 = vmatpush.bf16.msra.mxu0 %v1100
        %1196 = vmatpush.bf16.msra.mxu0 %v1096
        %1197 = vmatpush.bf16.msra.mxu0 %v1092
        %1198 = vmatpush.bf16.msra.mxu0 %v1088
        %1199 = vmatmul.bf16.gmra.mxu0 %v975
        %v1200 = vpop.f32.mrf.mxu0
        %v1201 = vadd.f32 0.0, %v1200
        %v1202 = vpop.f32.mrf.mxu0
        %v1203 = vadd.f32 0.0, %v1202
        %1204 = vdwg.mxu0
        %v1205 = vadd.f32 %v981, %v1159
        %v1206 = vadd.f32 %v982, %v1173
        %v1207 = vadd.f32 %v983, %v1187
        %v1208 = vadd.f32 %v984, %v1201
        %v1209 = vadd.f32 %v985, %v1161
        %v1210 = vadd.f32 %v986, %v1175
        %v1211 = vadd.f32 %v987, %v1189
        %v1212 = vadd.f32 %v988, %v1203
        %v1213 = vxor.u32 %v1205, 2147483648
        %v1214 = vxor.u32 %v1209, 2147483648
        %v1215 = vmul.f32 %v1213, 1.442695
        %v1216 = vpow.pop %v1215
        %v1217 = vmul.f32 %v1214, 1.442695
        %v1218 = vpow.pop %v1217
        %v1219 = vadd.f32 %v1216, 1.0
        %v1220 = vadd.f32 %v1218, 1.0
        %v1221 = vrcp.pop %v1219
        %v1222 = vmul.f32 %v1219, %v1221
        %v1223 = vsub.f32 1.0, %v1222
        %v1224 = vmul.f32 %v1221, %v1223
        %v1225 = vadd.f32 %v1221, %v1224
        %vm1226 = vweird.f32 %v1219
        %vm1227 = vweird.f32 %v1221
        %vm1228 = vmor %vm1226, %vm1227
        %v1229 = vsel %vm1228, %v1221, %v1225
        %v1230 = vand.u32 2147483647, %v1219
        %vm1231 = vcmp.eq.f32.partialorder %v1230, 8.507059e+37
        %v1232 = vand.u32 %v1219, 2147483648
        %v1233 = vor.u32 1.1754944e-38, %v1232
        %v1234 = vsel %vm1231, %v1233, %v1229
        %v1235 = vmul.f32 1.0, %v1234
        %v1236 = vrcp.pop %v1220
        %v1237 = vmul.f32 %v1220, %v1236
        %v1238 = vsub.f32 1.0, %v1237
        %v1239 = vmul.f32 %v1236, %v1238
        %v1240 = vadd.f32 %v1236, %v1239
        %vm1241 = vweird.f32 %v1220
        %vm1242 = vweird.f32 %v1236
        %vm1243 = vmor %vm1241, %vm1242
        %v1244 = vsel %vm1243, %v1236, %v1240
        %v1245 = vand.u32 2147483647, %v1220
        %vm1246 = vcmp.eq.f32.partialorder %v1245, 8.507059e+37
        %v1247 = vand.u32 %v1220, 2147483648
        %v1248 = vor.u32 1.1754944e-38, %v1247
        %v1249 = vsel %vm1246, %v1248, %v1244
        %v1250 = vmul.f32 1.0, %v1249
        %v1251 = vxor.u32 %v1206, 2147483648
        %v1252 = vxor.u32 %v1210, 2147483648
        %v1253 = vmul.f32 %v1251, 1.442695
        %v1254 = vpow.pop %v1253
        %v1255 = vmul.f32 %v1252, 1.442695
        %v1256 = vpow.pop %v1255
        %v1257 = vadd.f32 %v1254, 1.0
        %v1258 = vadd.f32 %v1256, 1.0
        %v1259 = vrcp.pop %v1257
        %v1260 = vmul.f32 %v1257, %v1259
        %v1261 = vsub.f32 1.0, %v1260
        %v1262 = vmul.f32 %v1259, %v1261
        %v1263 = vadd.f32 %v1259, %v1262
        %vm1264 = vweird.f32 %v1257
        %vm1265 = vweird.f32 %v1259
        %vm1266 = vmor %vm1264, %vm1265
        %v1267 = vsel %vm1266, %v1259, %v1263
        %v1268 = vand.u32 2147483647, %v1257
        %vm1269 = vcmp.eq.f32.partialorder %v1268, 8.507059e+37
        %v1270 = vand.u32 %v1257, 2147483648
        %v1271 = vor.u32 1.1754944e-38, %v1270
        %v1272 = vsel %vm1269, %v1271, %v1267
        %v1273 = vmul.f32 1.0, %v1272
        %v1274 = vrcp.pop %v1258
        %v1275 = vmul.f32 %v1258, %v1274
        %v1276 = vsub.f32 1.0, %v1275
        %v1277 = vmul.f32 %v1274, %v1276
        %v1278 = vadd.f32 %v1274, %v1277
        %vm1279 = vweird.f32 %v1258
        %vm1280 = vweird.f32 %v1274
        %vm1281 = vmor %vm1279, %vm1280
        %v1282 = vsel %vm1281, %v1274, %v1278
        %v1283 = vand.u32 2147483647, %v1258
        %vm1284 = vcmp.eq.f32.partialorder %v1283, 8.507059e+37
        %v1285 = vand.u32 %v1258, 2147483648
        %v1286 = vor.u32 1.1754944e-38, %v1285
        %v1287 = vsel %vm1284, %v1286, %v1282
        %v1288 = vmul.f32 1.0, %v1287
        %v1289 = vtanh.pop %v1207
        %v1290 = vtanh.pop %v1211
        %v1291 = vxor.u32 %v1208, 2147483648
        %v1292 = vxor.u32 %v1212, 2147483648
        %v1293 = vmul.f32 %v1291, 1.442695
        %v1294 = vpow.pop %v1293
        %v1295 = vmul.f32 %v1292, 1.442695
        %v1296 = vpow.pop %v1295
        %v1297 = vadd.f32 %v1294, 1.0
        %v1298 = vadd.f32 %v1296, 1.0
        %v1299 = vrcp.pop %v1297
        %v1300 = vmul.f32 %v1297, %v1299
        %v1301 = vsub.f32 1.0, %v1300
        %v1302 = vmul.f32 %v1299, %v1301
        %v1303 = vadd.f32 %v1299, %v1302
        %vm1304 = vweird.f32 %v1297
        %vm1305 = vweird.f32 %v1299
        %vm1306 = vmor %vm1304, %vm1305
        %v1307 = vsel %vm1306, %v1299, %v1303
        %v1308 = vand.u32 2147483647, %v1297
        %vm1309 = vcmp.eq.f32.partialorder %v1308, 8.507059e+37
        %v1310 = vand.u32 %v1297, 2147483648
        %v1311 = vor.u32 1.1754944e-38, %v1310
        %v1312 = vsel %vm1309, %v1311, %v1307
        %v1313 = vmul.f32 1.0, %v1312
        %v1314 = vrcp.pop %v1298
        %v1315 = vmul.f32 %v1298, %v1314
        %v1316 = vsub.f32 1.0, %v1315
        %v1317 = vmul.f32 %v1314, %v1316
        %v1318 = vadd.f32 %v1314, %v1317
        %vm1319 = vweird.f32 %v1298
        %vm1320 = vweird.f32 %v1314
        %vm1321 = vmor %vm1319, %vm1320
        %v1322 = vsel %vm1321, %v1314, %v1318
        %v1323 = vand.u32 2147483647, %v1298
        %vm1324 = vcmp.eq.f32.partialorder %v1323, 8.507059e+37
        %v1325 = vand.u32 %v1298, 2147483648
        %v1326 = vor.u32 1.1754944e-38, %v1325
        %v1327 = vsel %vm1324, %v1326, %v1322
        %v1328 = vmul.f32 1.0, %v1327
        %v1329 = vmul.f32 %v1273, %v973
        %v1330 = vmul.f32 %v1288, %v974
        %v1331 = vmul.f32 %v1235, %v1289
        %v1332 = vmul.f32 %v1250, %v1290
        %v1333 = vadd.f32 %v1329, %v1331
        %v1334 = vadd.f32 %v1330, %v1332
        %v1335 = vtanh.pop %v1333
        %v1336 = vtanh.pop %v1334
        %v1337 = vmul.f32 %v1313, %v1335
        %v1338 = vmul.f32 %v1328, %v1336
        %v1339 = vsel %vm979, 1, 0
        %v1340 = vsel %vm980, 1, 0
        %vm1341 = vcmp.eq.s32.totalorder %v1339, 1
        %vm1342 = vcmp.eq.s32.totalorder %v1340, 1
        %v1343 = vsel %vm1341, %v1337, %v971
        %v1344 = vsel %vm1342, %v1338, %v972
        %v1345 = vsel %vm1341, %v1333, %v973
        %v1346 = vsel %vm1342, %v1334, %v974
        %v1347 = vpack.c.bf16 %v1343, %v1343
        %v1348 = vpack.c.bf16 %v1344, %v1344
        %1349 = vst [vmem:[#allocation5] sm:$0xf] %v1347
        %1350 = vst [vmem:[#allocation5 + $0x4] sm:$0xf] %v1348
        %v1351 = vcvt.s32.f32 %v1339
        %v1352 = vcvt.s32.f32 %v1340
        %vm1353 = vcmask 7168
        %1354 = vst.msk [vmem:[#allocation6] sm:$0xff] %vm1353, %v1351
        %1355 = vst.msk [vmem:[#allocation6 + $0x8] sm:$0xff] %vm1353, %v1352
        %s1356 = sadd.s32 %s976, 1
        %s1357 = sld [smem:[#allocation8 + %s1356]]
        %v1358 = vstv %s1357
        %vm1359 = vcmp.lt.s32.totalorder %v411, %v1358
        %vm1360 = vcmp.lt.s32.totalorder %v412, %v1358
        %s1361 = scalar_lea.vmem [#allocation4], 64
        %v1362 = vld [vmem:[%s1361] sm:$0xff]
        %v1363 = vld [vmem:[%s1361 + $0x8] sm:$0xff]
        %v1364 = vld [vmem:[%s1361 + $0x10] sm:$0xff]
        %v1365 = vld [vmem:[%s1361 + $0x18] sm:$0xff]
        %v1366 = vld [vmem:[%s1361 + $0x20] sm:$0xff]
        %v1367 = vld [vmem:[%s1361 + $0x28] sm:$0xff]
        %v1368 = vld [vmem:[%s1361 + $0x30] sm:$0xff]
        %v1369 = vld [vmem:[%s1361 + $0x38] sm:$0xff]
        %v1372 = vunpack.c.l.b16 %v1347
        %v1373 = vunpack.c.l.b16 %v1348
        %v1374 = vpack.c.b16 %v1373, %v1372
        %1376 = vmatpush.bf16.msra.mxu0 %v1113
        %1377 = vmatpush.bf16.msra.mxu0 %v1109
        %1378 = vmatpush.bf16.msra.mxu0 %v1105
        %1379 = vmatpush.bf16.msra.mxu0 %v1101
        %1380 = vmatpush.bf16.msra.mxu0 %v1097
        %1381 = vmatpush.bf16.msra.mxu0 %v1093
        %1382 = vmatpush.bf16.msra.mxu0 %v1089
        %1383 = vmatpush.bf16.msra.mxu0 %v1085
        %1384 = vmatmul.bf16.gmra.mxu0 %v1374
        %v1385 = vpop.f32.mrf.mxu0
        %v1386 = vadd.f32 0.0, %v1385
        %v1387 = vpop.f32.mrf.mxu0
        %v1388 = vadd.f32 0.0, %v1387
        %1389 = vdwg.mxu0
        %1390 = vmatpush.bf16.msra.mxu0 %v1114
        %1391 = vmatpush.bf16.msra.mxu0 %v1110
        %1392 = vmatpush.bf16.msra.mxu0 %v1106
        %1393 = vmatpush.bf16.msra.mxu0 %v1102
        %1394 = vmatpush.bf16.msra.mxu0 %v1098
        %1395 = vmatpush.bf16.msra.mxu0 %v1094
        %1396 = vmatpush.bf16.msra.mxu0 %v1090
        %1397 = vmatpush.bf16.msra.mxu0 %v1086
        %1398 = vmatmul.bf16.gmra.mxu0 %v1374
        %v1399 = vpop.f32.mrf.mxu0
        %v1400 = vadd.f32 0.0, %v1399
        %v1401 = vpop.f32.mrf.mxu0
        %v1402 = vadd.f32 0.0, %v1401
        %1403 = vdwg.mxu0
        %1404 = vmatpush.bf16.msra.mxu0 %v1115
        %1405 = vmatpush.bf16.msra.mxu0 %v1111
        %1406 = vmatpush.bf16.msra.mxu0 %v1107
        %1407 = vmatpush.bf16.msra.mxu0 %v1103
        %1408 = vmatpush.bf16.msra.mxu0 %v1099
        %1409 = vmatpush.bf16.msra.mxu0 %v1095
        %1410 = vmatpush.bf16.msra.mxu0 %v1091
        %1411 = vmatpush.bf16.msra.mxu0 %v1087
        %1412 = vmatmul.bf16.gmra.mxu0 %v1374
        %v1413 = vpop.f32.mrf.mxu0
        %v1414 = vadd.f32 0.0, %v1413
        %v1415 = vpop.f32.mrf.mxu0
        %v1416 = vadd.f32 0.0, %v1415
        %1417 = vdwg.mxu0
        %1418 = vmatpush.bf16.msra.mxu0 %v1116
        %1419 = vmatpush.bf16.msra.mxu0 %v1112
        %1420 = vmatpush.bf16.msra.mxu0 %v1108
        %1421 = vmatpush.bf16.msra.mxu0 %v1104
        %1422 = vmatpush.bf16.msra.mxu0 %v1100
        %1423 = vmatpush.bf16.msra.mxu0 %v1096
        %1424 = vmatpush.bf16.msra.mxu0 %v1092
        %1425 = vmatpush.bf16.msra.mxu0 %v1088
        %1426 = vmatmul.bf16.gmra.mxu0 %v1374
        %v1427 = vpop.f32.mrf.mxu0
        %v1428 = vadd.f32 0.0, %v1427
        %v1429 = vpop.f32.mrf.mxu0
        %v1430 = vadd.f32 0.0, %v1429
        %1431 = vdwg.mxu0
        %v1432 = vadd.f32 %v1362, %v1386
        %v1433 = vadd.f32 %v1363, %v1400
        %v1434 = vadd.f32 %v1364, %v1414
        %v1435 = vadd.f32 %v1365, %v1428
        %v1436 = vadd.f32 %v1366, %v1388
        %v1437 = vadd.f32 %v1367, %v1402
        %v1438 = vadd.f32 %v1368, %v1416
        %v1439 = vadd.f32 %v1369, %v1430
        %v1440 = vxor.u32 %v1432, 2147483648
        %v1441 = vxor.u32 %v1436, 2147483648
        %v1442 = vmul.f32 %v1440, 1.442695
        %v1443 = vpow.pop %v1442
        %v1444 = vmul.f32 %v1441, 1.442695
        %v1445 = vpow.pop %v1444
        %v1446 = vadd.f32 %v1443, 1.0
        %v1447 = vadd.f32 %v1445, 1.0
        %v1448 = vrcp.pop %v1446
        %v1449 = vmul.f32 %v1446, %v1448
        %v1450 = vsub.f32 1.0, %v1449
        %v1451 = vmul.f32 %v1448, %v1450
        %v1452 = vadd.f32 %v1448, %v1451
        %vm1453 = vweird.f32 %v1446
        %vm1454 = vweird.f32 %v1448
        %vm1455 = vmor %vm1453, %vm1454
        %v1456 = vsel %vm1455, %v1448, %v1452
        %v1457 = vand.u32 2147483647, %v1446
        %vm1458 = vcmp.eq.f32.partialorder %v1457, 8.507059e+37
        %v1459 = vand.u32 %v1446, 2147483648
        %v1460 = vor.u32 1.1754944e-38, %v1459
        %v1461 = vsel %vm1458, %v1460, %v1456
        %v1462 = vmul.f32 1.0, %v1461
        %v1463 = vrcp.pop %v1447
        %v1464 = vmul.f32 %v1447, %v1463
        %v1465 = vsub.f32 1.0, %v1464
        %v1466 = vmul.f32 %v1463, %v1465
        %v1467 = vadd.f32 %v1463, %v1466
        %vm1468 = vweird.f32 %v1447
        %vm1469 = vweird.f32 %v1463
        %vm1470 = vmor %vm1468, %vm1469
        %v1471 = vsel %vm1470, %v1463, %v1467
        %v1472 = vand.u32 2147483647, %v1447
        %vm1473 = vcmp.eq.f32.partialorder %v1472, 8.507059e+37
        %v1474 = vand.u32 %v1447, 2147483648
        %v1475 = vor.u32 1.1754944e-38, %v1474
        %v1476 = vsel %vm1473, %v1475, %v1471
        %v1477 = vmul.f32 1.0, %v1476
        %v1478 = vxor.u32 %v1433, 2147483648
        %v1479 = vxor.u32 %v1437, 2147483648
        %v1480 = vmul.f32 %v1478, 1.442695
        %v1481 = vpow.pop %v1480
        %v1482 = vmul.f32 %v1479, 1.442695
        %v1483 = vpow.pop %v1482
        %v1484 = vadd.f32 %v1481, 1.0
        %v1485 = vadd.f32 %v1483, 1.0
        %v1486 = vrcp.pop %v1484
        %v1487 = vmul.f32 %v1484, %v1486
        %v1488 = vsub.f32 1.0, %v1487
        %v1489 = vmul.f32 %v1486, %v1488
        %v1490 = vadd.f32 %v1486, %v1489
        %vm1491 = vweird.f32 %v1484
        %vm1492 = vweird.f32 %v1486
        %vm1493 = vmor %vm1491, %vm1492
        %v1494 = vsel %vm1493, %v1486, %v1490
        %v1495 = vand.u32 2147483647, %v1484
        %vm1496 = vcmp.eq.f32.partialorder %v1495, 8.507059e+37
        %v1497 = vand.u32 %v1484, 2147483648
        %v1498 = vor.u32 1.1754944e-38, %v1497
        %v1499 = vsel %vm1496, %v1498, %v1494
        %v1500 = vmul.f32 1.0, %v1499
        %v1501 = vrcp.pop %v1485
        %v1502 = vmul.f32 %v1485, %v1501
        %v1503 = vsub.f32 1.0, %v1502
        %v1504 = vmul.f32 %v1501, %v1503
        %v1505 = vadd.f32 %v1501, %v1504
        %vm1506 = vweird.f32 %v1485
        %vm1507 = vweird.f32 %v1501
        %vm1508 = vmor %vm1506, %vm1507
        %v1509 = vsel %vm1508, %v1501, %v1505
        %v1510 = vand.u32 2147483647, %v1485
        %vm1511 = vcmp.eq.f32.partialorder %v1510, 8.507059e+37
        %v1512 = vand.u32 %v1485, 2147483648
        %v1513 = vor.u32 1.1754944e-38, %v1512
        %v1514 = vsel %vm1511, %v1513, %v1509
        %v1515 = vmul.f32 1.0, %v1514
        %v1516 = vtanh.pop %v1434
        %v1517 = vtanh.pop %v1438
        %v1518 = vxor.u32 %v1435, 2147483648
        %v1519 = vxor.u32 %v1439, 2147483648
        %v1520 = vmul.f32 %v1518, 1.442695
        %v1521 = vpow.pop %v1520
        %v1522 = vmul.f32 %v1519, 1.442695
        %v1523 = vpow.pop %v1522
        %v1524 = vadd.f32 %v1521, 1.0
        %v1525 = vadd.f32 %v1523, 1.0
        %v1526 = vrcp.pop %v1524
        %v1527 = vmul.f32 %v1524, %v1526
        %v1528 = vsub.f32 1.0, %v1527
        %v1529 = vmul.f32 %v1526, %v1528
        %v1530 = vadd.f32 %v1526, %v1529
        %vm1531 = vweird.f32 %v1524
        %vm1532 = vweird.f32 %v1526
        %vm1533 = vmor %vm1531, %vm1532
        %v1534 = vsel %vm1533, %v1526, %v1530
        %v1535 = vand.u32 2147483647, %v1524
        %vm1536 = vcmp.eq.f32.partialorder %v1535, 8.507059e+37
        %v1537 = vand.u32 %v1524, 2147483648
        %v1538 = vor.u32 1.1754944e-38, %v1537
        %v1539 = vsel %vm1536, %v1538, %v1534
        %v1540 = vmul.f32 1.0, %v1539
        %v1541 = vrcp.pop %v1525
        %v1542 = vmul.f32 %v1525, %v1541
        %v1543 = vsub.f32 1.0, %v1542
        %v1544 = vmul.f32 %v1541, %v1543
        %v1545 = vadd.f32 %v1541, %v1544
        %vm1546 = vweird.f32 %v1525
        %vm1547 = vweird.f32 %v1541
        %vm1548 = vmor %vm1546, %vm1547
        %v1549 = vsel %vm1548, %v1541, %v1545
        %v1550 = vand.u32 2147483647, %v1525
        %vm1551 = vcmp.eq.f32.partialorder %v1550, 8.507059e+37
        %v1552 = vand.u32 %v1525, 2147483648
        %v1553 = vor.u32 1.1754944e-38, %v1552
        %v1554 = vsel %vm1551, %v1553, %v1549
        %v1555 = vmul.f32 1.0, %v1554
        %v1556 = vmul.f32 %v1500, %v1345
        %v1557 = vmul.f32 %v1515, %v1346
        %v1558 = vmul.f32 %v1462, %v1516
        %v1559 = vmul.f32 %v1477, %v1517
        %v1560 = vadd.f32 %v1556, %v1558
        %v1561 = vadd.f32 %v1557, %v1559
        %v1562 = vtanh.pop %v1560
        %v1563 = vtanh.pop %v1561
        %v1564 = vmul.f32 %v1540, %v1562
        %v1565 = vmul.f32 %v1555, %v1563
        %v1566 = vsel %vm1359, 1, 0
        %v1567 = vsel %vm1360, 1, 0
        %vm1568 = vcmp.eq.s32.totalorder %v1566, 1
        %vm1569 = vcmp.eq.s32.totalorder %v1567, 1
        %v1570 = vsel %vm1568, %v1564, %v1343
        %v1571 = vsel %vm1569, %v1565, %v1344
        %v1572 = vsel %vm1568, %v1560, %v1345
        %v1573 = vsel %vm1569, %v1561, %v1346
        %v1574 = vpack.c.bf16 %v1570, %v1570
        %v1575 = vpack.c.bf16 %v1571, %v1571
        %s1576 = scalar_lea.vmem [#allocation5], 8
        %1577 = vst [vmem:[%s1576] sm:$0xf] %v1574
        %1578 = vst [vmem:[%s1576 + $0x4] sm:$0xf] %v1575
        %v1579 = vcvt.s32.f32 %v1566
        %v1580 = vcvt.s32.f32 %v1567
        %s1581 = scalar_lea.vmem [#allocation6], 16
        %1582 = vst.msk [vmem:[%s1581] sm:$0xff] %vm1353, %v1579
        %1583 = vst.msk [vmem:[%s1581 + $0x8] sm:$0xff] %vm1353, %v1580
        %s1584 = sadd.s32 %s976, 2
        %s1585 = sld [smem:[#allocation8 + %s1584]]
        %v1586 = vstv %s1585
        %vm1587 = vcmp.lt.s32.totalorder %v411, %v1586
        %vm1588 = vcmp.lt.s32.totalorder %v412, %v1586
        %s1589 = scalar_lea.vmem [#allocation4], 128
        %v1590 = vld [vmem:[%s1589] sm:$0xff]
        %v1591 = vld [vmem:[%s1589 + $0x8] sm:$0xff]
        %v1592 = vld [vmem:[%s1589 + $0x10] sm:$0xff]
        %v1593 = vld [vmem:[%s1589 + $0x18] sm:$0xff]
        %v1594 = vld [vmem:[%s1589 + $0x20] sm:$0xff]
        %v1595 = vld [vmem:[%s1589 + $0x28] sm:$0xff]
        %v1596 = vld [vmem:[%s1589 + $0x30] sm:$0xff]
        %v1597 = vld [vmem:[%s1589 + $0x38] sm:$0xff]
        %v1600 = vunpack.c.l.b16 %v1574
        %v1601 = vunpack.c.l.b16 %v1575
        %v1602 = vpack.c.b16 %v1601, %v1600
        %1604 = vmatpush.bf16.msra.mxu0 %v1113
        %1605 = vmatpush.bf16.msra.mxu0 %v1109
        %1606 = vmatpush.bf16.msra.mxu0 %v1105
        %1607 = vmatpush.bf16.msra.mxu0 %v1101
        %1608 = vmatpush.bf16.msra.mxu0 %v1097
        %1609 = vmatpush.bf16.msra.mxu0 %v1093
        %1610 = vmatpush.bf16.msra.mxu0 %v1089
        %1611 = vmatpush.bf16.msra.mxu0 %v1085
        %1612 = vmatmul.bf16.gmra.mxu0 %v1602
        %v1613 = vpop.f32.mrf.mxu0
        %v1614 = vadd.f32 0.0, %v1613
        %v1615 = vpop.f32.mrf.mxu0
        %v1616 = vadd.f32 0.0, %v1615
        %1617 = vdwg.mxu0
        %1618 = vmatpush.bf16.msra.mxu0 %v1114
        %1619 = vmatpush.bf16.msra.mxu0 %v1110
        %1620 = vmatpush.bf16.msra.mxu0 %v1106
        %1621 = vmatpush.bf16.msra.mxu0 %v1102
        %1622 = vmatpush.bf16.msra.mxu0 %v1098
        %1623 = vmatpush.bf16.msra.mxu0 %v1094
        %1624 = vmatpush.bf16.msra.mxu0 %v1090
        %1625 = vmatpush.bf16.msra.mxu0 %v1086
        %1626 = vmatmul.bf16.gmra.mxu0 %v1602
        %v1627 = vpop.f32.mrf.mxu0
        %v1628 = vadd.f32 0.0, %v1627
        %v1629 = vpop.f32.mrf.mxu0
        %v1630 = vadd.f32 0.0, %v1629
        %1631 = vdwg.mxu0
        %1632 = vmatpush.bf16.msra.mxu0 %v1115
        %1633 = vmatpush.bf16.msra.mxu0 %v1111
        %1634 = vmatpush.bf16.msra.mxu0 %v1107
        %1635 = vmatpush.bf16.msra.mxu0 %v1103
        %1636 = vmatpush.bf16.msra.mxu0 %v1099
        %1637 = vmatpush.bf16.msra.mxu0 %v1095
        %1638 = vmatpush.bf16.msra.mxu0 %v1091
        %1639 = vmatpush.bf16.msra.mxu0 %v1087
        %1640 = vmatmul.bf16.gmra.mxu0 %v1602
        %v1641 = vpop.f32.mrf.mxu0
        %v1642 = vadd.f32 0.0, %v1641
        %v1643 = vpop.f32.mrf.mxu0
        %v1644 = vadd.f32 0.0, %v1643
        %1645 = vdwg.mxu0
        %1646 = vmatpush.bf16.msra.mxu0 %v1116
        %1647 = vmatpush.bf16.msra.mxu0 %v1112
        %1648 = vmatpush.bf16.msra.mxu0 %v1108
        %1649 = vmatpush.bf16.msra.mxu0 %v1104
        %1650 = vmatpush.bf16.msra.mxu0 %v1100
        %1651 = vmatpush.bf16.msra.mxu0 %v1096
        %1652 = vmatpush.bf16.msra.mxu0 %v1092
        %1653 = vmatpush.bf16.msra.mxu0 %v1088
        %1654 = vmatmul.bf16.gmra.mxu0 %v1602
        %v1655 = vpop.f32.mrf.mxu0
        %v1656 = vadd.f32 0.0, %v1655
        %v1657 = vpop.f32.mrf.mxu0
        %v1658 = vadd.f32 0.0, %v1657
        %1659 = vdwg.mxu0
        %v1660 = vadd.f32 %v1590, %v1614
        %v1661 = vadd.f32 %v1591, %v1628
        %v1662 = vadd.f32 %v1592, %v1642
        %v1663 = vadd.f32 %v1593, %v1656
        %v1664 = vadd.f32 %v1594, %v1616
        %v1665 = vadd.f32 %v1595, %v1630
        %v1666 = vadd.f32 %v1596, %v1644
        %v1667 = vadd.f32 %v1597, %v1658
        %v1668 = vxor.u32 %v1660, 2147483648
        %v1669 = vxor.u32 %v1664, 2147483648
        %v1670 = vmul.f32 %v1668, 1.442695
        %v1671 = vpow.pop %v1670
        %v1672 = vmul.f32 %v1669, 1.442695
        %v1673 = vpow.pop %v1672
        %v1674 = vadd.f32 %v1671, 1.0
        %v1675 = vadd.f32 %v1673, 1.0
        %v1676 = vrcp.pop %v1674
        %v1677 = vmul.f32 %v1674, %v1676
        %v1678 = vsub.f32 1.0, %v1677
        %v1679 = vmul.f32 %v1676, %v1678
        %v1680 = vadd.f32 %v1676, %v1679
        %vm1681 = vweird.f32 %v1674
        %vm1682 = vweird.f32 %v1676
        %vm1683 = vmor %vm1681, %vm1682
        %v1684 = vsel %vm1683, %v1676, %v1680
        %v1685 = vand.u32 2147483647, %v1674
        %vm1686 = vcmp.eq.f32.partialorder %v1685, 8.507059e+37
        %v1687 = vand.u32 %v1674, 2147483648
        %v1688 = vor.u32 1.1754944e-38, %v1687
        %v1689 = vsel %vm1686, %v1688, %v1684
        %v1690 = vmul.f32 1.0, %v1689
        %v1691 = vrcp.pop %v1675
        %v1692 = vmul.f32 %v1675, %v1691
        %v1693 = vsub.f32 1.0, %v1692
        %v1694 = vmul.f32 %v1691, %v1693
        %v1695 = vadd.f32 %v1691, %v1694
        %vm1696 = vweird.f32 %v1675
        %vm1697 = vweird.f32 %v1691
        %vm1698 = vmor %vm1696, %vm1697
        %v1699 = vsel %vm1698, %v1691, %v1695
        %v1700 = vand.u32 2147483647, %v1675
        %vm1701 = vcmp.eq.f32.partialorder %v1700, 8.507059e+37
        %v1702 = vand.u32 %v1675, 2147483648
        %v1703 = vor.u32 1.1754944e-38, %v1702
        %v1704 = vsel %vm1701, %v1703, %v1699
        %v1705 = vmul.f32 1.0, %v1704
        %v1706 = vxor.u32 %v1661, 2147483648
        %v1707 = vxor.u32 %v1665, 2147483648
        %v1708 = vmul.f32 %v1706, 1.442695
        %v1709 = vpow.pop %v1708
        %v1710 = vmul.f32 %v1707, 1.442695
        %v1711 = vpow.pop %v1710
        %v1712 = vadd.f32 %v1709, 1.0
        %v1713 = vadd.f32 %v1711, 1.0
        %v1714 = vrcp.pop %v1712
        %v1715 = vmul.f32 %v1712, %v1714
        %v1716 = vsub.f32 1.0, %v1715
        %v1717 = vmul.f32 %v1714, %v1716
        %v1718 = vadd.f32 %v1714, %v1717
        %vm1719 = vweird.f32 %v1712
        %vm1720 = vweird.f32 %v1714
        %vm1721 = vmor %vm1719, %vm1720
        %v1722 = vsel %vm1721, %v1714, %v1718
        %v1723 = vand.u32 2147483647, %v1712
        %vm1724 = vcmp.eq.f32.partialorder %v1723, 8.507059e+37
        %v1725 = vand.u32 %v1712, 2147483648
        %v1726 = vor.u32 1.1754944e-38, %v1725
        %v1727 = vsel %vm1724, %v1726, %v1722
        %v1728 = vmul.f32 1.0, %v1727
        %v1729 = vrcp.pop %v1713
        %v1730 = vmul.f32 %v1713, %v1729
        %v1731 = vsub.f32 1.0, %v1730
        %v1732 = vmul.f32 %v1729, %v1731
        %v1733 = vadd.f32 %v1729, %v1732
        %vm1734 = vweird.f32 %v1713
        %vm1735 = vweird.f32 %v1729
        %vm1736 = vmor %vm1734, %vm1735
        %v1737 = vsel %vm1736, %v1729, %v1733
        %v1738 = vand.u32 2147483647, %v1713
        %vm1739 = vcmp.eq.f32.partialorder %v1738, 8.507059e+37
        %v1740 = vand.u32 %v1713, 2147483648
        %v1741 = vor.u32 1.1754944e-38, %v1740
        %v1742 = vsel %vm1739, %v1741, %v1737
        %v1743 = vmul.f32 1.0, %v1742
        %v1744 = vtanh.pop %v1662
        %v1745 = vtanh.pop %v1666
        %v1746 = vxor.u32 %v1663, 2147483648
        %v1747 = vxor.u32 %v1667, 2147483648
        %v1748 = vmul.f32 %v1746, 1.442695
        %v1749 = vpow.pop %v1748
        %v1750 = vmul.f32 %v1747, 1.442695
        %v1751 = vpow.pop %v1750
        %v1752 = vadd.f32 %v1749, 1.0
        %v1753 = vadd.f32 %v1751, 1.0
        %v1754 = vrcp.pop %v1752
        %v1755 = vmul.f32 %v1752, %v1754
        %v1756 = vsub.f32 1.0, %v1755
        %v1757 = vmul.f32 %v1754, %v1756
        %v1758 = vadd.f32 %v1754, %v1757
        %vm1759 = vweird.f32 %v1752
        %vm1760 = vweird.f32 %v1754
        %vm1761 = vmor %vm1759, %vm1760
        %v1762 = vsel %vm1761, %v1754, %v1758
        %v1763 = vand.u32 2147483647, %v1752
        %vm1764 = vcmp.eq.f32.partialorder %v1763, 8.507059e+37
        %v1765 = vand.u32 %v1752, 2147483648
        %v1766 = vor.u32 1.1754944e-38, %v1765
        %v1767 = vsel %vm1764, %v1766, %v1762
        %v1768 = vmul.f32 1.0, %v1767
        %v1769 = vrcp.pop %v1753
        %v1770 = vmul.f32 %v1753, %v1769
        %v1771 = vsub.f32 1.0, %v1770
        %v1772 = vmul.f32 %v1769, %v1771
        %v1773 = vadd.f32 %v1769, %v1772
        %vm1774 = vweird.f32 %v1753
        %vm1775 = vweird.f32 %v1769
        %vm1776 = vmor %vm1774, %vm1775
        %v1777 = vsel %vm1776, %v1769, %v1773
        %v1778 = vand.u32 2147483647, %v1753
        %vm1779 = vcmp.eq.f32.partialorder %v1778, 8.507059e+37
        %v1780 = vand.u32 %v1753, 2147483648
        %v1781 = vor.u32 1.1754944e-38, %v1780
        %v1782 = vsel %vm1779, %v1781, %v1777
        %v1783 = vmul.f32 1.0, %v1782
        %v1784 = vmul.f32 %v1728, %v1572
        %v1785 = vmul.f32 %v1743, %v1573
        %v1786 = vmul.f32 %v1690, %v1744
        %v1787 = vmul.f32 %v1705, %v1745
        %v1788 = vadd.f32 %v1784, %v1786
        %v1789 = vadd.f32 %v1785, %v1787
        %v1790 = vtanh.pop %v1788
        %v1791 = vtanh.pop %v1789
        %v1792 = vmul.f32 %v1768, %v1790
        %v1793 = vmul.f32 %v1783, %v1791
        %v1794 = vsel %vm1587, 1, 0
        %v1795 = vsel %vm1588, 1, 0
        %vm1796 = vcmp.eq.s32.totalorder %v1794, 1
        %vm1797 = vcmp.eq.s32.totalorder %v1795, 1
        %v1798 = vsel %vm1796, %v1792, %v1570
        %v1799 = vsel %vm1797, %v1793, %v1571
        %v1800 = vsel %vm1796, %v1788, %v1572
        %v1801 = vsel %vm1797, %v1789, %v1573
        %v1802 = vpack.c.bf16 %v1798, %v1798
        %v1803 = vpack.c.bf16 %v1799, %v1799
        %s1804 = scalar_lea.vmem [#allocation5], 16
        %1805 = vst [vmem:[%s1804] sm:$0xf] %v1802
        %1806 = vst [vmem:[%s1804 + $0x4] sm:$0xf] %v1803
        %v1807 = vcvt.s32.f32 %v1794
        %v1808 = vcvt.s32.f32 %v1795
        %s1809 = scalar_lea.vmem [#allocation6], 32
        %1810 = vst.msk [vmem:[%s1809] sm:$0xff] %vm1353, %v1807
        %1811 = vst.msk [vmem:[%s1809 + $0x8] sm:$0xff] %vm1353, %v1808
        %s1812 = sadd.s32 %s976, 3
        %s1813 = sld [smem:[#allocation8 + %s1812]]
        %v1814 = vstv %s1813
        %vm1815 = vcmp.lt.s32.totalorder %v411, %v1814
        %vm1816 = vcmp.lt.s32.totalorder %v412, %v1814
        %s1817 = scalar_lea.vmem [#allocation4], 192
        %v1818 = vld [vmem:[%s1817] sm:$0xff]
        %v1819 = vld [vmem:[%s1817 + $0x8] sm:$0xff]
        %v1820 = vld [vmem:[%s1817 + $0x10] sm:$0xff]
        %v1821 = vld [vmem:[%s1817 + $0x18] sm:$0xff]
        %v1822 = vld [vmem:[%s1817 + $0x20] sm:$0xff]
        %v1823 = vld [vmem:[%s1817 + $0x28] sm:$0xff]
        %v1824 = vld [vmem:[%s1817 + $0x30] sm:$0xff]
        %v1825 = vld [vmem:[%s1817 + $0x38] sm:$0xff]
        %v1828 = vunpack.c.l.b16 %v1802
        %v1829 = vunpack.c.l.b16 %v1803
        %v1830 = vpack.c.b16 %v1829, %v1828
        %1832 = vmatpush.bf16.msra.mxu0 %v1113
        %1833 = vmatpush.bf16.msra.mxu0 %v1109
        %1834 = vmatpush.bf16.msra.mxu0 %v1105
        %1835 = vmatpush.bf16.msra.mxu0 %v1101
        %1836 = vmatpush.bf16.msra.mxu0 %v1097
        %1837 = vmatpush.bf16.msra.mxu0 %v1093
        %1838 = vmatpush.bf16.msra.mxu0 %v1089
        %1839 = vmatpush.bf16.msra.mxu0 %v1085
        %1840 = vmatmul.bf16.gmra.mxu0 %v1830
        %v1841 = vpop.f32.mrf.mxu0
        %v1842 = vadd.f32 0.0, %v1841
        %v1843 = vpop.f32.mrf.mxu0
        %v1844 = vadd.f32 0.0, %v1843
        %1845 = vdwg.mxu0
        %1846 = vmatpush.bf16.msra.mxu0 %v1114
        %1847 = vmatpush.bf16.msra.mxu0 %v1110
        %1848 = vmatpush.bf16.msra.mxu0 %v1106
        %1849 = vmatpush.bf16.msra.mxu0 %v1102
        %1850 = vmatpush.bf16.msra.mxu0 %v1098
        %1851 = vmatpush.bf16.msra.mxu0 %v1094
        %1852 = vmatpush.bf16.msra.mxu0 %v1090
        %1853 = vmatpush.bf16.msra.mxu0 %v1086
        %1854 = vmatmul.bf16.gmra.mxu0 %v1830
        %v1855 = vpop.f32.mrf.mxu0
        %v1856 = vadd.f32 0.0, %v1855
        %v1857 = vpop.f32.mrf.mxu0
        %v1858 = vadd.f32 0.0, %v1857
        %1859 = vdwg.mxu0
        %1860 = vmatpush.bf16.msra.mxu0 %v1115
        %1861 = vmatpush.bf16.msra.mxu0 %v1111
        %1862 = vmatpush.bf16.msra.mxu0 %v1107
        %1863 = vmatpush.bf16.msra.mxu0 %v1103
        %1864 = vmatpush.bf16.msra.mxu0 %v1099
        %1865 = vmatpush.bf16.msra.mxu0 %v1095
        %1866 = vmatpush.bf16.msra.mxu0 %v1091
        %1867 = vmatpush.bf16.msra.mxu0 %v1087
        %1868 = vmatmul.bf16.gmra.mxu0 %v1830
        %v1869 = vpop.f32.mrf.mxu0
        %v1870 = vadd.f32 0.0, %v1869
        %v1871 = vpop.f32.mrf.mxu0
        %v1872 = vadd.f32 0.0, %v1871
        %1873 = vdwg.mxu0
        %1874 = vmatpush.bf16.msra.mxu0 %v1116
        %1875 = vmatpush.bf16.msra.mxu0 %v1112
        %1876 = vmatpush.bf16.msra.mxu0 %v1108
        %1877 = vmatpush.bf16.msra.mxu0 %v1104
        %1878 = vmatpush.bf16.msra.mxu0 %v1100
        %1879 = vmatpush.bf16.msra.mxu0 %v1096
        %1880 = vmatpush.bf16.msra.mxu0 %v1092
        %1881 = vmatpush.bf16.msra.mxu0 %v1088
        %1882 = vmatmul.bf16.gmra.mxu0 %v1830
        %v1883 = vpop.f32.mrf.mxu0
        %v1884 = vadd.f32 0.0, %v1883
        %v1885 = vpop.f32.mrf.mxu0
        %v1886 = vadd.f32 0.0, %v1885
        %1887 = vdwg.mxu0
        %v1888 = vadd.f32 %v1818, %v1842
        %v1889 = vadd.f32 %v1819, %v1856
        %v1890 = vadd.f32 %v1820, %v1870
        %v1891 = vadd.f32 %v1821, %v1884
        %v1892 = vadd.f32 %v1822, %v1844
        %v1893 = vadd.f32 %v1823, %v1858
        %v1894 = vadd.f32 %v1824, %v1872
        %v1895 = vadd.f32 %v1825, %v1886
        %v1896 = vxor.u32 %v1888, 2147483648
        %v1897 = vxor.u32 %v1892, 2147483648
        %v1898 = vmul.f32 %v1896, 1.442695
        %v1899 = vpow.pop %v1898
        %v1900 = vmul.f32 %v1897, 1.442695
        %v1901 = vpow.pop %v1900
        %v1902 = vadd.f32 %v1899, 1.0
        %v1903 = vadd.f32 %v1901, 1.0
        %v1904 = vrcp.pop %v1902
        %v1905 = vmul.f32 %v1902, %v1904
        %v1906 = vsub.f32 1.0, %v1905
        %v1907 = vmul.f32 %v1904, %v1906
        %v1908 = vadd.f32 %v1904, %v1907
        %vm1909 = vweird.f32 %v1902
        %vm1910 = vweird.f32 %v1904
        %vm1911 = vmor %vm1909, %vm1910
        %v1912 = vsel %vm1911, %v1904, %v1908
        %v1913 = vand.u32 2147483647, %v1902
        %vm1914 = vcmp.eq.f32.partialorder %v1913, 8.507059e+37
        %v1915 = vand.u32 %v1902, 2147483648
        %v1916 = vor.u32 1.1754944e-38, %v1915
        %v1917 = vsel %vm1914, %v1916, %v1912
        %v1918 = vmul.f32 1.0, %v1917
        %v1919 = vrcp.pop %v1903
        %v1920 = vmul.f32 %v1903, %v1919
        %v1921 = vsub.f32 1.0, %v1920
        %v1922 = vmul.f32 %v1919, %v1921
        %v1923 = vadd.f32 %v1919, %v1922
        %vm1924 = vweird.f32 %v1903
        %vm1925 = vweird.f32 %v1919
        %vm1926 = vmor %vm1924, %vm1925
        %v1927 = vsel %vm1926, %v1919, %v1923
        %v1928 = vand.u32 2147483647, %v1903
        %vm1929 = vcmp.eq.f32.partialorder %v1928, 8.507059e+37
        %v1930 = vand.u32 %v1903, 2147483648
        %v1931 = vor.u32 1.1754944e-38, %v1930
        %v1932 = vsel %vm1929, %v1931, %v1927
        %v1933 = vmul.f32 1.0, %v1932
        %v1934 = vxor.u32 %v1889, 2147483648
        %v1935 = vxor.u32 %v1893, 2147483648
        %v1936 = vmul.f32 %v1934, 1.442695
        %v1937 = vpow.pop %v1936
        %v1938 = vmul.f32 %v1935, 1.442695
        %v1939 = vpow.pop %v1938
        %v1940 = vadd.f32 %v1937, 1.0
        %v1941 = vadd.f32 %v1939, 1.0
        %v1942 = vrcp.pop %v1940
        %v1943 = vmul.f32 %v1940, %v1942
        %v1944 = vsub.f32 1.0, %v1943
        %v1945 = vmul.f32 %v1942, %v1944
        %v1946 = vadd.f32 %v1942, %v1945
        %vm1947 = vweird.f32 %v1940
        %vm1948 = vweird.f32 %v1942
        %vm1949 = vmor %vm1947, %vm1948
        %v1950 = vsel %vm1949, %v1942, %v1946
        %v1951 = vand.u32 2147483647, %v1940
        %vm1952 = vcmp.eq.f32.partialorder %v1951, 8.507059e+37
        %v1953 = vand.u32 %v1940, 2147483648
        %v1954 = vor.u32 1.1754944e-38, %v1953
        %v1955 = vsel %vm1952, %v1954, %v1950
        %v1956 = vmul.f32 1.0, %v1955
        %v1957 = vrcp.pop %v1941
        %v1958 = vmul.f32 %v1941, %v1957
        %v1959 = vsub.f32 1.0, %v1958
        %v1960 = vmul.f32 %v1957, %v1959
        %v1961 = vadd.f32 %v1957, %v1960
        %vm1962 = vweird.f32 %v1941
        %vm1963 = vweird.f32 %v1957
        %vm1964 = vmor %vm1962, %vm1963
        %v1965 = vsel %vm1964, %v1957, %v1961
        %v1966 = vand.u32 2147483647, %v1941
        %vm1967 = vcmp.eq.f32.partialorder %v1966, 8.507059e+37
        %v1968 = vand.u32 %v1941, 2147483648
        %v1969 = vor.u32 1.1754944e-38, %v1968
        %v1970 = vsel %vm1967, %v1969, %v1965
        %v1971 = vmul.f32 1.0, %v1970
        %v1972 = vtanh.pop %v1890
        %v1973 = vtanh.pop %v1894
        %v1974 = vxor.u32 %v1891, 2147483648
        %v1975 = vxor.u32 %v1895, 2147483648
        %v1976 = vmul.f32 %v1974, 1.442695
        %v1977 = vpow.pop %v1976
        %v1978 = vmul.f32 %v1975, 1.442695
        %v1979 = vpow.pop %v1978
        %v1980 = vadd.f32 %v1977, 1.0
        %v1981 = vadd.f32 %v1979, 1.0
        %v1982 = vrcp.pop %v1980
        %v1983 = vmul.f32 %v1980, %v1982
        %v1984 = vsub.f32 1.0, %v1983
        %v1985 = vmul.f32 %v1982, %v1984
        %v1986 = vadd.f32 %v1982, %v1985
        %vm1987 = vweird.f32 %v1980
        %vm1988 = vweird.f32 %v1982
        %vm1989 = vmor %vm1987, %vm1988
        %v1990 = vsel %vm1989, %v1982, %v1986
        %v1991 = vand.u32 2147483647, %v1980
        %vm1992 = vcmp.eq.f32.partialorder %v1991, 8.507059e+37
        %v1993 = vand.u32 %v1980, 2147483648
        %v1994 = vor.u32 1.1754944e-38, %v1993
        %v1995 = vsel %vm1992, %v1994, %v1990
        %v1996 = vmul.f32 1.0, %v1995
        %v1997 = vrcp.pop %v1981
        %v1998 = vmul.f32 %v1981, %v1997
        %v1999 = vsub.f32 1.0, %v1998
        %v2000 = vmul.f32 %v1997, %v1999
        %v2001 = vadd.f32 %v1997, %v2000
        %vm2002 = vweird.f32 %v1981
        %vm2003 = vweird.f32 %v1997
        %vm2004 = vmor %vm2002, %vm2003
        %v2005 = vsel %vm2004, %v1997, %v2001
        %v2006 = vand.u32 2147483647, %v1981
        %vm2007 = vcmp.eq.f32.partialorder %v2006, 8.507059e+37
        %v2008 = vand.u32 %v1981, 2147483648
        %v2009 = vor.u32 1.1754944e-38, %v2008
        %v2010 = vsel %vm2007, %v2009, %v2005
        %v2011 = vmul.f32 1.0, %v2010
        %v2012 = vmul.f32 %v1956, %v1800
        %v2013 = vmul.f32 %v1971, %v1801
        %v2014 = vmul.f32 %v1918, %v1972
        %v2015 = vmul.f32 %v1933, %v1973
        %v2016 = vadd.f32 %v2012, %v2014
        %v2017 = vadd.f32 %v2013, %v2015
        %v2018 = vtanh.pop %v2016
        %v2019 = vtanh.pop %v2017
        %v2020 = vmul.f32 %v1996, %v2018
        %v2021 = vmul.f32 %v2011, %v2019
        %v2022 = vsel %vm1815, 1, 0
        %v2023 = vsel %vm1816, 1, 0
        %vm2024 = vcmp.eq.s32.totalorder %v2022, 1
        %vm2025 = vcmp.eq.s32.totalorder %v2023, 1
        %v2026 = vsel %vm2024, %v2020, %v1798
        %v2027 = vsel %vm2025, %v2021, %v1799
        %v2028 = vsel %vm2024, %v2016, %v1800
        %v2029 = vsel %vm2025, %v2017, %v1801
        %v2030 = vpack.c.bf16 %v2026, %v2026
        %v2031 = vpack.c.bf16 %v2027, %v2027
        %s2032 = scalar_lea.vmem [#allocation5], 24
        %2033 = vst [vmem:[%s2032] sm:$0xf] %v2030
        %2034 = vst [vmem:[%s2032 + $0x4] sm:$0xf] %v2031
        %v2035 = vcvt.s32.f32 %v2022
        %v2036 = vcvt.s32.f32 %v2023
        %s2037 = scalar_lea.vmem [#allocation6], 48
        %2038 = vst.msk [vmem:[%s2037] sm:$0xff] %vm1353, %v2035
        %2039 = vst.msk [vmem:[%s2037 + $0x8] sm:$0xff] %vm1353, %v2036
        %s2040 = sadd.s32 %s976, 4
        %s2041 = sld [smem:[#allocation8 + %s2040]]
        %v2042 = vstv %s2041
        %vm2043 = vcmp.lt.s32.totalorder %v411, %v2042
        %vm2044 = vcmp.lt.s32.totalorder %v412, %v2042
        %s2045 = scalar_lea.vmem [#allocation4], 256
        %v2046 = vld [vmem:[%s2045] sm:$0xff]
        %v2047 = vld [vmem:[%s2045 + $0x8] sm:$0xff]
        %v2048 = vld [vmem:[%s2045 + $0x10] sm:$0xff]
        %v2049 = vld [vmem:[%s2045 + $0x18] sm:$0xff]
        %v2050 = vld [vmem:[%s2045 + $0x20] sm:$0xff]
        %v2051 = vld [vmem:[%s2045 + $0x28] sm:$0xff]
        %v2052 = vld [vmem:[%s2045 + $0x30] sm:$0xff]
        %v2053 = vld [vmem:[%s2045 + $0x38] sm:$0xff]
        %v2056 = vunpack.c.l.b16 %v2030
        %v2057 = vunpack.c.l.b16 %v2031
        %v2058 = vpack.c.b16 %v2057, %v2056
        %2060 = vmatpush.bf16.msra.mxu0 %v1113
        %2061 = vmatpush.bf16.msra.mxu0 %v1109
        %2062 = vmatpush.bf16.msra.mxu0 %v1105
        %2063 = vmatpush.bf16.msra.mxu0 %v1101
        %2064 = vmatpush.bf16.msra.mxu0 %v1097
        %2065 = vmatpush.bf16.msra.mxu0 %v1093
        %2066 = vmatpush.bf16.msra.mxu0 %v1089
        %2067 = vmatpush.bf16.msra.mxu0 %v1085
        %2068 = vmatmul.bf16.gmra.mxu0 %v2058
        %v2069 = vpop.f32.mrf.mxu0
        %v2070 = vadd.f32 0.0, %v2069
        %v2071 = vpop.f32.mrf.mxu0
        %v2072 = vadd.f32 0.0, %v2071
        %2073 = vdwg.mxu0
        %2074 = vmatpush.bf16.msra.mxu0 %v1114
        %2075 = vmatpush.bf16.msra.mxu0 %v1110
        %2076 = vmatpush.bf16.msra.mxu0 %v1106
        %2077 = vmatpush.bf16.msra.mxu0 %v1102
        %2078 = vmatpush.bf16.msra.mxu0 %v1098
        %2079 = vmatpush.bf16.msra.mxu0 %v1094
        %2080 = vmatpush.bf16.msra.mxu0 %v1090
        %2081 = vmatpush.bf16.msra.mxu0 %v1086
        %2082 = vmatmul.bf16.gmra.mxu0 %v2058
        %v2083 = vpop.f32.mrf.mxu0
        %v2084 = vadd.f32 0.0, %v2083
        %v2085 = vpop.f32.mrf.mxu0
        %v2086 = vadd.f32 0.0, %v2085
        %2087 = vdwg.mxu0
        %2088 = vmatpush.bf16.msra.mxu0 %v1115
        %2089 = vmatpush.bf16.msra.mxu0 %v1111
        %2090 = vmatpush.bf16.msra.mxu0 %v1107
        %2091 = vmatpush.bf16.msra.mxu0 %v1103
        %2092 = vmatpush.bf16.msra.mxu0 %v1099
        %2093 = vmatpush.bf16.msra.mxu0 %v1095
        %2094 = vmatpush.bf16.msra.mxu0 %v1091
        %2095 = vmatpush.bf16.msra.mxu0 %v1087
        %2096 = vmatmul.bf16.gmra.mxu0 %v2058
        %v2097 = vpop.f32.mrf.mxu0
        %v2098 = vadd.f32 0.0, %v2097
        %v2099 = vpop.f32.mrf.mxu0
        %v2100 = vadd.f32 0.0, %v2099
        %2101 = vdwg.mxu0
        %2102 = vmatpush.bf16.msra.mxu0 %v1116
        %2103 = vmatpush.bf16.msra.mxu0 %v1112
        %2104 = vmatpush.bf16.msra.mxu0 %v1108
        %2105 = vmatpush.bf16.msra.mxu0 %v1104
        %2106 = vmatpush.bf16.msra.mxu0 %v1100
        %2107 = vmatpush.bf16.msra.mxu0 %v1096
        %2108 = vmatpush.bf16.msra.mxu0 %v1092
        %2109 = vmatpush.bf16.msra.mxu0 %v1088
        %2110 = vmatmul.bf16.gmra.mxu0 %v2058
        %v2111 = vpop.f32.mrf.mxu0
        %v2112 = vadd.f32 0.0, %v2111
        %v2113 = vpop.f32.mrf.mxu0
        %v2114 = vadd.f32 0.0, %v2113
        %2115 = vdwg.mxu0
        %v2116 = vadd.f32 %v2046, %v2070
        %v2117 = vadd.f32 %v2047, %v2084
        %v2118 = vadd.f32 %v2048, %v2098
        %v2119 = vadd.f32 %v2049, %v2112
        %v2120 = vadd.f32 %v2050, %v2072
        %v2121 = vadd.f32 %v2051, %v2086
        %v2122 = vadd.f32 %v2052, %v2100
        %v2123 = vadd.f32 %v2053, %v2114
        %v2124 = vxor.u32 %v2116, 2147483648
        %v2125 = vxor.u32 %v2120, 2147483648
        %v2126 = vmul.f32 %v2124, 1.442695
        %v2127 = vpow.pop %v2126
        %v2128 = vmul.f32 %v2125, 1.442695
        %v2129 = vpow.pop %v2128
        %v2130 = vadd.f32 %v2127, 1.0
        %v2131 = vadd.f32 %v2129, 1.0
        %v2132 = vrcp.pop %v2130
        %v2133 = vmul.f32 %v2130, %v2132
        %v2134 = vsub.f32 1.0, %v2133
        %v2135 = vmul.f32 %v2132, %v2134
        %v2136 = vadd.f32 %v2132, %v2135
        %vm2137 = vweird.f32 %v2130
        %vm2138 = vweird.f32 %v2132
        %vm2139 = vmor %vm2137, %vm2138
        %v2140 = vsel %vm2139, %v2132, %v2136
        %v2141 = vand.u32 2147483647, %v2130
        %vm2142 = vcmp.eq.f32.partialorder %v2141, 8.507059e+37
        %v2143 = vand.u32 %v2130, 2147483648
        %v2144 = vor.u32 1.1754944e-38, %v2143
        %v2145 = vsel %vm2142, %v2144, %v2140
        %v2146 = vmul.f32 1.0, %v2145
        %v2147 = vrcp.pop %v2131
        %v2148 = vmul.f32 %v2131, %v2147
        %v2149 = vsub.f32 1.0, %v2148
        %v2150 = vmul.f32 %v2147, %v2149
        %v2151 = vadd.f32 %v2147, %v2150
        %vm2152 = vweird.f32 %v2131
        %vm2153 = vweird.f32 %v2147
        %vm2154 = vmor %vm2152, %vm2153
        %v2155 = vsel %vm2154, %v2147, %v2151
        %v2156 = vand.u32 2147483647, %v2131
        %vm2157 = vcmp.eq.f32.partialorder %v2156, 8.507059e+37
        %v2158 = vand.u32 %v2131, 2147483648
        %v2159 = vor.u32 1.1754944e-38, %v2158
        %v2160 = vsel %vm2157, %v2159, %v2155
        %v2161 = vmul.f32 1.0, %v2160
        %v2162 = vxor.u32 %v2117, 2147483648
        %v2163 = vxor.u32 %v2121, 2147483648
        %v2164 = vmul.f32 %v2162, 1.442695
        %v2165 = vpow.pop %v2164
        %v2166 = vmul.f32 %v2163, 1.442695
        %v2167 = vpow.pop %v2166
        %v2168 = vadd.f32 %v2165, 1.0
        %v2169 = vadd.f32 %v2167, 1.0
        %v2170 = vrcp.pop %v2168
        %v2171 = vmul.f32 %v2168, %v2170
        %v2172 = vsub.f32 1.0, %v2171
        %v2173 = vmul.f32 %v2170, %v2172
        %v2174 = vadd.f32 %v2170, %v2173
        %vm2175 = vweird.f32 %v2168
        %vm2176 = vweird.f32 %v2170
        %vm2177 = vmor %vm2175, %vm2176
        %v2178 = vsel %vm2177, %v2170, %v2174
        %v2179 = vand.u32 2147483647, %v2168
        %vm2180 = vcmp.eq.f32.partialorder %v2179, 8.507059e+37
        %v2181 = vand.u32 %v2168, 2147483648
        %v2182 = vor.u32 1.1754944e-38, %v2181
        %v2183 = vsel %vm2180, %v2182, %v2178
        %v2184 = vmul.f32 1.0, %v2183
        %v2185 = vrcp.pop %v2169
        %v2186 = vmul.f32 %v2169, %v2185
        %v2187 = vsub.f32 1.0, %v2186
        %v2188 = vmul.f32 %v2185, %v2187
        %v2189 = vadd.f32 %v2185, %v2188
        %vm2190 = vweird.f32 %v2169
        %vm2191 = vweird.f32 %v2185
        %vm2192 = vmor %vm2190, %vm2191
        %v2193 = vsel %vm2192, %v2185, %v2189
        %v2194 = vand.u32 2147483647, %v2169
        %vm2195 = vcmp.eq.f32.partialorder %v2194, 8.507059e+37
        %v2196 = vand.u32 %v2169, 2147483648
        %v2197 = vor.u32 1.1754944e-38, %v2196
        %v2198 = vsel %vm2195, %v2197, %v2193
        %v2199 = vmul.f32 1.0, %v2198
        %v2200 = vtanh.pop %v2118
        %v2201 = vtanh.pop %v2122
        %v2202 = vxor.u32 %v2119, 2147483648
        %v2203 = vxor.u32 %v2123, 2147483648
        %v2204 = vmul.f32 %v2202, 1.442695
        %v2205 = vpow.pop %v2204
        %v2206 = vmul.f32 %v2203, 1.442695
        %v2207 = vpow.pop %v2206
        %v2208 = vadd.f32 %v2205, 1.0
        %v2209 = vadd.f32 %v2207, 1.0
        %v2210 = vrcp.pop %v2208
        %v2211 = vmul.f32 %v2208, %v2210
        %v2212 = vsub.f32 1.0, %v2211
        %v2213 = vmul.f32 %v2210, %v2212
        %v2214 = vadd.f32 %v2210, %v2213
        %vm2215 = vweird.f32 %v2208
        %vm2216 = vweird.f32 %v2210
        %vm2217 = vmor %vm2215, %vm2216
        %v2218 = vsel %vm2217, %v2210, %v2214
        %v2219 = vand.u32 2147483647, %v2208
        %vm2220 = vcmp.eq.f32.partialorder %v2219, 8.507059e+37
        %v2221 = vand.u32 %v2208, 2147483648
        %v2222 = vor.u32 1.1754944e-38, %v2221
        %v2223 = vsel %vm2220, %v2222, %v2218
        %v2224 = vmul.f32 1.0, %v2223
        %v2225 = vrcp.pop %v2209
        %v2226 = vmul.f32 %v2209, %v2225
        %v2227 = vsub.f32 1.0, %v2226
        %v2228 = vmul.f32 %v2225, %v2227
        %v2229 = vadd.f32 %v2225, %v2228
        %vm2230 = vweird.f32 %v2209
        %vm2231 = vweird.f32 %v2225
        %vm2232 = vmor %vm2230, %vm2231
        %v2233 = vsel %vm2232, %v2225, %v2229
        %v2234 = vand.u32 2147483647, %v2209
        %vm2235 = vcmp.eq.f32.partialorder %v2234, 8.507059e+37
        %v2236 = vand.u32 %v2209, 2147483648
        %v2237 = vor.u32 1.1754944e-38, %v2236
        %v2238 = vsel %vm2235, %v2237, %v2233
        %v2239 = vmul.f32 1.0, %v2238
        %v2240 = vmul.f32 %v2184, %v2028
        %v2241 = vmul.f32 %v2199, %v2029
        %v2242 = vmul.f32 %v2146, %v2200
        %v2243 = vmul.f32 %v2161, %v2201
        %v2244 = vadd.f32 %v2240, %v2242
        %v2245 = vadd.f32 %v2241, %v2243
        %v2246 = vtanh.pop %v2244
        %v2247 = vtanh.pop %v2245
        %v2248 = vmul.f32 %v2224, %v2246
        %v2249 = vmul.f32 %v2239, %v2247
        %v2250 = vsel %vm2043, 1, 0
        %v2251 = vsel %vm2044, 1, 0
        %vm2252 = vcmp.eq.s32.totalorder %v2250, 1
        %vm2253 = vcmp.eq.s32.totalorder %v2251, 1
        %v2254 = vsel %vm2252, %v2248, %v2026
        %v2255 = vsel %vm2253, %v2249, %v2027
        %v2256 = vsel %vm2252, %v2244, %v2028
        %v2257 = vsel %vm2253, %v2245, %v2029
        %v2258 = vpack.c.bf16 %v2254, %v2254
        %v2259 = vpack.c.bf16 %v2255, %v2255
        %s2260 = scalar_lea.vmem [#allocation5], 32
        %2261 = vst [vmem:[%s2260] sm:$0xf] %v2258
        %2262 = vst [vmem:[%s2260 + $0x4] sm:$0xf] %v2259
        %v2263 = vcvt.s32.f32 %v2250
        %v2264 = vcvt.s32.f32 %v2251
        %s2265 = scalar_lea.vmem [#allocation6], 64
        %2266 = vst.msk [vmem:[%s2265] sm:$0xff] %vm1353, %v2263
        %2267 = vst.msk [vmem:[%s2265 + $0x8] sm:$0xff] %vm1353, %v2264
        %s2268 = sadd.s32 %s976, 5
        %s2269 = sld [smem:[#allocation8 + %s2268]]
        %v2270 = vstv %s2269
        %vm2271 = vcmp.lt.s32.totalorder %v411, %v2270
        %vm2272 = vcmp.lt.s32.totalorder %v412, %v2270
        %s2273 = scalar_lea.vmem [#allocation4], 320
        %v2274 = vld [vmem:[%s2273] sm:$0xff]
        %v2275 = vld [vmem:[%s2273 + $0x8] sm:$0xff]
        %v2276 = vld [vmem:[%s2273 + $0x10] sm:$0xff]
        %v2277 = vld [vmem:[%s2273 + $0x18] sm:$0xff]
        %v2278 = vld [vmem:[%s2273 + $0x20] sm:$0xff]
        %v2279 = vld [vmem:[%s2273 + $0x28] sm:$0xff]
        %v2280 = vld [vmem:[%s2273 + $0x30] sm:$0xff]
        %v2281 = vld [vmem:[%s2273 + $0x38] sm:$0xff]
        %v2284 = vunpack.c.l.b16 %v2258
        %v2285 = vunpack.c.l.b16 %v2259
        %v2286 = vpack.c.b16 %v2285, %v2284
        %2288 = vmatpush.bf16.msra.mxu0 %v1113
        %2289 = vmatpush.bf16.msra.mxu0 %v1109
        %2290 = vmatpush.bf16.msra.mxu0 %v1105
        %2291 = vmatpush.bf16.msra.mxu0 %v1101
        %2292 = vmatpush.bf16.msra.mxu0 %v1097
        %2293 = vmatpush.bf16.msra.mxu0 %v1093
        %2294 = vmatpush.bf16.msra.mxu0 %v1089
        %2295 = vmatpush.bf16.msra.mxu0 %v1085
        %2296 = vmatmul.bf16.gmra.mxu0 %v2286
        %v2297 = vpop.f32.mrf.mxu0
        %v2298 = vadd.f32 0.0, %v2297
        %v2299 = vpop.f32.mrf.mxu0
        %v2300 = vadd.f32 0.0, %v2299
        %2301 = vdwg.mxu0
        %2302 = vmatpush.bf16.msra.mxu0 %v1114
        %2303 = vmatpush.bf16.msra.mxu0 %v1110
        %2304 = vmatpush.bf16.msra.mxu0 %v1106
        %2305 = vmatpush.bf16.msra.mxu0 %v1102
        %2306 = vmatpush.bf16.msra.mxu0 %v1098
        %2307 = vmatpush.bf16.msra.mxu0 %v1094
        %2308 = vmatpush.bf16.msra.mxu0 %v1090
        %2309 = vmatpush.bf16.msra.mxu0 %v1086
        %2310 = vmatmul.bf16.gmra.mxu0 %v2286
        %v2311 = vpop.f32.mrf.mxu0
        %v2312 = vadd.f32 0.0, %v2311
        %v2313 = vpop.f32.mrf.mxu0
        %v2314 = vadd.f32 0.0, %v2313
        %2315 = vdwg.mxu0
        %2316 = vmatpush.bf16.msra.mxu0 %v1115
        %2317 = vmatpush.bf16.msra.mxu0 %v1111
        %2318 = vmatpush.bf16.msra.mxu0 %v1107
        %2319 = vmatpush.bf16.msra.mxu0 %v1103
        %2320 = vmatpush.bf16.msra.mxu0 %v1099
        %2321 = vmatpush.bf16.msra.mxu0 %v1095
        %2322 = vmatpush.bf16.msra.mxu0 %v1091
        %2323 = vmatpush.bf16.msra.mxu0 %v1087
        %2324 = vmatmul.bf16.gmra.mxu0 %v2286
        %v2325 = vpop.f32.mrf.mxu0
        %v2326 = vadd.f32 0.0, %v2325
        %v2327 = vpop.f32.mrf.mxu0
        %v2328 = vadd.f32 0.0, %v2327
        %2329 = vdwg.mxu0
        %2330 = vmatpush.bf16.msra.mxu0 %v1116
        %2331 = vmatpush.bf16.msra.mxu0 %v1112
        %2332 = vmatpush.bf16.msra.mxu0 %v1108
        %2333 = vmatpush.bf16.msra.mxu0 %v1104
        %2334 = vmatpush.bf16.msra.mxu0 %v1100
        %2335 = vmatpush.bf16.msra.mxu0 %v1096
        %2336 = vmatpush.bf16.msra.mxu0 %v1092
        %2337 = vmatpush.bf16.msra.mxu0 %v1088
        %2338 = vmatmul.bf16.gmra.mxu0 %v2286
        %v2339 = vpop.f32.mrf.mxu0
        %v2340 = vadd.f32 0.0, %v2339
        %v2341 = vpop.f32.mrf.mxu0
        %v2342 = vadd.f32 0.0, %v2341
        %2343 = vdwg.mxu0
        %v2344 = vadd.f32 %v2274, %v2298
        %v2345 = vadd.f32 %v2275, %v2312
        %v2346 = vadd.f32 %v2276, %v2326
        %v2347 = vadd.f32 %v2277, %v2340
        %v2348 = vadd.f32 %v2278, %v2300
        %v2349 = vadd.f32 %v2279, %v2314
        %v2350 = vadd.f32 %v2280, %v2328
        %v2351 = vadd.f32 %v2281, %v2342
        %v2352 = vxor.u32 %v2344, 2147483648
        %v2353 = vxor.u32 %v2348, 2147483648
        %v2354 = vmul.f32 %v2352, 1.442695
        %v2355 = vpow.pop %v2354
        %v2356 = vmul.f32 %v2353, 1.442695
        %v2357 = vpow.pop %v2356
        %v2358 = vadd.f32 %v2355, 1.0
        %v2359 = vadd.f32 %v2357, 1.0
        %v2360 = vrcp.pop %v2358
        %v2361 = vmul.f32 %v2358, %v2360
        %v2362 = vsub.f32 1.0, %v2361
        %v2363 = vmul.f32 %v2360, %v2362
        %v2364 = vadd.f32 %v2360, %v2363
        %vm2365 = vweird.f32 %v2358
        %vm2366 = vweird.f32 %v2360
        %vm2367 = vmor %vm2365, %vm2366
        %v2368 = vsel %vm2367, %v2360, %v2364
        %v2369 = vand.u32 2147483647, %v2358
        %vm2370 = vcmp.eq.f32.partialorder %v2369, 8.507059e+37
        %v2371 = vand.u32 %v2358, 2147483648
        %v2372 = vor.u32 1.1754944e-38, %v2371
        %v2373 = vsel %vm2370, %v2372, %v2368
        %v2374 = vmul.f32 1.0, %v2373
        %v2375 = vrcp.pop %v2359
        %v2376 = vmul.f32 %v2359, %v2375
        %v2377 = vsub.f32 1.0, %v2376
        %v2378 = vmul.f32 %v2375, %v2377
        %v2379 = vadd.f32 %v2375, %v2378
        %vm2380 = vweird.f32 %v2359
        %vm2381 = vweird.f32 %v2375
        %vm2382 = vmor %vm2380, %vm2381
        %v2383 = vsel %vm2382, %v2375, %v2379
        %v2384 = vand.u32 2147483647, %v2359
        %vm2385 = vcmp.eq.f32.partialorder %v2384, 8.507059e+37
        %v2386 = vand.u32 %v2359, 2147483648
        %v2387 = vor.u32 1.1754944e-38, %v2386
        %v2388 = vsel %vm2385, %v2387, %v2383
        %v2389 = vmul.f32 1.0, %v2388
        %v2390 = vxor.u32 %v2345, 2147483648
        %v2391 = vxor.u32 %v2349, 2147483648
        %v2392 = vmul.f32 %v2390, 1.442695
        %v2393 = vpow.pop %v2392
        %v2394 = vmul.f32 %v2391, 1.442695
        %v2395 = vpow.pop %v2394
        %v2396 = vadd.f32 %v2393, 1.0
        %v2397 = vadd.f32 %v2395, 1.0
        %v2398 = vrcp.pop %v2396
        %v2399 = vmul.f32 %v2396, %v2398
        %v2400 = vsub.f32 1.0, %v2399
        %v2401 = vmul.f32 %v2398, %v2400
        %v2402 = vadd.f32 %v2398, %v2401
        %vm2403 = vweird.f32 %v2396
        %vm2404 = vweird.f32 %v2398
        %vm2405 = vmor %vm2403, %vm2404
        %v2406 = vsel %vm2405, %v2398, %v2402
        %v2407 = vand.u32 2147483647, %v2396
        %vm2408 = vcmp.eq.f32.partialorder %v2407, 8.507059e+37
        %v2409 = vand.u32 %v2396, 2147483648
        %v2410 = vor.u32 1.1754944e-38, %v2409
        %v2411 = vsel %vm2408, %v2410, %v2406
        %v2412 = vmul.f32 1.0, %v2411
        %v2413 = vrcp.pop %v2397
        %v2414 = vmul.f32 %v2397, %v2413
        %v2415 = vsub.f32 1.0, %v2414
        %v2416 = vmul.f32 %v2413, %v2415
        %v2417 = vadd.f32 %v2413, %v2416
        %vm2418 = vweird.f32 %v2397
        %vm2419 = vweird.f32 %v2413
        %vm2420 = vmor %vm2418, %vm2419
        %v2421 = vsel %vm2420, %v2413, %v2417
        %v2422 = vand.u32 2147483647, %v2397
        %vm2423 = vcmp.eq.f32.partialorder %v2422, 8.507059e+37
        %v2424 = vand.u32 %v2397, 2147483648
        %v2425 = vor.u32 1.1754944e-38, %v2424
        %v2426 = vsel %vm2423, %v2425, %v2421
        %v2427 = vmul.f32 1.0, %v2426
        %v2428 = vtanh.pop %v2346
        %v2429 = vtanh.pop %v2350
        %v2430 = vxor.u32 %v2347, 2147483648
        %v2431 = vxor.u32 %v2351, 2147483648
        %v2432 = vmul.f32 %v2430, 1.442695
        %v2433 = vpow.pop %v2432
        %v2434 = vmul.f32 %v2431, 1.442695
        %v2435 = vpow.pop %v2434
        %v2436 = vadd.f32 %v2433, 1.0
        %v2437 = vadd.f32 %v2435, 1.0
        %v2438 = vrcp.pop %v2436
        %v2439 = vmul.f32 %v2436, %v2438
        %v2440 = vsub.f32 1.0, %v2439
        %v2441 = vmul.f32 %v2438, %v2440
        %v2442 = vadd.f32 %v2438, %v2441
        %vm2443 = vweird.f32 %v2436
        %vm2444 = vweird.f32 %v2438
        %vm2445 = vmor %vm2443, %vm2444
        %v2446 = vsel %vm2445, %v2438, %v2442
        %v2447 = vand.u32 2147483647, %v2436
        %vm2448 = vcmp.eq.f32.partialorder %v2447, 8.507059e+37
        %v2449 = vand.u32 %v2436, 2147483648
        %v2450 = vor.u32 1.1754944e-38, %v2449
        %v2451 = vsel %vm2448, %v2450, %v2446
        %v2452 = vmul.f32 1.0, %v2451
        %v2453 = vrcp.pop %v2437
        %v2454 = vmul.f32 %v2437, %v2453
        %v2455 = vsub.f32 1.0, %v2454
        %v2456 = vmul.f32 %v2453, %v2455
        %v2457 = vadd.f32 %v2453, %v2456
        %vm2458 = vweird.f32 %v2437
        %vm2459 = vweird.f32 %v2453
        %vm2460 = vmor %vm2458, %vm2459
        %v2461 = vsel %vm2460, %v2453, %v2457
        %v2462 = vand.u32 2147483647, %v2437
        %vm2463 = vcmp.eq.f32.partialorder %v2462, 8.507059e+37
        %v2464 = vand.u32 %v2437, 2147483648
        %v2465 = vor.u32 1.1754944e-38, %v2464
        %v2466 = vsel %vm2463, %v2465, %v2461
        %v2467 = vmul.f32 1.0, %v2466
        %v2468 = vmul.f32 %v2412, %v2256
        %v2469 = vmul.f32 %v2427, %v2257
        %v2470 = vmul.f32 %v2374, %v2428
        %v2471 = vmul.f32 %v2389, %v2429
        %v2472 = vadd.f32 %v2468, %v2470
        %v2473 = vadd.f32 %v2469, %v2471
        %v2474 = vtanh.pop %v2472
        %v2475 = vtanh.pop %v2473
        %v2476 = vmul.f32 %v2452, %v2474
        %v2477 = vmul.f32 %v2467, %v2475
        %v2478 = vsel %vm2271, 1, 0
        %v2479 = vsel %vm2272, 1, 0
        %vm2480 = vcmp.eq.s32.totalorder %v2478, 1
        %vm2481 = vcmp.eq.s32.totalorder %v2479, 1
        %v2482 = vsel %vm2480, %v2476, %v2254
        %v2483 = vsel %vm2481, %v2477, %v2255
        %v2484 = vsel %vm2480, %v2472, %v2256
        %v2485 = vsel %vm2481, %v2473, %v2257
        %v2486 = vpack.c.bf16 %v2482, %v2482
        %v2487 = vpack.c.bf16 %v2483, %v2483
        %s2488 = scalar_lea.vmem [#allocation5], 40
        %2489 = vst [vmem:[%s2488] sm:$0xf] %v2486
        %2490 = vst [vmem:[%s2488 + $0x4] sm:$0xf] %v2487
        %v2491 = vcvt.s32.f32 %v2478
        %v2492 = vcvt.s32.f32 %v2479
        %s2493 = scalar_lea.vmem [#allocation6], 80
        %2494 = vst.msk [vmem:[%s2493] sm:$0xff] %vm1353, %v2491
        %2495 = vst.msk [vmem:[%s2493 + $0x8] sm:$0xff] %vm1353, %v2492
        %s2496 = sadd.s32 %s976, 6
        %s2497 = sld [smem:[#allocation8 + %s2496]]
        %v2498 = vstv %s2497
        %vm2499 = vcmp.lt.s32.totalorder %v411, %v2498
        %vm2500 = vcmp.lt.s32.totalorder %v412, %v2498
        %s2501 = scalar_lea.vmem [#allocation4], 384
        %v2502 = vld [vmem:[%s2501] sm:$0xff]
        %v2503 = vld [vmem:[%s2501 + $0x8] sm:$0xff]
        %v2504 = vld [vmem:[%s2501 + $0x10] sm:$0xff]
        %v2505 = vld [vmem:[%s2501 + $0x18] sm:$0xff]
        %v2506 = vld [vmem:[%s2501 + $0x20] sm:$0xff]
        %v2507 = vld [vmem:[%s2501 + $0x28] sm:$0xff]
        %v2508 = vld [vmem:[%s2501 + $0x30] sm:$0xff]
        %v2509 = vld [vmem:[%s2501 + $0x38] sm:$0xff]
        %v2512 = vunpack.c.l.b16 %v2486
        %v2513 = vunpack.c.l.b16 %v2487
        %v2514 = vpack.c.b16 %v2513, %v2512
        %2516 = vmatpush.bf16.msra.mxu0 %v1113
        %2517 = vmatpush.bf16.msra.mxu0 %v1109
        %2518 = vmatpush.bf16.msra.mxu0 %v1105
        %2519 = vmatpush.bf16.msra.mxu0 %v1101
        %2520 = vmatpush.bf16.msra.mxu0 %v1097
        %2521 = vmatpush.bf16.msra.mxu0 %v1093
        %2522 = vmatpush.bf16.msra.mxu0 %v1089
        %2523 = vmatpush.bf16.msra.mxu0 %v1085
        %2524 = vmatmul.bf16.gmra.mxu0 %v2514
        %v2525 = vpop.f32.mrf.mxu0
        %v2526 = vadd.f32 0.0, %v2525
        %v2527 = vpop.f32.mrf.mxu0
        %v2528 = vadd.f32 0.0, %v2527
        %2529 = vdwg.mxu0
        %2530 = vmatpush.bf16.msra.mxu0 %v1114
        %2531 = vmatpush.bf16.msra.mxu0 %v1110
        %2532 = vmatpush.bf16.msra.mxu0 %v1106
        %2533 = vmatpush.bf16.msra.mxu0 %v1102
        %2534 = vmatpush.bf16.msra.mxu0 %v1098
        %2535 = vmatpush.bf16.msra.mxu0 %v1094
        %2536 = vmatpush.bf16.msra.mxu0 %v1090
        %2537 = vmatpush.bf16.msra.mxu0 %v1086
        %2538 = vmatmul.bf16.gmra.mxu0 %v2514
        %v2539 = vpop.f32.mrf.mxu0
        %v2540 = vadd.f32 0.0, %v2539
        %v2541 = vpop.f32.mrf.mxu0
        %v2542 = vadd.f32 0.0, %v2541
        %2543 = vdwg.mxu0
        %2544 = vmatpush.bf16.msra.mxu0 %v1115
        %2545 = vmatpush.bf16.msra.mxu0 %v1111
        %2546 = vmatpush.bf16.msra.mxu0 %v1107
        %2547 = vmatpush.bf16.msra.mxu0 %v1103
        %2548 = vmatpush.bf16.msra.mxu0 %v1099
        %2549 = vmatpush.bf16.msra.mxu0 %v1095
        %2550 = vmatpush.bf16.msra.mxu0 %v1091
        %2551 = vmatpush.bf16.msra.mxu0 %v1087
        %2552 = vmatmul.bf16.gmra.mxu0 %v2514
        %v2553 = vpop.f32.mrf.mxu0
        %v2554 = vadd.f32 0.0, %v2553
        %v2555 = vpop.f32.mrf.mxu0
        %v2556 = vadd.f32 0.0, %v2555
        %2557 = vdwg.mxu0
        %2558 = vmatpush.bf16.msra.mxu0 %v1116
        %2559 = vmatpush.bf16.msra.mxu0 %v1112
        %2560 = vmatpush.bf16.msra.mxu0 %v1108
        %2561 = vmatpush.bf16.msra.mxu0 %v1104
        %2562 = vmatpush.bf16.msra.mxu0 %v1100
        %2563 = vmatpush.bf16.msra.mxu0 %v1096
        %2564 = vmatpush.bf16.msra.mxu0 %v1092
        %2565 = vmatpush.bf16.msra.mxu0 %v1088
        %2566 = vmatmul.bf16.gmra.mxu0 %v2514
        %v2567 = vpop.f32.mrf.mxu0
        %v2568 = vadd.f32 0.0, %v2567
        %v2569 = vpop.f32.mrf.mxu0
        %v2570 = vadd.f32 0.0, %v2569
        %2571 = vdwg.mxu0
        %v2572 = vadd.f32 %v2502, %v2526
        %v2573 = vadd.f32 %v2503, %v2540
        %v2574 = vadd.f32 %v2504, %v2554
        %v2575 = vadd.f32 %v2505, %v2568
        %v2576 = vadd.f32 %v2506, %v2528
        %v2577 = vadd.f32 %v2507, %v2542
        %v2578 = vadd.f32 %v2508, %v2556
        %v2579 = vadd.f32 %v2509, %v2570
        %v2580 = vxor.u32 %v2572, 2147483648
        %v2581 = vxor.u32 %v2576, 2147483648
        %v2582 = vmul.f32 %v2580, 1.442695
        %v2583 = vpow.pop %v2582
        %v2584 = vmul.f32 %v2581, 1.442695
        %v2585 = vpow.pop %v2584
        %v2586 = vadd.f32 %v2583, 1.0
        %v2587 = vadd.f32 %v2585, 1.0
        %v2588 = vrcp.pop %v2586
        %v2589 = vmul.f32 %v2586, %v2588
        %v2590 = vsub.f32 1.0, %v2589
        %v2591 = vmul.f32 %v2588, %v2590
        %v2592 = vadd.f32 %v2588, %v2591
        %vm2593 = vweird.f32 %v2586
        %vm2594 = vweird.f32 %v2588
        %vm2595 = vmor %vm2593, %vm2594
        %v2596 = vsel %vm2595, %v2588, %v2592
        %v2597 = vand.u32 2147483647, %v2586
        %vm2598 = vcmp.eq.f32.partialorder %v2597, 8.507059e+37
        %v2599 = vand.u32 %v2586, 2147483648
        %v2600 = vor.u32 1.1754944e-38, %v2599
        %v2601 = vsel %vm2598, %v2600, %v2596
        %v2602 = vmul.f32 1.0, %v2601
        %v2603 = vrcp.pop %v2587
        %v2604 = vmul.f32 %v2587, %v2603
        %v2605 = vsub.f32 1.0, %v2604
        %v2606 = vmul.f32 %v2603, %v2605
        %v2607 = vadd.f32 %v2603, %v2606
        %vm2608 = vweird.f32 %v2587
        %vm2609 = vweird.f32 %v2603
        %vm2610 = vmor %vm2608, %vm2609
        %v2611 = vsel %vm2610, %v2603, %v2607
        %v2612 = vand.u32 2147483647, %v2587
        %vm2613 = vcmp.eq.f32.partialorder %v2612, 8.507059e+37
        %v2614 = vand.u32 %v2587, 2147483648
        %v2615 = vor.u32 1.1754944e-38, %v2614
        %v2616 = vsel %vm2613, %v2615, %v2611
        %v2617 = vmul.f32 1.0, %v2616
        %v2618 = vxor.u32 %v2573, 2147483648
        %v2619 = vxor.u32 %v2577, 2147483648
        %v2620 = vmul.f32 %v2618, 1.442695
        %v2621 = vpow.pop %v2620
        %v2622 = vmul.f32 %v2619, 1.442695
        %v2623 = vpow.pop %v2622
        %v2624 = vadd.f32 %v2621, 1.0
        %v2625 = vadd.f32 %v2623, 1.0
        %v2626 = vrcp.pop %v2624
        %v2627 = vmul.f32 %v2624, %v2626
        %v2628 = vsub.f32 1.0, %v2627
        %v2629 = vmul.f32 %v2626, %v2628
        %v2630 = vadd.f32 %v2626, %v2629
        %vm2631 = vweird.f32 %v2624
        %vm2632 = vweird.f32 %v2626
        %vm2633 = vmor %vm2631, %vm2632
        %v2634 = vsel %vm2633, %v2626, %v2630
        %v2635 = vand.u32 2147483647, %v2624
        %vm2636 = vcmp.eq.f32.partialorder %v2635, 8.507059e+37
        %v2637 = vand.u32 %v2624, 2147483648
        %v2638 = vor.u32 1.1754944e-38, %v2637
        %v2639 = vsel %vm2636, %v2638, %v2634
        %v2640 = vmul.f32 1.0, %v2639
        %v2641 = vrcp.pop %v2625
        %v2642 = vmul.f32 %v2625, %v2641
        %v2643 = vsub.f32 1.0, %v2642
        %v2644 = vmul.f32 %v2641, %v2643
        %v2645 = vadd.f32 %v2641, %v2644
        %vm2646 = vweird.f32 %v2625
        %vm2647 = vweird.f32 %v2641
        %vm2648 = vmor %vm2646, %vm2647
        %v2649 = vsel %vm2648, %v2641, %v2645
        %v2650 = vand.u32 2147483647, %v2625
        %vm2651 = vcmp.eq.f32.partialorder %v2650, 8.507059e+37
        %v2652 = vand.u32 %v2625, 2147483648
        %v2653 = vor.u32 1.1754944e-38, %v2652
        %v2654 = vsel %vm2651, %v2653, %v2649
        %v2655 = vmul.f32 1.0, %v2654
        %v2656 = vtanh.pop %v2574
        %v2657 = vtanh.pop %v2578
        %v2658 = vxor.u32 %v2575, 2147483648
        %v2659 = vxor.u32 %v2579, 2147483648
        %v2660 = vmul.f32 %v2658, 1.442695
        %v2661 = vpow.pop %v2660
        %v2662 = vmul.f32 %v2659, 1.442695
        %v2663 = vpow.pop %v2662
        %v2664 = vadd.f32 %v2661, 1.0
        %v2665 = vadd.f32 %v2663, 1.0
        %v2666 = vrcp.pop %v2664
        %v2667 = vmul.f32 %v2664, %v2666
        %v2668 = vsub.f32 1.0, %v2667
        %v2669 = vmul.f32 %v2666, %v2668
        %v2670 = vadd.f32 %v2666, %v2669
        %vm2671 = vweird.f32 %v2664
        %vm2672 = vweird.f32 %v2666
        %vm2673 = vmor %vm2671, %vm2672
        %v2674 = vsel %vm2673, %v2666, %v2670
        %v2675 = vand.u32 2147483647, %v2664
        %vm2676 = vcmp.eq.f32.partialorder %v2675, 8.507059e+37
        %v2677 = vand.u32 %v2664, 2147483648
        %v2678 = vor.u32 1.1754944e-38, %v2677
        %v2679 = vsel %vm2676, %v2678, %v2674
        %v2680 = vmul.f32 1.0, %v2679
        %v2681 = vrcp.pop %v2665
        %v2682 = vmul.f32 %v2665, %v2681
        %v2683 = vsub.f32 1.0, %v2682
        %v2684 = vmul.f32 %v2681, %v2683
        %v2685 = vadd.f32 %v2681, %v2684
        %vm2686 = vweird.f32 %v2665
        %vm2687 = vweird.f32 %v2681
        %vm2688 = vmor %vm2686, %vm2687
        %v2689 = vsel %vm2688, %v2681, %v2685
        %v2690 = vand.u32 2147483647, %v2665
        %vm2691 = vcmp.eq.f32.partialorder %v2690, 8.507059e+37
        %v2692 = vand.u32 %v2665, 2147483648
        %v2693 = vor.u32 1.1754944e-38, %v2692
        %v2694 = vsel %vm2691, %v2693, %v2689
        %v2695 = vmul.f32 1.0, %v2694
        %v2696 = vmul.f32 %v2640, %v2484
        %v2697 = vmul.f32 %v2655, %v2485
        %v2698 = vmul.f32 %v2602, %v2656
        %v2699 = vmul.f32 %v2617, %v2657
        %v2700 = vadd.f32 %v2696, %v2698
        %v2701 = vadd.f32 %v2697, %v2699
        %v2702 = vtanh.pop %v2700
        %v2703 = vtanh.pop %v2701
        %v2704 = vmul.f32 %v2680, %v2702
        %v2705 = vmul.f32 %v2695, %v2703
        %v2706 = vsel %vm2499, 1, 0
        %v2707 = vsel %vm2500, 1, 0
        %vm2708 = vcmp.eq.s32.totalorder %v2706, 1
        %vm2709 = vcmp.eq.s32.totalorder %v2707, 1
        %v2710 = vsel %vm2708, %v2704, %v2482
        %v2711 = vsel %vm2709, %v2705, %v2483
        %v2712 = vsel %vm2708, %v2700, %v2484
        %v2713 = vsel %vm2709, %v2701, %v2485
        %v2714 = vpack.c.bf16 %v2710, %v2710
        %v2715 = vpack.c.bf16 %v2711, %v2711
        %s2716 = scalar_lea.vmem [#allocation5], 48
        %2717 = vst [vmem:[%s2716] sm:$0xf] %v2714
        %2718 = vst [vmem:[%s2716 + $0x4] sm:$0xf] %v2715
        %v2719 = vcvt.s32.f32 %v2706
        %v2720 = vcvt.s32.f32 %v2707
        %s2721 = scalar_lea.vmem [#allocation6], 96
        %2722 = vst.msk [vmem:[%s2721] sm:$0xff] %vm1353, %v2719
        %2723 = vst.msk [vmem:[%s2721 + $0x8] sm:$0xff] %vm1353, %v2720
        %s2724 = sadd.s32 %s976, 7
        %s2725 = sld [smem:[#allocation8 + %s2724]]
        %v2726 = vstv %s2725
        %vm2727 = vcmp.lt.s32.totalorder %v411, %v2726
        %vm2728 = vcmp.lt.s32.totalorder %v412, %v2726
        %s2729 = scalar_lea.vmem [#allocation4], 448
        %v2730 = vld [vmem:[%s2729] sm:$0xff]
        %v2731 = vld [vmem:[%s2729 + $0x8] sm:$0xff]
        %v2732 = vld [vmem:[%s2729 + $0x10] sm:$0xff]
        %v2733 = vld [vmem:[%s2729 + $0x18] sm:$0xff]
        %v2734 = vld [vmem:[%s2729 + $0x20] sm:$0xff]
        %v2735 = vld [vmem:[%s2729 + $0x28] sm:$0xff]
        %v2736 = vld [vmem:[%s2729 + $0x30] sm:$0xff]
        %v2737 = vld [vmem:[%s2729 + $0x38] sm:$0xff]
        %v2740 = vunpack.c.l.b16 %v2714
        %v2741 = vunpack.c.l.b16 %v2715
        %v2742 = vpack.c.b16 %v2741, %v2740
        %2744 = vmatpush.bf16.msra.mxu0 %v1113
        %2745 = vmatpush.bf16.msra.mxu0 %v1109
        %2746 = vmatpush.bf16.msra.mxu0 %v1105
        %2747 = vmatpush.bf16.msra.mxu0 %v1101
        %2748 = vmatpush.bf16.msra.mxu0 %v1097
        %2749 = vmatpush.bf16.msra.mxu0 %v1093
        %2750 = vmatpush.bf16.msra.mxu0 %v1089
        %2751 = vmatpush.bf16.msra.mxu0 %v1085
        %2752 = vmatmul.bf16.gmra.mxu0 %v2742
        %v2753 = vpop.f32.mrf.mxu0
        %v2754 = vadd.f32 0.0, %v2753
        %v2755 = vpop.f32.mrf.mxu0
        %v2756 = vadd.f32 0.0, %v2755
        %2757 = vdwg.mxu0
        %2758 = vmatpush.bf16.msra.mxu0 %v1114
        %2759 = vmatpush.bf16.msra.mxu0 %v1110
        %2760 = vmatpush.bf16.msra.mxu0 %v1106
        %2761 = vmatpush.bf16.msra.mxu0 %v1102
        %2762 = vmatpush.bf16.msra.mxu0 %v1098
        %2763 = vmatpush.bf16.msra.mxu0 %v1094
        %2764 = vmatpush.bf16.msra.mxu0 %v1090
        %2765 = vmatpush.bf16.msra.mxu0 %v1086
        %2766 = vmatmul.bf16.gmra.mxu0 %v2742
        %v2767 = vpop.f32.mrf.mxu0
        %v2768 = vadd.f32 0.0, %v2767
        %v2769 = vpop.f32.mrf.mxu0
        %v2770 = vadd.f32 0.0, %v2769
        %2771 = vdwg.mxu0
        %2772 = vmatpush.bf16.msra.mxu0 %v1115
        %2773 = vmatpush.bf16.msra.mxu0 %v1111
        %2774 = vmatpush.bf16.msra.mxu0 %v1107
        %2775 = vmatpush.bf16.msra.mxu0 %v1103
        %2776 = vmatpush.bf16.msra.mxu0 %v1099
        %2777 = vmatpush.bf16.msra.mxu0 %v1095
        %2778 = vmatpush.bf16.msra.mxu0 %v1091
        %2779 = vmatpush.bf16.msra.mxu0 %v1087
        %2780 = vmatmul.bf16.gmra.mxu0 %v2742
        %v2781 = vpop.f32.mrf.mxu0
        %v2782 = vadd.f32 0.0, %v2781
        %v2783 = vpop.f32.mrf.mxu0
        %v2784 = vadd.f32 0.0, %v2783
        %2785 = vdwg.mxu0
        %2786 = vmatpush.bf16.msra.mxu0 %v1116
        %2787 = vmatpush.bf16.msra.mxu0 %v1112
        %2788 = vmatpush.bf16.msra.mxu0 %v1108
        %2789 = vmatpush.bf16.msra.mxu0 %v1104
        %2790 = vmatpush.bf16.msra.mxu0 %v1100
        %2791 = vmatpush.bf16.msra.mxu0 %v1096
        %2792 = vmatpush.bf16.msra.mxu0 %v1092
        %2793 = vmatpush.bf16.msra.mxu0 %v1088
        %2794 = vmatmul.bf16.gmra.mxu0 %v2742
        %v2795 = vpop.f32.mrf.mxu0
        %v2796 = vadd.f32 0.0, %v2795
        %v2797 = vpop.f32.mrf.mxu0
        %v2798 = vadd.f32 0.0, %v2797
        %2799 = vdwg.mxu0
        %v2800 = vadd.f32 %v2730, %v2754
        %v2801 = vadd.f32 %v2731, %v2768
        %v2802 = vadd.f32 %v2732, %v2782
        %v2803 = vadd.f32 %v2733, %v2796
        %v2804 = vadd.f32 %v2734, %v2756
        %v2805 = vadd.f32 %v2735, %v2770
        %v2806 = vadd.f32 %v2736, %v2784
        %v2807 = vadd.f32 %v2737, %v2798
        %v2808 = vxor.u32 %v2800, 2147483648
        %v2809 = vxor.u32 %v2804, 2147483648
        %v2810 = vmul.f32 %v2808, 1.442695
        %v2811 = vpow.pop %v2810
        %v2812 = vmul.f32 %v2809, 1.442695
        %v2813 = vpow.pop %v2812
        %v2814 = vadd.f32 %v2811, 1.0
        %v2815 = vadd.f32 %v2813, 1.0
        %v2816 = vrcp.pop %v2814
        %v2817 = vmul.f32 %v2814, %v2816
        %v2818 = vsub.f32 1.0, %v2817
        %v2819 = vmul.f32 %v2816, %v2818
        %v2820 = vadd.f32 %v2816, %v2819
        %vm2821 = vweird.f32 %v2814
        %vm2822 = vweird.f32 %v2816
        %vm2823 = vmor %vm2821, %vm2822
        %v2824 = vsel %vm2823, %v2816, %v2820
        %v2825 = vand.u32 2147483647, %v2814
        %vm2826 = vcmp.eq.f32.partialorder %v2825, 8.507059e+37
        %v2827 = vand.u32 %v2814, 2147483648
        %v2828 = vor.u32 1.1754944e-38, %v2827
        %v2829 = vsel %vm2826, %v2828, %v2824
        %v2830 = vmul.f32 1.0, %v2829
        %v2831 = vrcp.pop %v2815
        %v2832 = vmul.f32 %v2815, %v2831
        %v2833 = vsub.f32 1.0, %v2832
        %v2834 = vmul.f32 %v2831, %v2833
        %v2835 = vadd.f32 %v2831, %v2834
        %vm2836 = vweird.f32 %v2815
        %vm2837 = vweird.f32 %v2831
        %vm2838 = vmor %vm2836, %vm2837
        %v2839 = vsel %vm2838, %v2831, %v2835
        %v2840 = vand.u32 2147483647, %v2815
        %vm2841 = vcmp.eq.f32.partialorder %v2840, 8.507059e+37
        %v2842 = vand.u32 %v2815, 2147483648
        %v2843 = vor.u32 1.1754944e-38, %v2842
        %v2844 = vsel %vm2841, %v2843, %v2839
        %v2845 = vmul.f32 1.0, %v2844
        %v2846 = vxor.u32 %v2801, 2147483648
        %v2847 = vxor.u32 %v2805, 2147483648
        %v2848 = vmul.f32 %v2846, 1.442695
        %v2849 = vpow.pop %v2848
        %v2850 = vmul.f32 %v2847, 1.442695
        %v2851 = vpow.pop %v2850
        %v2852 = vadd.f32 %v2849, 1.0
        %v2853 = vadd.f32 %v2851, 1.0
        %v2854 = vrcp.pop %v2852
        %v2855 = vmul.f32 %v2852, %v2854
        %v2856 = vsub.f32 1.0, %v2855
        %v2857 = vmul.f32 %v2854, %v2856
        %v2858 = vadd.f32 %v2854, %v2857
        %vm2859 = vweird.f32 %v2852
        %vm2860 = vweird.f32 %v2854
        %vm2861 = vmor %vm2859, %vm2860
        %v2862 = vsel %vm2861, %v2854, %v2858
        %v2863 = vand.u32 2147483647, %v2852
        %vm2864 = vcmp.eq.f32.partialorder %v2863, 8.507059e+37
        %v2865 = vand.u32 %v2852, 2147483648
        %v2866 = vor.u32 1.1754944e-38, %v2865
        %v2867 = vsel %vm2864, %v2866, %v2862
        %v2868 = vmul.f32 1.0, %v2867
        %v2869 = vrcp.pop %v2853
        %v2870 = vmul.f32 %v2853, %v2869
        %v2871 = vsub.f32 1.0, %v2870
        %v2872 = vmul.f32 %v2869, %v2871
        %v2873 = vadd.f32 %v2869, %v2872
        %vm2874 = vweird.f32 %v2853
        %vm2875 = vweird.f32 %v2869
        %vm2876 = vmor %vm2874, %vm2875
        %v2877 = vsel %vm2876, %v2869, %v2873
        %v2878 = vand.u32 2147483647, %v2853
        %vm2879 = vcmp.eq.f32.partialorder %v2878, 8.507059e+37
        %v2880 = vand.u32 %v2853, 2147483648
        %v2881 = vor.u32 1.1754944e-38, %v2880
        %v2882 = vsel %vm2879, %v2881, %v2877
        %v2883 = vmul.f32 1.0, %v2882
        %v2884 = vtanh.pop %v2802
        %v2885 = vtanh.pop %v2806
        %v2886 = vxor.u32 %v2803, 2147483648
        %v2887 = vxor.u32 %v2807, 2147483648
        %v2888 = vmul.f32 %v2886, 1.442695
        %v2889 = vpow.pop %v2888
        %v2890 = vmul.f32 %v2887, 1.442695
        %v2891 = vpow.pop %v2890
        %v2892 = vadd.f32 %v2889, 1.0
        %v2893 = vadd.f32 %v2891, 1.0
        %v2894 = vrcp.pop %v2892
        %v2895 = vmul.f32 %v2892, %v2894
        %v2896 = vsub.f32 1.0, %v2895
        %v2897 = vmul.f32 %v2894, %v2896
        %v2898 = vadd.f32 %v2894, %v2897
        %vm2899 = vweird.f32 %v2892
        %vm2900 = vweird.f32 %v2894
        %vm2901 = vmor %vm2899, %vm2900
        %v2902 = vsel %vm2901, %v2894, %v2898
        %v2903 = vand.u32 2147483647, %v2892
        %vm2904 = vcmp.eq.f32.partialorder %v2903, 8.507059e+37
        %v2905 = vand.u32 %v2892, 2147483648
        %v2906 = vor.u32 1.1754944e-38, %v2905
        %v2907 = vsel %vm2904, %v2906, %v2902
        %v2908 = vmul.f32 1.0, %v2907
        %v2909 = vrcp.pop %v2893
        %v2910 = vmul.f32 %v2893, %v2909
        %v2911 = vsub.f32 1.0, %v2910
        %v2912 = vmul.f32 %v2909, %v2911
        %v2913 = vadd.f32 %v2909, %v2912
        %vm2914 = vweird.f32 %v2893
        %vm2915 = vweird.f32 %v2909
        %vm2916 = vmor %vm2914, %vm2915
        %v2917 = vsel %vm2916, %v2909, %v2913
        %v2918 = vand.u32 2147483647, %v2893
        %vm2919 = vcmp.eq.f32.partialorder %v2918, 8.507059e+37
        %v2920 = vand.u32 %v2893, 2147483648
        %v2921 = vor.u32 1.1754944e-38, %v2920
        %v2922 = vsel %vm2919, %v2921, %v2917
        %v2923 = vmul.f32 1.0, %v2922
        %v2924 = vmul.f32 %v2868, %v2712
        %v2925 = vmul.f32 %v2883, %v2713
        %v2926 = vmul.f32 %v2830, %v2884
        %v2927 = vmul.f32 %v2845, %v2885
        %v2928 = vadd.f32 %v2924, %v2926
        %v2929 = vadd.f32 %v2925, %v2927
        %v2930 = vtanh.pop %v2928
        %v2931 = vtanh.pop %v2929
        %v2932 = vmul.f32 %v2908, %v2930
        %v2933 = vmul.f32 %v2923, %v2931
        %v2934 = vsel %vm2727, 1, 0
        %v2935 = vsel %vm2728, 1, 0
        %vm2936 = vcmp.eq.s32.totalorder %v2934, 1
        %vm2937 = vcmp.eq.s32.totalorder %v2935, 1
        %v2938 = vsel %vm2936, %v2932, %v2710
        %v2939 = vsel %vm2937, %v2933, %v2711
        %v2940 = vsel %vm2936, %v2928, %v2712
        %v2941 = vsel %vm2937, %v2929, %v2713
        %v2942 = vpack.c.bf16 %v2938, %v2938
        %v2943 = vpack.c.bf16 %v2939, %v2939
        %s2944 = scalar_lea.vmem [#allocation5], 56
        %2945 = vst [vmem:[%s2944] sm:$0xf] %v2942
        %2946 = vst [vmem:[%s2944 + $0x4] sm:$0xf] %v2943
        %v2947 = vcvt.s32.f32 %v2934
        %v2948 = vcvt.s32.f32 %v2935
        %s2949 = scalar_lea.vmem [#allocation6], 112
        %2950 = vst.msk [vmem:[%s2949] sm:$0xff] %vm1353, %v2947
        %2951 = vst.msk [vmem:[%s2949 + $0x8] sm:$0xff] %vm1353, %v2948
        %2952 = vst [vmem:[#allocation2] sm:$0xff] %v2938
        %2953 = vst [vmem:[#allocation2 + $0x8] sm:$0xff] %v2939
        %2954 = vst [vmem:[#allocation3] sm:$0xff] %v2940
        %2955 = vst [vmem:[#allocation3 + $0x8] sm:$0xff] %v2941
        %v2956 = vld [vmem:[#allocation5] sm:$0xf]
        %v2957 = vld [vmem:[#allocation5 + $0x4] sm:$0xf]
        %v2958 = vld [vmem:[#allocation5 + $0x8] sm:$0xf]
        %v2959 = vld [vmem:[#allocation5 + $0xc] sm:$0xf]
        %v2960 = vld [vmem:[#allocation5 + $0x10] sm:$0xf]
        %v2961 = vld [vmem:[#allocation5 + $0x14] sm:$0xf]
        %v2962 = vld [vmem:[#allocation5 + $0x18] sm:$0xf]
        %v2963 = vld [vmem:[#allocation5 + $0x1c] sm:$0xf]
        %v2964 = vld [vmem:[#allocation5 + $0x20] sm:$0xf]
        %v2965 = vld [vmem:[#allocation5 + $0x24] sm:$0xf]
        %v2966 = vld [vmem:[#allocation5 + $0x28] sm:$0xf]
        %v2967 = vld [vmem:[#allocation5 + $0x2c] sm:$0xf]
        %v2968 = vld [vmem:[#allocation5 + $0x30] sm:$0xf]
        %v2969 = vld [vmem:[#allocation5 + $0x34] sm:$0xf]
        %v2970 = vld [vmem:[#allocation5 + $0x38] sm:$0xf]
        %v2971 = vld [vmem:[#allocation5 + $0x3c] sm:$0xf]
        %v2972 = vld [vmem:[%s7] sm:$0xf]
        %v2973 = vld [vmem:[%s7 + $0x4] sm:$0xf]
        %v2974 = vld [vmem:[%s7 + $0x8] sm:$0xf]
        %v2975 = vld [vmem:[%s7 + $0xc] sm:$0xf]
        %v2976 = vld [vmem:[%s7 + $0x10] sm:$0xf]
        %v2977 = vld [vmem:[%s7 + $0x14] sm:$0xf]
        %v2978 = vld [vmem:[%s7 + $0x18] sm:$0xf]
        %v2979 = vld [vmem:[%s7 + $0x1c] sm:$0xf]
        %v2980 = vld [vmem:[%s7 + $0x20] sm:$0xf]
        %v2981 = vld [vmem:[%s7 + $0x24] sm:$0xf]
        %v2982 = vld [vmem:[%s7 + $0x28] sm:$0xf]
        %v2983 = vld [vmem:[%s7 + $0x2c] sm:$0xf]
        %v2984 = vld [vmem:[%s7 + $0x30] sm:$0xf]
        %v2985 = vld [vmem:[%s7 + $0x34] sm:$0xf]
        %v2986 = vld [vmem:[%s7 + $0x38] sm:$0xf]
        %v2987 = vld [vmem:[%s7 + $0x3c] sm:$0xf]
        %v2988 = vld [vmem:[%s8] sm:$0x1]
        %v2990 = vperm.slane %v2988, 0
        %v3008 = vunpack.c.l.b16 %v2956
        %v3009 = vunpack.c.l.b16 %v2957
        %v3010 = vunpack.c.l.b16 %v2958
        %v3011 = vunpack.c.l.b16 %v2959
        %v3012 = vunpack.c.l.b16 %v2960
        %v3013 = vunpack.c.l.b16 %v2961
        %v3014 = vunpack.c.l.b16 %v2962
        %v3015 = vunpack.c.l.b16 %v2963
        %v3016 = vunpack.c.l.b16 %v2964
        %v3017 = vunpack.c.l.b16 %v2965
        %v3018 = vunpack.c.l.b16 %v2966
        %v3019 = vunpack.c.l.b16 %v2967
        %v3020 = vunpack.c.l.b16 %v2968
        %v3021 = vunpack.c.l.b16 %v2969
        %v3022 = vunpack.c.l.b16 %v2970
        %v3023 = vunpack.c.l.b16 %v2971
        %v3024 = vpack.c.b16 %v3009, %v3008
        %v3025 = vpack.c.b16 %v3011, %v3010
        %v3026 = vpack.c.b16 %v3013, %v3012
        %v3027 = vpack.c.b16 %v3015, %v3014
        %v3028 = vpack.c.b16 %v3017, %v3016
        %v3029 = vpack.c.b16 %v3019, %v3018
        %v3030 = vpack.c.b16 %v3021, %v3020
        %v3031 = vpack.c.b16 %v3023, %v3022
        %v3056 = vunpack.c.l.b16 %v2972
        %v3057 = vunpack.c.l.b16 %v2973
        %v3058 = vunpack.c.l.b16 %v2974
        %v3059 = vunpack.c.l.b16 %v2975
        %v3060 = vunpack.c.l.b16 %v2976
        %v3061 = vunpack.c.l.b16 %v2977
        %v3062 = vunpack.c.l.b16 %v2978
        %v3063 = vunpack.c.l.b16 %v2979
        %v3064 = vunpack.c.l.b16 %v2980
        %v3065 = vunpack.c.l.b16 %v2981
        %v3066 = vunpack.c.l.b16 %v2982
        %v3067 = vunpack.c.l.b16 %v2983
        %v3068 = vunpack.c.l.b16 %v2984
        %v3069 = vunpack.c.l.b16 %v2985
        %v3070 = vunpack.c.l.b16 %v2986
        %v3071 = vunpack.c.l.b16 %v2987
        %v3072 = vpack.c.b16 %v3057, %v3056
        %v3073 = vpack.c.b16 %v3059, %v3058
        %v3074 = vpack.c.b16 %v3061, %v3060
        %v3075 = vpack.c.b16 %v3063, %v3062
        %v3076 = vpack.c.b16 %v3065, %v3064
        %v3077 = vpack.c.b16 %v3067, %v3066
        %v3078 = vpack.c.b16 %v3069, %v3068
        %v3079 = vpack.c.b16 %v3071, %v3070
        %3088 = vmatpush.bf16.msra.mxu0 %v3079
        %3089 = vmatpush.bf16.msra.mxu0 %v3078
        %3090 = vmatpush.bf16.msra.mxu0 %v3077
        %3091 = vmatpush.bf16.msra.mxu0 %v3076
        %3092 = vmatpush.bf16.msra.mxu0 %v3075
        %3093 = vmatpush.bf16.msra.mxu0 %v3074
        %3094 = vmatpush.bf16.msra.mxu0 %v3073
        %3095 = vmatpush.bf16.msra.mxu0 %v3072
        %3096 = vmatmul.bf16.gmra.mxu0 %v3024
        %v3097 = vpop.f32.mrf.mxu0
        %v3098 = vadd.f32 %v2990, %v3097
        %v3099 = vpop.f32.mrf.mxu0
        %v3100 = vadd.f32 %v2990, %v3099
        %3101 = vmatmul.bf16.gmra.mxu0 %v3025
        %v3102 = vpop.f32.mrf.mxu0
        %v3103 = vadd.f32 %v2990, %v3102
        %v3104 = vpop.f32.mrf.mxu0
        %v3105 = vadd.f32 %v2990, %v3104
        %3106 = vmatmul.bf16.gmra.mxu0 %v3026
        %v3107 = vpop.f32.mrf.mxu0
        %v3108 = vadd.f32 %v2990, %v3107
        %v3109 = vpop.f32.mrf.mxu0
        %v3110 = vadd.f32 %v2990, %v3109
        %3111 = vmatmul.bf16.gmra.mxu0 %v3027
        %v3112 = vpop.f32.mrf.mxu0
        %v3113 = vadd.f32 %v2990, %v3112
        %v3114 = vpop.f32.mrf.mxu0
        %v3115 = vadd.f32 %v2990, %v3114
        %3116 = vmatmul.bf16.gmra.mxu0 %v3028
        %v3117 = vpop.f32.mrf.mxu0
        %v3118 = vadd.f32 %v2990, %v3117
        %v3119 = vpop.f32.mrf.mxu0
        %v3120 = vadd.f32 %v2990, %v3119
        %3121 = vmatmul.bf16.gmra.mxu0 %v3029
        %v3122 = vpop.f32.mrf.mxu0
        %v3123 = vadd.f32 %v2990, %v3122
        %v3124 = vpop.f32.mrf.mxu0
        %v3125 = vadd.f32 %v2990, %v3124
        %3126 = vmatmul.bf16.gmra.mxu0 %v3030
        %v3127 = vpop.f32.mrf.mxu0
        %v3128 = vadd.f32 %v2990, %v3127
        %v3129 = vpop.f32.mrf.mxu0
        %v3130 = vadd.f32 %v2990, %v3129
        %3131 = vmatmul.bf16.gmra.mxu0 %v3031
        %v3132 = vpop.f32.mrf.mxu0
        %v3133 = vadd.f32 %v2990, %v3132
        %v3134 = vpop.f32.mrf.mxu0
        %v3135 = vadd.f32 %v2990, %v3134
        %3136 = vdwg.mxu0
        %v3137 = vld [vmem:[#allocation6] sm:$0xff]
        %v3138 = vld [vmem:[#allocation6 + $0x8] sm:$0xff]
        %v3139 = vld [vmem:[#allocation6 + $0x10] sm:$0xff]
        %v3140 = vld [vmem:[#allocation6 + $0x18] sm:$0xff]
        %v3141 = vld [vmem:[#allocation6 + $0x20] sm:$0xff]
        %v3142 = vld [vmem:[#allocation6 + $0x28] sm:$0xff]
        %v3143 = vld [vmem:[#allocation6 + $0x30] sm:$0xff]
        %v3144 = vld [vmem:[#allocation6 + $0x38] sm:$0xff]
        %v3145 = vld [vmem:[#allocation6 + $0x40] sm:$0xff]
        %v3146 = vld [vmem:[#allocation6 + $0x48] sm:$0xff]
        %v3147 = vld [vmem:[#allocation6 + $0x50] sm:$0xff]
        %v3148 = vld [vmem:[#allocation6 + $0x58] sm:$0xff]
        %v3149 = vld [vmem:[#allocation6 + $0x60] sm:$0xff]
        %v3150 = vld [vmem:[#allocation6 + $0x68] sm:$0xff]
        %v3151 = vld [vmem:[#allocation6 + $0x70] sm:$0xff]
        %v3152 = vld [vmem:[#allocation6 + $0x78] sm:$0xff]
        %3154 = vset.pattern.permute.xlu0 0
        %3155 = vperm.xlu0 %3154, %v3137
        %v3156 = vpop.permute.xlu0 %3155
        %3159 = vset.pattern.permute.xlu0 0
        %3160 = vperm.xlu0 %3159, %v3138
        %v3161 = vpop.permute.xlu0 %3160
        %3164 = vset.pattern.permute.xlu0 0
        %3165 = vperm.xlu0 %3164, %v3139
        %v3166 = vpop.permute.xlu0 %3165
        %3169 = vset.pattern.permute.xlu0 0
        %3170 = vperm.xlu0 %3169, %v3140
        %v3171 = vpop.permute.xlu0 %3170
        %3174 = vset.pattern.permute.xlu0 0
        %3175 = vperm.xlu0 %3174, %v3141
        %v3176 = vpop.permute.xlu0 %3175
        %3179 = vset.pattern.permute.xlu0 0
        %3180 = vperm.xlu0 %3179, %v3142
        %v3181 = vpop.permute.xlu0 %3180
        %3184 = vset.pattern.permute.xlu0 0
        %3185 = vperm.xlu0 %3184, %v3143
        %v3186 = vpop.permute.xlu0 %3185
        %3189 = vset.pattern.permute.xlu0 0
        %3190 = vperm.xlu0 %3189, %v3144
        %v3191 = vpop.permute.xlu0 %3190
        %3194 = vset.pattern.permute.xlu0 0
        %3195 = vperm.xlu0 %3194, %v3145
        %v3196 = vpop.permute.xlu0 %3195
        %3199 = vset.pattern.permute.xlu0 0
        %3200 = vperm.xlu0 %3199, %v3146
        %v3201 = vpop.permute.xlu0 %3200
        %3204 = vset.pattern.permute.xlu0 0
        %3205 = vperm.xlu0 %3204, %v3147
        %v3206 = vpop.permute.xlu0 %3205
        %3209 = vset.pattern.permute.xlu0 0
        %3210 = vperm.xlu0 %3209, %v3148
        %v3211 = vpop.permute.xlu0 %3210
        %3214 = vset.pattern.permute.xlu0 0
        %3215 = vperm.xlu0 %3214, %v3149
        %v3216 = vpop.permute.xlu0 %3215
        %3219 = vset.pattern.permute.xlu0 0
        %3220 = vperm.xlu0 %3219, %v3150
        %v3221 = vpop.permute.xlu0 %3220
        %3224 = vset.pattern.permute.xlu0 0
        %3225 = vperm.xlu0 %3224, %v3151
        %v3226 = vpop.permute.xlu0 %3225
        %3229 = vset.pattern.permute.xlu0 0
        %3230 = vperm.xlu0 %3229, %v3152
        %v3231 = vpop.permute.xlu0 %3230
        %v3233 = vmul.f32 %v3098, %v3156
        %v3234 = vmul.f32 %v3100, %v3161
        %v3235 = vmul.f32 %v3103, %v3166
        %v3236 = vmul.f32 %v3105, %v3171
        %v3237 = vmul.f32 %v3108, %v3176
        %v3238 = vmul.f32 %v3110, %v3181
        %v3239 = vmul.f32 %v3113, %v3186
        %v3240 = vmul.f32 %v3115, %v3191
        %v3241 = vmul.f32 %v3118, %v3196
        %v3242 = vmul.f32 %v3120, %v3201
        %v3243 = vmul.f32 %v3123, %v3206
        %v3244 = vmul.f32 %v3125, %v3211
        %v3245 = vmul.f32 %v3128, %v3216
        %v3246 = vmul.f32 %v3130, %v3221
        %v3247 = vmul.f32 %v3133, %v3226
        %v3248 = vmul.f32 %v3135, %v3231
        %v3249 = vpack.c.bf16 %v3233, %v3233
        %v3250 = vpack.c.bf16 %v3234, %v3234
        %v3251 = vpack.c.bf16 %v3235, %v3235
        %v3252 = vpack.c.bf16 %v3236, %v3236
        %v3253 = vpack.c.bf16 %v3237, %v3237
        %v3254 = vpack.c.bf16 %v3238, %v3238
        %v3255 = vpack.c.bf16 %v3239, %v3239
        %v3256 = vpack.c.bf16 %v3240, %v3240
        %v3257 = vpack.c.bf16 %v3241, %v3241
        %v3258 = vpack.c.bf16 %v3242, %v3242
        %v3259 = vpack.c.bf16 %v3243, %v3243
        %v3260 = vpack.c.bf16 %v3244, %v3244
        %v3261 = vpack.c.bf16 %v3245, %v3245
        %v3262 = vpack.c.bf16 %v3246, %v3246
        %v3263 = vpack.c.bf16 %v3247, %v3247
        %v3264 = vpack.c.bf16 %v3248, %v3248
        %3265 = vst [vmem:[%s367] sm:$0xf] %v3249
        %3266 = vst [vmem:[%s367 + $0x4] sm:$0xf] %v3250
        %3267 = vst [vmem:[%s367 + $0x8] sm:$0xf] %v3251
        %3268 = vst [vmem:[%s367 + $0xc] sm:$0xf] %v3252
        %3269 = vst [vmem:[%s367 + $0x10] sm:$0xf] %v3253
        %3270 = vst [vmem:[%s367 + $0x14] sm:$0xf] %v3254
        %3271 = vst [vmem:[%s367 + $0x18] sm:$0xf] %v3255
        %3272 = vst [vmem:[%s367 + $0x1c] sm:$0xf] %v3256
        %3273 = vst [vmem:[%s367 + $0x20] sm:$0xf] %v3257
        %3274 = vst [vmem:[%s367 + $0x24] sm:$0xf] %v3258
        %3275 = vst [vmem:[%s367 + $0x28] sm:$0xf] %v3259
        %3276 = vst [vmem:[%s367 + $0x2c] sm:$0xf] %v3260
        %3277 = vst [vmem:[%s367 + $0x30] sm:$0xf] %v3261
        %3278 = vst [vmem:[%s367 + $0x34] sm:$0xf] %v3262
        %3279 = vst [vmem:[%s367 + $0x38] sm:$0xf] %v3263
        %3280 = vst [vmem:[%s367 + $0x3c] sm:$0xf] %v3264
        %s3281 = sand.u32 %s238, 1
        %s3282 = scalar_lea.sflag [#allocation10], %s3281
        %s3283 = sand.u32 %s238, 1
        %s3284 = smul.addr %s3283, 64
        %s3285 = scalar_lea.vmem [#allocation9], %s3284
        // Predicated region
        $region57: #{_decoder_core.1} parent=51 // pred_check
          %p3286 = pneg %p248
        $region58: #{_decoder_core.1} parent=51 // pred_check_branch
          %3288 = sbr.rel (%p3286) target = $region60
        $region59: #{_decoder_core.1} parent=51 // pred_region
          %s3289 = smul.u32 8, %s36
          %s3290 = smul.u32 2, %s35
          %3292 = vsyncadd %s3282, 0
          %s3293 = smul.addr %s3289, 2
          %s3294 = sadd.s32 %s3290, %s3293
          %s3295 = smul.addr %s3294, 4
          %s3296 = scalar_lea.hbm %s9, %s3295
          %s3297 = sshll.u32 %s3285, 4
          %s3298 = int_to_ptr.vmem [resolvable:$true] %s3297
          %s3299 = sshll.u32 %s3296, 4
          %s3300 = int_to_ptr.hbm [resolvable:$true] %s3299
          %3305 = dma.vmem_to_hbm [thread:$0]  %s3298, 1024, %s3300, %s3282, 64, 64, 4
        $region60: #{_decoder_core.1} parent=51 // pred_fallthru
          _
      $region52: #{_decoder_core.1} parent=5 // pred_fallthru
        _
      %p3306 = scmp.le.s32.totalorder 2, %s26
      // Predicated region
      $region61: #{_decoder_core.1} parent=5 // pred_check
        %p3307 = pneg %p3306
      $region62: #{_decoder_core.1} parent=5 // pred_check_branch
        %3309 = sbr.rel (%p3307) target = $region64
      $region63: #{_decoder_core.1} parent=5 // pred_region
        %s3310 = ssub.s32 %s26, 2
        // Predicated region
        $region65: #{_decoder_core.1} parent=63 // pred_check
          %p3311 = pneg %p254
        $region66: #{_decoder_core.1} parent=63 // pred_check_branch
          %3313 = sbr.rel (%p3311) target = $region68
        $region67: #{_decoder_core.1} parent=63 // pred_region
          %s3314 = sand.u32 %s239, 1
          %s3315 = scalar_lea.sflag [#allocation10], %s3314
          %s3316 = sand.u32 %s239, 1
          %s3317 = smul.addr %s3316, 64
          %s3318 = scalar_lea.vmem [#allocation9], %s3317
          %3320 = dma.done %s3315, 1024
        $region68: #{_decoder_core.1} parent=63 // pred_fallthru
          _
      $region64: #{_decoder_core.1} parent=5 // pred_fallthru
        _
    $region6: #{_decoder_core.1} parent=1 // loop_footer
      %s30 = sadd.s32 1, %s26
    $region7: #{_decoder_core.1} parent=1 // loop_footer_branch
      %25 = sbr.rel target = $region3
    $region8: #{_decoder_core.1} parent=1 // loop_exit
      _
    %3321 = vsyncpa [#allocation10], 1
    %s3322 = scalar_lea.sflag [#allocation10], 1
    %3323 = vsyncpa %s3322, 1

</llo_original>
